<compile_context>
chip_gen: v6e
topology: v6e:2x2x1
jax: 0.10.0
libtpu: 0.0.40
codegen_flags: <defaults>
</compile_context>

<pallas_src>
import numpy as np

import jax
import jax.numpy as jnp
from jax.experimental import pallas as pl
from jax.experimental.pallas import tpu as pltpu


def _round_up(n, m):
    return ((n + m - 1) // m) * m


# ----------------------------------------------------------------------------
# Fused forward kernel (bt images per grid step, everything h-major)
# ----------------------------------------------------------------------------
def _fused_forward_kernel(x4_ref,                 # [4, 8, bt, 160] bf16
                          a1_ref, b1_ref,         # [160, 224] bf16, [1, 224] f32
                          pw1_ref,                # [2, 224, 144] bf16
                          a2_ref, b2_ref,         # [5, 144, 224] bf16, [1, 224] f32
                          pw2_ref,                # [2, 224, 112] bf16
                          wfc_ref, bfc_ref,       # [784, 128] bf16, [1, 128] f32
                          out_ref,                # [bt, 128] f32
                          scr_e, scr_o):          # [10*bt, 144] bf16 each
    f32 = jnp.float32
    bf16 = jnp.bfloat16
    bt = x4_ref.shape[2]          # images per program (multiple of 8)
    m = 8 * bt                    # rows per conv matmul (one row-residue class)

    def mm(a, b):
        return jnp.dot(a, b, preferred_element_type=f32)

    # ---- conv1 (1->8, k=5, pad=2): kh folded into K=160; one matmul per
    # output-row residue r = h mod 4.  Rows are h-major: row = j*bt + image. --
    a1 = a1_ref[...]
    y = [mm(x4_ref[r].reshape(m, 160), a1) for r in range(4)]       # 4x (m, 224)
    b1 = b1_ref[...]
    # pool1 row-max on the VPU: residues (0,1) -> even pooled rows q = 2j,
    # residues (2,3) -> odd pooled rows q = 2j+1; relu(max(a, b) + bias).
    r1_qe = jnp.maximum(jnp.maximum(y[0], y[1]) + b1, 0.0)          # (m, 224)
    r1_qo = jnp.maximum(jnp.maximum(y[2], y[3]) + b1, 0.0)

    # ---- pool1 column-max via 0/1 selection matmuls (folds conv2 W-pad) ----
    def colpool(act, pw_ref):
        ab = act.astype(bf16)
        return jnp.maximum(mm(ab, pw_ref[0]), mm(ab, pw_ref[1]))
    t1_qe = colpool(r1_qe, pw1_ref).astype(bf16)                    # (m, 144)
    t1_qo = colpool(r1_qo, pw1_ref).astype(bf16)

    # ---- stage conv2 input (H-padded, split by padded-row parity) ----------
    # scr_e row-block e holds padded row 2e; scr_o row-block o holds 2o+1.
    zpad1 = jnp.zeros((bt, 144), bf16)
    zpad2 = jnp.zeros((2 * bt, 144), bf16)
    scr_e[0:bt, :] = zpad1                                          # padded row 0
    scr_o[0:bt, :] = zpad1                                          # padded row 1
    scr_e[bt:8 * bt, :] = t1_qe[0:7 * bt, :]                        # rows 2..14
    scr_o[bt:8 * bt, :] = t1_qo[0:7 * bt, :]                        # rows 3..15
    scr_e[8 * bt:10 * bt, :] = zpad2                                # rows 16, 18
    scr_o[8 * bt:10 * bt, :] = zpad2                                # rows 17, 19

    # ---- conv2 (8->16, k=5, pad=2): banded matmuls, output rows split by
    # parity so pool2's row-max is again a VPU max.  Slab reads are contiguous
    # sublane-aligned ref slices. ---------------------------------------------
    def slab(scr, blk):                                             # (m, 144) bf16
        return scr[blk * bt:(blk + 8) * bt, :]
    acc_e = mm(slab(scr_e, 0), a2_ref[0])                           # h = 2q2,   kh=0
    acc_o = mm(slab(scr_o, 0), a2_ref[0])                           # h = 2q2+1, kh=0
    acc_e += mm(slab(scr_o, 0), a2_ref[1])
    acc_o += mm(slab(scr_e, 1), a2_ref[1])
    acc_e += mm(slab(scr_e, 1), a2_ref[2])
    acc_o += mm(slab(scr_o, 1), a2_ref[2])
    acc_e += mm(slab(scr_o, 1), a2_ref[3])
    acc_o += mm(slab(scr_e, 2), a2_ref[3])
    acc_e += mm(slab(scr_e, 2), a2_ref[4])
    acc_o += mm(slab(scr_o, 2), a2_ref[4])
    r2 = jnp.maximum(jnp.maximum(acc_e, acc_o) + b2_ref[...], 0.0)  # (m, 224)

    # ---- pool2 column-max ----------------------------------------------------
    p2 = colpool(r2, pw2_ref).astype(bf16)                          # (m, 112)

    # ---- fc: gather the 7 valid pooled rows per image into lanes; one
    # (bt, 784) x (784, 128) matmul (NCHW flatten folded into wfc). -----------
    fcin = jnp.concatenate([p2[q * bt:(q + 1) * bt, :] for q in range(7)],
                           axis=1)                                  # (bt, 784)
    logits = mm(fcin, wfc_ref[...]) + bfc_ref[...]
    out_ref[...] = logits.astype(out_ref.dtype)


# ----------------------------------------------------------------------------
# Host-side parameter repacking (done once, outside the jitted forward)
# ----------------------------------------------------------------------------
def prepare_params(params):
    """Repack PyTorch-shaped params into bf16 banded/selection matrices."""
    w1, b1, w2, b2, wf, bf = (np.asarray(p, np.float32) for p in params)

    # conv1 banded weights, kh folded into K: A1[kh*32+wp, w*8+co] = w1[co,0,kh,wp-w]
    A1 = np.zeros((5, 32, 28 * 8), np.float32)
    for kh in range(5):
        for kw in range(5):
            for w in range(28):
                A1[kh, w + kw, w * 8:(w + 1) * 8] = w1[:, 0, kh, kw]
    A1 = A1.reshape(160, 224)
    b1row = np.tile(b1, 28)[None, :]                                # [1, 224]

    # pool1 even/odd column selection (+ zero-pad placement for conv2 W)
    Pw1 = np.zeros((2, 28 * 8, 18 * 8), np.float32)
    for wq in range(14):
        for c in range(8):
            Pw1[0, (2 * wq) * 8 + c, (wq + 2) * 8 + c] = 1.0
            Pw1[1, (2 * wq + 1) * 8 + c, (wq + 2) * 8 + c] = 1.0

    # conv2 banded weights: A2[kh][(w+kw)*8+ci, w*16+co] = w2[co, ci, kh, kw]
    A2 = np.zeros((5, 18 * 8, 14 * 16), np.float32)
    for kh in range(5):
        for kw in range(5):
            for w in range(14):
                for ci in range(8):
                    A2[kh, (w + kw) * 8 + ci, w * 16:(w + 1) * 16] = w2[:, ci, kh, kw]
    b2row = np.tile(b2, 14)[None, :]                                # [1, 224]

    # pool2 even/odd column selection
    Pw2 = np.zeros((2, 14 * 16, 7 * 16), np.float32)
    for wq in range(7):
        for c in range(16):
            Pw2[0, (2 * wq) * 16 + c, wq * 16 + c] = 1.0
            Pw2[1, (2 * wq + 1) * 16 + c, wq * 16 + c] = 1.0

    # fc: fold the NCHW (c, h, w) flatten order into the weight; pad N 10 -> 128
    Wfc = np.zeros((784, 128), np.float32)
    for h in range(7):
        for w in range(7):
            for c in range(16):
                Wfc[h * 112 + w * 16 + c, :10] = wf[:, c * 49 + h * 7 + w]
    bfc = np.zeros((1, 128), np.float32)
    bfc[0, :10] = bf

    bf16 = jnp.bfloat16
    return (jnp.asarray(A1, bf16), jnp.asarray(b1row, jnp.float32),
            jnp.asarray(Pw1, bf16), jnp.asarray(A2, bf16),
            jnp.asarray(b2row, jnp.float32), jnp.asarray(Pw2, bf16),
            jnp.asarray(Wfc, bf16), jnp.asarray(bfc, jnp.float32))


# ----------------------------------------------------------------------------
# Host-side input slab construction (tiny; fused by XLA with the pad/cast)
# ----------------------------------------------------------------------------
def _prep_inputs(x_nchw, bt):
    B = x_nchw.shape[0]
    b_pad = _round_up(B, bt)
    x = x_nchw.reshape(B, 28, 28).astype(jnp.float32)
    if b_pad != B:
        x = jnp.pad(x, ((0, b_pad - B), (0, 0), (0, 0)))
    xpad = jnp.pad(x, ((0, 0), (2, 2), (2, 2)))                     # (b_pad, 32, 32)
    # 5-way row-shifted slab (kh folded into lanes): (b_pad, 28, 160)
    slab = jnp.concatenate([xpad[:, kh:kh + 28, :] for kh in range(5)], axis=-1)
    slab = jnp.transpose(slab, (1, 0, 2))                           # (28, b_pad, 160)
    # split conv1 output rows h by residue mod 4; pad 7 -> 8 rows of zeros
    x4 = jnp.stack([slab[r::4] for r in range(4)], axis=0)          # (4, 7, b_pad, 160)
    x4 = jnp.pad(x4, ((0, 0), (0, 1), (0, 0), (0, 0)))              # (4, 8, b_pad, 160)
    return x4.astype(jnp.bfloat16), b_pad


# ----------------------------------------------------------------------------
# Forward pass (single fused pallas_call, grid over batch tiles)
# ----------------------------------------------------------------------------
def tiny_convnet_forward(x_nchw, prepped, *, block_b=32):
    A1, b1row, Pw1, A2, b2row, Pw2, Wfc, bfc = prepped
    if x_nchw.shape[1:] != (1, 28, 28):
        raise ValueError(f"expected (B, 1, 28, 28) input, got {x_nchw.shape}")
    B = x_nchw.shape[0]

    bt = min(block_b, _round_up(max(B, 1), 8))
    bt = max(8, (bt // 8) * 8)                                      # bt % 8 == 0
    x4, b_pad = _prep_inputs(x_nchw, bt)

    const2 = lambda i: (0, 0)
    const3 = lambda i: (0, 0, 0)

    out = pl.pallas_call(
        _fused_forward_kernel,
        out_shape=jax.ShapeDtypeStruct((b_pad, 128), jnp.float32),
        grid=(b_pad // bt,),
        in_specs=[
            pl.BlockSpec((4, 8, bt, 160), lambda i: (0, 0, i, 0)),  # conv1 slabs
            pl.BlockSpec((160, 224), const2),                       # A1 (resident)
            pl.BlockSpec((1, 224), const2),                         # bias1 row
            pl.BlockSpec((2, 224, 144), const3),                    # pool1 col-select
            pl.BlockSpec((5, 144, 224), const3),                    # A2
            pl.BlockSpec((1, 224), const2),                         # bias2 row
            pl.BlockSpec((2, 224, 112), const3),                    # pool2 col-select
            pl.BlockSpec((784, 128), const2),                       # fc weight
            pl.BlockSpec((1, 128), const2),                         # fc bias (padded)
        ],
        out_specs=pl.BlockSpec((bt, 128), lambda i: (i, 0)),
        scratch_shapes=[
            pltpu.VMEM((10 * bt, 144), jnp.bfloat16),               # conv2 in (even rows)
            pltpu.VMEM((10 * bt, 144), jnp.bfloat16),               # conv2 in (odd rows)
        ],
        compiler_params=pltpu.CompilerParams(
            dimension_semantics=("parallel",)),
    )(x4, A1, b1row, Pw1, A2, b2row, Pw2, Wfc, bfc)

    return out[:B, :10]                                             # valid logits


# ----------------------------------------------------------------------------
# Reference (plain JAX) + param init, for the self-check
# ----------------------------------------------------------------------------
def reference_forward(x_nchw, params):
    w1, b1, w2, b2, wf, bf = params
    dn = ("NCHW", "OIHW", "NCHW")
    y = jax.lax.conv_general_dilated(x_nchw, w1, (1, 1), ((2, 2), (2, 2)),
                                     dimension_numbers=dn)
    y = jax.nn.relu(y + b1[None, :, None, None])
    y = jax.lax.reduce_window(y, -jnp.inf, jax.lax.max,
                              (1, 1, 2, 2), (1, 1, 2, 2), "VALID")
    y = jax.lax.conv_general_dilated(y, w2, (1, 1), ((2, 2), (2, 2)),
                                     dimension_numbers=dn)
    y = jax.nn.relu(y + b2[None, :, None, None])
    y = jax.lax.reduce_window(y, -jnp.inf, jax.lax.max,
                              (1, 1, 2, 2), (1, 1, 2, 2), "VALID")
    flat = y.reshape(y.shape[0], -1)                                # NCHW flatten
    return flat @ wf.T + bf[None, :]


def init_params(key):
    """Deterministic synthetic parameters with the PyTorch module's shapes."""
    k1, k2, k3, k4, k5, k6 = jax.random.split(key, 6)
    w1 = 0.1 * jax.random.normal(k1, (8, 1, 5, 5), jnp.float32)
    b1 = 0.1 * jax.random.normal(k2, (8,), jnp.float32)
    w2 = 0.05 * jax.random.normal(k3, (16, 8, 5, 5), jnp.float32)
    b2 = 0.1 * jax.random.normal(k4, (16,), jnp.float32)
    wf = 0.02 * jax.random.normal(k5, (10, 7 * 7 * 16), jnp.float32)
    bf = 0.1 * jax.random.normal(k6, (10,), jnp.float32)
    return (w1, b1, w2, b2, wf, bf)


if __name__ == "__main__":
    key = jax.random.PRNGKey(0)
    key_p, key_x = jax.random.split(key)
    params = init_params(key_p)
    prepped = prepare_params(params)

    # Input shape implied by the module (fc expects 7*7*16): [B, 1, 28, 28]
    x = jax.random.normal(key_x, (2, 1, 28, 28), jnp.float32)

    fwd = jax.jit(tiny_convnet_forward)
    logits = jax.block_until_ready(fwd(x, prepped))

    assert logits.shape == (2, 10), logits.shape
    assert bool(jnp.all(jnp.isfinite(logits)))

    ref = jax.block_until_ready(reference_forward(x, params))
    # bf16 matmul operands (f32 accumulation) -> compare with matching slack.
    np.testing.assert_allclose(np.asarray(logits), np.asarray(ref),
                               rtol=3e-2, atol=3e-2)

    print("KERNEL_OK")
</pallas_src>

<mosaic_0001>
module attributes {stable_mosaic.version = 11 : i64} {
  func.func @_fused_forward_kernel(%arg0: i32, %arg1: memref<4x8x8x160xbf16, #tpu.memory_space<vmem>>, %arg2: memref<160x224xbf16, #tpu.memory_space<vmem>>, %arg3: memref<1x224xf32, #tpu.memory_space<vmem>>, %arg4: memref<2x224x144xbf16, #tpu.memory_space<vmem>>, %arg5: memref<5x144x224xbf16, #tpu.memory_space<vmem>>, %arg6: memref<1x224xf32, #tpu.memory_space<vmem>>, %arg7: memref<2x224x112xbf16, #tpu.memory_space<vmem>>, %arg8: memref<784x128xbf16, #tpu.memory_space<vmem>>, %arg9: memref<1x128xf32, #tpu.memory_space<vmem>>, %arg10: memref<8x128xf32, #tpu.memory_space<vmem>>, %arg11: memref<80x144xbf16, #tpu.memory_space<vmem>>, %arg12: memref<80x144xbf16, #tpu.memory_space<vmem>>) attributes {dimension_semantics = [#tpu.dimension_semantics<parallel>], iteration_bounds = array<i64: 1>, scalar_prefetch = 0 : i64, scratch_operands = 2 : i64, tpu.core_type = #tpu.core_type<tc>, window_params = [{transform_indices = @transform_0, window_bounds = array<i64: 4, 8, 8, 160>}, {pipeline_mode = #tpu.pipeline_mode<synchronous>, transform_indices = @transform_1, window_bounds = array<i64: 160, 224>}, {pipeline_mode = #tpu.pipeline_mode<synchronous>, transform_indices = @transform_2, window_bounds = array<i64: 1, 224>}, {pipeline_mode = #tpu.pipeline_mode<synchronous>, transform_indices = @transform_3, window_bounds = array<i64: 2, 224, 144>}, {pipeline_mode = #tpu.pipeline_mode<synchronous>, transform_indices = @transform_4, window_bounds = array<i64: 5, 144, 224>}, {pipeline_mode = #tpu.pipeline_mode<synchronous>, transform_indices = @transform_5, window_bounds = array<i64: 1, 224>}, {pipeline_mode = #tpu.pipeline_mode<synchronous>, transform_indices = @transform_6, window_bounds = array<i64: 2, 224, 112>}, {pipeline_mode = #tpu.pipeline_mode<synchronous>, transform_indices = @transform_7, window_bounds = array<i64: 784, 128>}, {pipeline_mode = #tpu.pipeline_mode<synchronous>, transform_indices = @transform_8, window_bounds = array<i64: 1, 128>}, {transform_indices = @transform_9, window_bounds = array<i64: 8, 128>}]} {
    %c0 = arith.constant 0 : index
    %c0_0 = arith.constant 0 : index
    %0 = vector.load %arg2[%c0, %c0_0] : memref<160x224xbf16, #tpu.memory_space<vmem>>, vector<160x224xbf16>
    %c0_1 = arith.constant 0 : index
    %c0_2 = arith.constant 0 : index
    %c0_3 = arith.constant 0 : index
    %c0_4 = arith.constant 0 : index
    %1 = vector.load %arg1[%c0_1, %c0_2, %c0_3, %c0_4] : memref<4x8x8x160xbf16, #tpu.memory_space<vmem>>, vector<1x8x8x160xbf16>
    %2 = vector.shape_cast %1 : vector<1x8x8x160xbf16> to vector<8x8x160xbf16>
    %3 = vector.shape_cast %2 : vector<8x8x160xbf16> to vector<64x160xbf16>
    %cst = arith.constant dense<0.000000e+00> : vector<64x224xf32>
    %4 = tpu.matmul %3, %0, %cst {dimension_numbers = #tpu.dot_dimension_numbers<[1], [0], [0], [1], [0, 0, 1, 1], [], []>} : vector<64x160xbf16>, vector<160x224xbf16>, vector<64x224xf32> -> vector<64x224xf32>
    %c1 = arith.constant 1 : index
    %c0_5 = arith.constant 0 : index
    %c0_6 = arith.constant 0 : index
    %c0_7 = arith.constant 0 : index
    %5 = vector.load %arg1[%c1, %c0_5, %c0_6, %c0_7] : memref<4x8x8x160xbf16, #tpu.memory_space<vmem>>, vector<1x8x8x160xbf16>
    %6 = vector.shape_cast %5 : vector<1x8x8x160xbf16> to vector<8x8x160xbf16>
    %7 = vector.shape_cast %6 : vector<8x8x160xbf16> to vector<64x160xbf16>
    %cst_8 = arith.constant dense<0.000000e+00> : vector<64x224xf32>
    %8 = tpu.matmul %7, %0, %cst_8 {dimension_numbers = #tpu.dot_dimension_numbers<[1], [0], [0], [1], [0, 0, 1, 1], [], []>} : vector<64x160xbf16>, vector<160x224xbf16>, vector<64x224xf32> -> vector<64x224xf32>
    %c2 = arith.constant 2 : index
    %c0_9 = arith.constant 0 : index
    %c0_10 = arith.constant 0 : index
    %c0_11 = arith.constant 0 : index
    %9 = vector.load %arg1[%c2, %c0_9, %c0_10, %c0_11] : memref<4x8x8x160xbf16, #tpu.memory_space<vmem>>, vector<1x8x8x160xbf16>
    %10 = vector.shape_cast %9 : vector<1x8x8x160xbf16> to vector<8x8x160xbf16>
    %11 = vector.shape_cast %10 : vector<8x8x160xbf16> to vector<64x160xbf16>
    %cst_12 = arith.constant dense<0.000000e+00> : vector<64x224xf32>
    %12 = tpu.matmul %11, %0, %cst_12 {dimension_numbers = #tpu.dot_dimension_numbers<[1], [0], [0], [1], [0, 0, 1, 1], [], []>} : vector<64x160xbf16>, vector<160x224xbf16>, vector<64x224xf32> -> vector<64x224xf32>
    %c3 = arith.constant 3 : index
    %c0_13 = arith.constant 0 : index
    %c0_14 = arith.constant 0 : index
    %c0_15 = arith.constant 0 : index
    %13 = vector.load %arg1[%c3, %c0_13, %c0_14, %c0_15] : memref<4x8x8x160xbf16, #tpu.memory_space<vmem>>, vector<1x8x8x160xbf16>
    %14 = vector.shape_cast %13 : vector<1x8x8x160xbf16> to vector<8x8x160xbf16>
    %15 = vector.shape_cast %14 : vector<8x8x160xbf16> to vector<64x160xbf16>
    %cst_16 = arith.constant dense<0.000000e+00> : vector<64x224xf32>
    %16 = tpu.matmul %15, %0, %cst_16 {dimension_numbers = #tpu.dot_dimension_numbers<[1], [0], [0], [1], [0, 0, 1, 1], [], []>} : vector<64x160xbf16>, vector<160x224xbf16>, vector<64x224xf32> -> vector<64x224xf32>
    %c0_17 = arith.constant 0 : index
    %c0_18 = arith.constant 0 : index
    %17 = vector.load %arg3[%c0_17, %c0_18] : memref<1x224xf32, #tpu.memory_space<vmem>>, vector<1x224xf32>
    %18 = arith.maximumf %4, %8 : vector<64x224xf32>
    %19 = vector.broadcast %17 : vector<1x224xf32> to vector<64x224xf32>
    %20 = arith.addf %18, %19 : vector<64x224xf32>
    %cst_19 = arith.constant 0.000000e+00 : f32
    %21 = vector.broadcast %cst_19 : f32 to vector<64x224xf32>
    %22 = arith.maximumf %20, %21 : vector<64x224xf32>
    %23 = arith.maximumf %12, %16 : vector<64x224xf32>
    %24 = vector.broadcast %17 : vector<1x224xf32> to vector<64x224xf32>
    %25 = arith.addf %23, %24 : vector<64x224xf32>
    %cst_20 = arith.constant 0.000000e+00 : f32
    %26 = vector.broadcast %cst_20 : f32 to vector<64x224xf32>
    %27 = arith.maximumf %25, %26 : vector<64x224xf32>
    %28 = arith.truncf %22 : vector<64x224xf32> to vector<64x224xbf16>
    %c0_21 = arith.constant 0 : index
    %c0_22 = arith.constant 0 : index
    %c0_23 = arith.constant 0 : index
    %29 = vector.load %arg4[%c0_21, %c0_22, %c0_23] : memref<2x224x144xbf16, #tpu.memory_space<vmem>>, vector<1x224x144xbf16>
    %30 = vector.shape_cast %29 : vector<1x224x144xbf16> to vector<224x144xbf16>
    %cst_24 = arith.constant dense<0.000000e+00> : vector<64x144xf32>
    %31 = tpu.matmul %28, %30, %cst_24 {dimension_numbers = #tpu.dot_dimension_numbers<[1], [0], [0], [1], [0, 0, 1, 1], [], []>} : vector<64x224xbf16>, vector<224x144xbf16>, vector<64x144xf32> -> vector<64x144xf32>
    %c1_25 = arith.constant 1 : index
    %c0_26 = arith.constant 0 : index
    %c0_27 = arith.constant 0 : index
    %32 = vector.load %arg4[%c1_25, %c0_26, %c0_27] : memref<2x224x144xbf16, #tpu.memory_space<vmem>>, vector<1x224x144xbf16>
    %33 = vector.shape_cast %32 : vector<1x224x144xbf16> to vector<224x144xbf16>
    %cst_28 = arith.constant dense<0.000000e+00> : vector<64x144xf32>
    %34 = tpu.matmul %28, %33, %cst_28 {dimension_numbers = #tpu.dot_dimension_numbers<[1], [0], [0], [1], [0, 0, 1, 1], [], []>} : vector<64x224xbf16>, vector<224x144xbf16>, vector<64x144xf32> -> vector<64x144xf32>
    %35 = arith.maximumf %31, %34 : vector<64x144xf32>
    %36 = arith.truncf %35 : vector<64x144xf32> to vector<64x144xbf16>
    %37 = arith.truncf %27 : vector<64x224xf32> to vector<64x224xbf16>
    %c0_29 = arith.constant 0 : index
    %c0_30 = arith.constant 0 : index
    %c0_31 = arith.constant 0 : index
    %38 = vector.load %arg4[%c0_29, %c0_30, %c0_31] : memref<2x224x144xbf16, #tpu.memory_space<vmem>>, vector<1x224x144xbf16>
    %39 = vector.shape_cast %38 : vector<1x224x144xbf16> to vector<224x144xbf16>
    %cst_32 = arith.constant dense<0.000000e+00> : vector<64x144xf32>
    %40 = tpu.matmul %37, %39, %cst_32 {dimension_numbers = #tpu.dot_dimension_numbers<[1], [0], [0], [1], [0, 0, 1, 1], [], []>} : vector<64x224xbf16>, vector<224x144xbf16>, vector<64x144xf32> -> vector<64x144xf32>
    %c1_33 = arith.constant 1 : index
    %c0_34 = arith.constant 0 : index
    %c0_35 = arith.constant 0 : index
    %41 = vector.load %arg4[%c1_33, %c0_34, %c0_35] : memref<2x224x144xbf16, #tpu.memory_space<vmem>>, vector<1x224x144xbf16>
    %42 = vector.shape_cast %41 : vector<1x224x144xbf16> to vector<224x144xbf16>
    %cst_36 = arith.constant dense<0.000000e+00> : vector<64x144xf32>
    %43 = tpu.matmul %37, %42, %cst_36 {dimension_numbers = #tpu.dot_dimension_numbers<[1], [0], [0], [1], [0, 0, 1, 1], [], []>} : vector<64x224xbf16>, vector<224x144xbf16>, vector<64x144xf32> -> vector<64x144xf32>
    %44 = arith.maximumf %40, %43 : vector<64x144xf32>
    %45 = arith.truncf %44 : vector<64x144xf32> to vector<64x144xbf16>
    %cst_37 = arith.constant 0.000000e+00 : bf16
    %46 = vector.broadcast %cst_37 : bf16 to vector<8x144xbf16>
    %cst_38 = arith.constant 0.000000e+00 : bf16
    %47 = vector.broadcast %cst_38 : bf16 to vector<16x144xbf16>
    %c0_39 = arith.constant 0 : index
    %c0_40 = arith.constant 0 : index
    %48 = vector.load %arg11[%c0_39, %c0_40] : memref<80x144xbf16, #tpu.memory_space<vmem>>, vector<8x144xbf16>
    tpu.vector_store %arg11[%c0_39, %c0_40], %46 {strides = array<i32>} : memref<80x144xbf16, #tpu.memory_space<vmem>>, vector<8x144xbf16>,
    %c0_41 = arith.constant 0 : index
    %c0_42 = arith.constant 0 : index
    %49 = vector.load %arg12[%c0_41, %c0_42] : memref<80x144xbf16, #tpu.memory_space<vmem>>, vector<8x144xbf16>
    tpu.vector_store %arg12[%c0_41, %c0_42], %46 {strides = array<i32>} : memref<80x144xbf16, #tpu.memory_space<vmem>>, vector<8x144xbf16>,
    %50 = vector.extract_strided_slice %36 {offsets = [0, 0], sizes = [56, 144], strides = [1, 1]} : vector<64x144xbf16> to vector<56x144xbf16>
    %c8 = arith.constant 8 : index
    %c0_43 = arith.constant 0 : index
    %51 = vector.load %arg11[%c8, %c0_43] : memref<80x144xbf16, #tpu.memory_space<vmem>>, vector<56x144xbf16>
    tpu.vector_store %arg11[%c8, %c0_43], %50 {strides = array<i32>} : memref<80x144xbf16, #tpu.memory_space<vmem>>, vector<56x144xbf16>,
    %52 = vector.extract_strided_slice %45 {offsets = [0, 0], sizes = [56, 144], strides = [1, 1]} : vector<64x144xbf16> to vector<56x144xbf16>
    %c8_44 = arith.constant 8 : index
    %c0_45 = arith.constant 0 : index
    %53 = vector.load %arg12[%c8_44, %c0_45] : memref<80x144xbf16, #tpu.memory_space<vmem>>, vector<56x144xbf16>
    tpu.vector_store %arg12[%c8_44, %c0_45], %52 {strides = array<i32>} : memref<80x144xbf16, #tpu.memory_space<vmem>>, vector<56x144xbf16>,
    %c64 = arith.constant 64 : index
    %c0_46 = arith.constant 0 : index
    %54 = vector.load %arg11[%c64, %c0_46] : memref<80x144xbf16, #tpu.memory_space<vmem>>, vector<16x144xbf16>
    tpu.vector_store %arg11[%c64, %c0_46], %47 {strides = array<i32>} : memref<80x144xbf16, #tpu.memory_space<vmem>>, vector<16x144xbf16>,
    %c64_47 = arith.constant 64 : index
    %c0_48 = arith.constant 0 : index
    %55 = vector.load %arg12[%c64_47, %c0_48] : memref<80x144xbf16, #tpu.memory_space<vmem>>, vector<16x144xbf16>
    tpu.vector_store %arg12[%c64_47, %c0_48], %47 {strides = array<i32>} : memref<80x144xbf16, #tpu.memory_space<vmem>>, vector<16x144xbf16>,
    %c0_49 = arith.constant 0 : index
    %c0_50 = arith.constant 0 : index
    %56 = vector.load %arg11[%c0_49, %c0_50] : memref<80x144xbf16, #tpu.memory_space<vmem>>, vector<64x144xbf16>
    %c0_51 = arith.constant 0 : index
    %c0_52 = arith.constant 0 : index
    %c0_53 = arith.constant 0 : index
    %57 = vector.load %arg5[%c0_51, %c0_52, %c0_53] : memref<5x144x224xbf16, #tpu.memory_space<vmem>>, vector<1x144x224xbf16>
    %58 = vector.shape_cast %57 : vector<1x144x224xbf16> to vector<144x224xbf16>
    %cst_54 = arith.constant dense<0.000000e+00> : vector<64x224xf32>
    %59 = tpu.matmul %56, %58, %cst_54 {dimension_numbers = #tpu.dot_dimension_numbers<[1], [0], [0], [1], [0, 0, 1, 1], [], []>} : vector<64x144xbf16>, vector<144x224xbf16>, vector<64x224xf32> -> vector<64x224xf32>
    %c0_55 = arith.constant 0 : index
    %c0_56 = arith.constant 0 : index
    %60 = vector.load %arg12[%c0_55, %c0_56] : memref<80x144xbf16, #tpu.memory_space<vmem>>, vector<64x144xbf16>
    %c0_57 = arith.constant 0 : index
    %c0_58 = arith.constant 0 : index
    %c0_59 = arith.constant 0 : index
    %61 = vector.load %arg5[%c0_57, %c0_58, %c0_59] : memref<5x144x224xbf16, #tpu.memory_space<vmem>>, vector<1x144x224xbf16>
    %62 = vector.shape_cast %61 : vector<1x144x224xbf16> to vector<144x224xbf16>
    %cst_60 = arith.constant dense<0.000000e+00> : vector<64x224xf32>
    %63 = tpu.matmul %60, %62, %cst_60 {dimension_numbers = #tpu.dot_dimension_numbers<[1], [0], [0], [1], [0, 0, 1, 1], [], []>} : vector<64x144xbf16>, vector<144x224xbf16>, vector<64x224xf32> -> vector<64x224xf32>
    %c0_61 = arith.constant 0 : index
    %c0_62 = arith.constant 0 : index
    %64 = vector.load %arg12[%c0_61, %c0_62] : memref<80x144xbf16, #tpu.memory_space<vmem>>, vector<64x144xbf16>
    %c1_63 = arith.constant 1 : index
    %c0_64 = arith.constant 0 : index
    %c0_65 = arith.constant 0 : index
    %65 = vector.load %arg5[%c1_63, %c0_64, %c0_65] : memref<5x144x224xbf16, #tpu.memory_space<vmem>>, vector<1x144x224xbf16>
    %66 = vector.shape_cast %65 : vector<1x144x224xbf16> to vector<144x224xbf16>
    %cst_66 = arith.constant dense<0.000000e+00> : vector<64x224xf32>
    %67 = tpu.matmul %64, %66, %cst_66 {dimension_numbers = #tpu.dot_dimension_numbers<[1], [0], [0], [1], [0, 0, 1, 1], [], []>} : vector<64x144xbf16>, vector<144x224xbf16>, vector<64x224xf32> -> vector<64x224xf32>
    %68 = arith.addf %59, %67 : vector<64x224xf32>
    %c8_67 = arith.constant 8 : index
    %c0_68 = arith.constant 0 : index
    %69 = vector.load %arg11[%c8_67, %c0_68] : memref<80x144xbf16, #tpu.memory_space<vmem>>, vector<64x144xbf16>
    %c1_69 = arith.constant 1 : index
    %c0_70 = arith.constant 0 : index
    %c0_71 = arith.constant 0 : index
    %70 = vector.load %arg5[%c1_69, %c0_70, %c0_71] : memref<5x144x224xbf16, #tpu.memory_space<vmem>>, vector<1x144x224xbf16>
    %71 = vector.shape_cast %70 : vector<1x144x224xbf16> to vector<144x224xbf16>
    %cst_72 = arith.constant dense<0.000000e+00> : vector<64x224xf32>
    %72 = tpu.matmul %69, %71, %cst_72 {dimension_numbers = #tpu.dot_dimension_numbers<[1], [0], [0], [1], [0, 0, 1, 1], [], []>} : vector<64x144xbf16>, vector<144x224xbf16>, vector<64x224xf32> -> vector<64x224xf32>
    %73 = arith.addf %63, %72 : vector<64x224xf32>
    %c8_73 = arith.constant 8 : index
    %c0_74 = arith.constant 0 : index
    %74 = vector.load %arg11[%c8_73, %c0_74] : memref<80x144xbf16, #tpu.memory_space<vmem>>, vector<64x144xbf16>
    %c2_75 = arith.constant 2 : index
    %c0_76 = arith.constant 0 : index
    %c0_77 = arith.constant 0 : index
    %75 = vector.load %arg5[%c2_75, %c0_76, %c0_77] : memref<5x144x224xbf16, #tpu.memory_space<vmem>>, vector<1x144x224xbf16>
    %76 = vector.shape_cast %75 : vector<1x144x224xbf16> to vector<144x224xbf16>
    %cst_78 = arith.constant dense<0.000000e+00> : vector<64x224xf32>
    %77 = tpu.matmul %74, %76, %cst_78 {dimension_numbers = #tpu.dot_dimension_numbers<[1], [0], [0], [1], [0, 0, 1, 1], [], []>} : vector<64x144xbf16>, vector<144x224xbf16>, vector<64x224xf32> -> vector<64x224xf32>
    %78 = arith.addf %68, %77 : vector<64x224xf32>
    %c8_79 = arith.constant 8 : index
    %c0_80 = arith.constant 0 : index
    %79 = vector.load %arg12[%c8_79, %c0_80] : memref<80x144xbf16, #tpu.memory_space<vmem>>, vector<64x144xbf16>
    %c2_81 = arith.constant 2 : index
    %c0_82 = arith.constant 0 : index
    %c0_83 = arith.constant 0 : index
    %80 = vector.load %arg5[%c2_81, %c0_82, %c0_83] : memref<5x144x224xbf16, #tpu.memory_space<vmem>>, vector<1x144x224xbf16>
    %81 = vector.shape_cast %80 : vector<1x144x224xbf16> to vector<144x224xbf16>
    %cst_84 = arith.constant dense<0.000000e+00> : vector<64x224xf32>
    %82 = tpu.matmul %79, %81, %cst_84 {dimension_numbers = #tpu.dot_dimension_numbers<[1], [0], [0], [1], [0, 0, 1, 1], [], []>} : vector<64x144xbf16>, vector<144x224xbf16>, vector<64x224xf32> -> vector<64x224xf32>
    %83 = arith.addf %73, %82 : vector<64x224xf32>
    %c8_85 = arith.constant 8 : index
    %c0_86 = arith.constant 0 : index
    %84 = vector.load %arg12[%c8_85, %c0_86] : memref<80x144xbf16, #tpu.memory_space<vmem>>, vector<64x144xbf16>
    %c3_87 = arith.constant 3 : index
    %c0_88 = arith.constant 0 : index
    %c0_89 = arith.constant 0 : index
    %85 = vector.load %arg5[%c3_87, %c0_88, %c0_89] : memref<5x144x224xbf16, #tpu.memory_space<vmem>>, vector<1x144x224xbf16>
    %86 = vector.shape_cast %85 : vector<1x144x224xbf16> to vector<144x224xbf16>
    %cst_90 = arith.constant dense<0.000000e+00> : vector<64x224xf32>
    %87 = tpu.matmul %84, %86, %cst_90 {dimension_numbers = #tpu.dot_dimension_numbers<[1], [0], [0], [1], [0, 0, 1, 1], [], []>} : vector<64x144xbf16>, vector<144x224xbf16>, vector<64x224xf32> -> vector<64x224xf32>
    %88 = arith.addf %78, %87 : vector<64x224xf32>
    %c16 = arith.constant 16 : index
    %c0_91 = arith.constant 0 : index
    %89 = vector.load %arg11[%c16, %c0_91] : memref<80x144xbf16, #tpu.memory_space<vmem>>, vector<64x144xbf16>
    %c3_92 = arith.constant 3 : index
    %c0_93 = arith.constant 0 : index
    %c0_94 = arith.constant 0 : index
    %90 = vector.load %arg5[%c3_92, %c0_93, %c0_94] : memref<5x144x224xbf16, #tpu.memory_space<vmem>>, vector<1x144x224xbf16>
    %91 = vector.shape_cast %90 : vector<1x144x224xbf16> to vector<144x224xbf16>
    %cst_95 = arith.constant dense<0.000000e+00> : vector<64x224xf32>
    %92 = tpu.matmul %89, %91, %cst_95 {dimension_numbers = #tpu.dot_dimension_numbers<[1], [0], [0], [1], [0, 0, 1, 1], [], []>} : vector<64x144xbf16>, vector<144x224xbf16>, vector<64x224xf32> -> vector<64x224xf32>
    %93 = arith.addf %83, %92 : vector<64x224xf32>
    %c16_96 = arith.constant 16 : index
    %c0_97 = arith.constant 0 : index
    %94 = vector.load %arg11[%c16_96, %c0_97] : memref<80x144xbf16, #tpu.memory_space<vmem>>, vector<64x144xbf16>
    %c4 = arith.constant 4 : index
    %c0_98 = arith.constant 0 : index
    %c0_99 = arith.constant 0 : index
    %95 = vector.load %arg5[%c4, %c0_98, %c0_99] : memref<5x144x224xbf16, #tpu.memory_space<vmem>>, vector<1x144x224xbf16>
    %96 = vector.shape_cast %95 : vector<1x144x224xbf16> to vector<144x224xbf16>
    %cst_100 = arith.constant dense<0.000000e+00> : vector<64x224xf32>
    %97 = tpu.matmul %94, %96, %cst_100 {dimension_numbers = #tpu.dot_dimension_numbers<[1], [0], [0], [1], [0, 0, 1, 1], [], []>} : vector<64x144xbf16>, vector<144x224xbf16>, vector<64x224xf32> -> vector<64x224xf32>
    %98 = arith.addf %88, %97 : vector<64x224xf32>
    %c16_101 = arith.constant 16 : index
    %c0_102 = arith.constant 0 : index
    %99 = vector.load %arg12[%c16_101, %c0_102] : memref<80x144xbf16, #tpu.memory_space<vmem>>, vector<64x144xbf16>
    %c4_103 = arith.constant 4 : index
    %c0_104 = arith.constant 0 : index
    %c0_105 = arith.constant 0 : index
    %100 = vector.load %arg5[%c4_103, %c0_104, %c0_105] : memref<5x144x224xbf16, #tpu.memory_space<vmem>>, vector<1x144x224xbf16>
    %101 = vector.shape_cast %100 : vector<1x144x224xbf16> to vector<144x224xbf16>
    %cst_106 = arith.constant dense<0.000000e+00> : vector<64x224xf32>
    %102 = tpu.matmul %99, %101, %cst_106 {dimension_numbers = #tpu.dot_dimension_numbers<[1], [0], [0], [1], [0, 0, 1, 1], [], []>} : vector<64x144xbf16>, vector<144x224xbf16>, vector<64x224xf32> -> vector<64x224xf32>
    %103 = arith.addf %93, %102 : vector<64x224xf32>
    %104 = arith.maximumf %98, %103 : vector<64x224xf32>
    %c0_107 = arith.constant 0 : index
    %c0_108 = arith.constant 0 : index
    %105 = vector.load %arg6[%c0_107, %c0_108] : memref<1x224xf32, #tpu.memory_space<vmem>>, vector<1x224xf32>
    %106 = vector.broadcast %105 : vector<1x224xf32> to vector<64x224xf32>
    %107 = arith.addf %104, %106 : vector<64x224xf32>
    %cst_109 = arith.constant 0.000000e+00 : f32
    %108 = vector.broadcast %cst_109 : f32 to vector<64x224xf32>
    %109 = arith.maximumf %107, %108 : vector<64x224xf32>
    %110 = arith.truncf %109 : vector<64x224xf32> to vector<64x224xbf16>
    %c0_110 = arith.constant 0 : index
    %c0_111 = arith.constant 0 : index
    %c0_112 = arith.constant 0 : index
    %111 = vector.load %arg7[%c0_110, %c0_111, %c0_112] : memref<2x224x112xbf16, #tpu.memory_space<vmem>>, vector<1x224x112xbf16>
    %112 = vector.shape_cast %111 : vector<1x224x112xbf16> to vector<224x112xbf16>
    %cst_113 = arith.constant dense<0.000000e+00> : vector<64x112xf32>
    %113 = tpu.matmul %110, %112, %cst_113 {dimension_numbers = #tpu.dot_dimension_numbers<[1], [0], [0], [1], [0, 0, 1, 1], [], []>} : vector<64x224xbf16>, vector<224x112xbf16>, vector<64x112xf32> -> vector<64x112xf32>
    %c1_114 = arith.constant 1 : index
    %c0_115 = arith.constant 0 : index
    %c0_116 = arith.constant 0 : index
    %114 = vector.load %arg7[%c1_114, %c0_115, %c0_116] : memref<2x224x112xbf16, #tpu.memory_space<vmem>>, vector<1x224x112xbf16>
    %115 = vector.shape_cast %114 : vector<1x224x112xbf16> to vector<224x112xbf16>
    %cst_117 = arith.constant dense<0.000000e+00> : vector<64x112xf32>
    %116 = tpu.matmul %110, %115, %cst_117 {dimension_numbers = #tpu.dot_dimension_numbers<[1], [0], [0], [1], [0, 0, 1, 1], [], []>} : vector<64x224xbf16>, vector<224x112xbf16>, vector<64x112xf32> -> vector<64x112xf32>
    %117 = arith.maximumf %113, %116 : vector<64x112xf32>
    %118 = arith.truncf %117 : vector<64x112xf32> to vector<64x112xbf16>
    %119 = vector.extract_strided_slice %118 {offsets = [0, 0], sizes = [8, 112], strides = [1, 1]} : vector<64x112xbf16> to vector<8x112xbf16>
    %120 = vector.extract_strided_slice %118 {offsets = [8, 0], sizes = [8, 112], strides = [1, 1]} : vector<64x112xbf16> to vector<8x112xbf16>
    %121 = vector.extract_strided_slice %118 {offsets = [16, 0], sizes = [8, 112], strides = [1, 1]} : vector<64x112xbf16> to vector<8x112xbf16>
    %122 = vector.extract_strided_slice %118 {offsets = [24, 0], sizes = [8, 112], strides = [1, 1]} : vector<64x112xbf16> to vector<8x112xbf16>
    %123 = vector.extract_strided_slice %118 {offsets = [32, 0], sizes = [8, 112], strides = [1, 1]} : vector<64x112xbf16> to vector<8x112xbf16>
    %124 = vector.extract_strided_slice %118 {offsets = [40, 0], sizes = [8, 112], strides = [1, 1]} : vector<64x112xbf16> to vector<8x112xbf16>
    %125 = vector.extract_strided_slice %118 {offsets = [48, 0], sizes = [8, 112], strides = [1, 1]} : vector<64x112xbf16> to vector<8x112xbf16>
    %126 = tpu.concatenate %119, %120, %121, %122, %123, %124, %125 in 1 : vector<8x112xbf16>, vector<8x112xbf16>, vector<8x112xbf16>, vector<8x112xbf16>, vector<8x112xbf16>, vector<8x112xbf16>, vector<8x112xbf16> -> vector<8x784xbf16>
    %c0_118 = arith.constant 0 : index
    %c0_119 = arith.constant 0 : index
    %127 = vector.load %arg8[%c0_118, %c0_119] : memref<784x128xbf16, #tpu.memory_space<vmem>>, vector<784x128xbf16>
    %cst_120 = arith.constant dense<0.000000e+00> : vector<8x128xf32>
    %128 = tpu.matmul %126, %127, %cst_120 {dimension_numbers = #tpu.dot_dimension_numbers<[1], [0], [0], [1], [0, 0, 1, 1], [], []>} : vector<8x784xbf16>, vector<784x128xbf16>, vector<8x128xf32> -> vector<8x128xf32>
    %c0_121 = arith.constant 0 : index
    %c0_122 = arith.constant 0 : index
    %129 = vector.load %arg9[%c0_121, %c0_122] : memref<1x128xf32, #tpu.memory_space<vmem>>, vector<1x128xf32>
    %130 = vector.broadcast %129 : vector<1x128xf32> to vector<8x128xf32>
    %131 = arith.addf %128, %130 : vector<8x128xf32>
    %c0_123 = arith.constant 0 : index
    %c0_124 = arith.constant 0 : index
    %132 = vector.load %arg10[%c0_123, %c0_124] : memref<8x128xf32, #tpu.memory_space<vmem>>, vector<8x128xf32>
    tpu.vector_store %arg10[%c0_123, %c0_124], %131 {strides = array<i32>} : memref<8x128xf32, #tpu.memory_space<vmem>>, vector<8x128xf32>,
    return
  }
  func.func @transform_0(%arg0: i32) -> (i32, i32, i32, i32) {
    %c0_i32 = arith.constant 0 : i32
    %c0_i32_0 = arith.constant 0 : i32
    %c0_i32_1 = arith.constant 0 : i32
    %c0_i32_2 = arith.constant 0 : i32
    return %c0_i32, %c0_i32_0, %arg0, %c0_i32_1 : i32, i32, i32, i32
  }
  func.func @transform_1(%arg0: i32) -> (i32, i32) {
    %c0_i32 = arith.constant 0 : i32
    %c0_i32_0 = arith.constant 0 : i32
    %c0_i32_1 = arith.constant 0 : i32
    return %c0_i32, %c0_i32_0 : i32, i32
  }
  func.func @transform_2(%arg0: i32) -> (i32, i32) {
    %c0_i32 = arith.constant 0 : i32
    %c0_i32_0 = arith.constant 0 : i32
    %c0_i32_1 = arith.constant 0 : i32
    return %c0_i32, %c0_i32_0 : i32, i32
  }
  func.func @transform_3(%arg0: i32) -> (i32, i32, i32) {
    %c0_i32 = arith.constant 0 : i32
    %c0_i32_0 = arith.constant 0 : i32
    %c0_i32_1 = arith.constant 0 : i32
    %c0_i32_2 = arith.constant 0 : i32
    return %c0_i32, %c0_i32_0, %c0_i32_1 : i32, i32, i32
  }
  func.func @transform_4(%arg0: i32) -> (i32, i32, i32) {
    %c0_i32 = arith.constant 0 : i32
    %c0_i32_0 = arith.constant 0 : i32
    %c0_i32_1 = arith.constant 0 : i32
    %c0_i32_2 = arith.constant 0 : i32
    return %c0_i32, %c0_i32_0, %c0_i32_1 : i32, i32, i32
  }
  func.func @transform_5(%arg0: i32) -> (i32, i32) {
    %c0_i32 = arith.constant 0 : i32
    %c0_i32_0 = arith.constant 0 : i32
    %c0_i32_1 = arith.constant 0 : i32
    return %c0_i32, %c0_i32_0 : i32, i32
  }
  func.func @transform_6(%arg0: i32) -> (i32, i32, i32) {
    %c0_i32 = arith.constant 0 : i32
    %c0_i32_0 = arith.constant 0 : i32
    %c0_i32_1 = arith.constant 0 : i32
    %c0_i32_2 = arith.constant 0 : i32
    return %c0_i32, %c0_i32_0, %c0_i32_1 : i32, i32, i32
  }
  func.func @transform_7(%arg0: i32) -> (i32, i32) {
    %c0_i32 = arith.constant 0 : i32
    %c0_i32_0 = arith.constant 0 : i32
    %c0_i32_1 = arith.constant 0 : i32
    return %c0_i32, %c0_i32_0 : i32, i32
  }
  func.func @transform_8(%arg0: i32) -> (i32, i32) {
    %c0_i32 = arith.constant 0 : i32
    %c0_i32_0 = arith.constant 0 : i32
    %c0_i32_1 = arith.constant 0 : i32
    return %c0_i32, %c0_i32_0 : i32, i32
  }
  func.func @transform_9(%arg0: i32) -> (i32, i32) {
    %c0_i32 = arith.constant 0 : i32
    %c0_i32_0 = arith.constant 0 : i32
    return %arg0, %c0_i32 : i32, i32
  }
}

</mosaic_0001>

<llo_original>
// kernel: tiny_convnet_forward.1
$region0: #{tiny_convnet_forward.1}
  #allocation0 [shape = 'u32[]', space=smem, size = 0x4, offset = 0x4, fixed_abs, tag = 'smem constant byte address 0x4 - core index']
  #allocation1 [shape = 'u32[144,128]{1,0:T(1,128)}', space=vmem, size = 0x12000, scoped, tag = 'internal scratch']
  #allocation2 [shape = 'bf16[80,144]{1,0:T(8,128)(2,1)}', space=vmem, size = 0xa000, scoped, tag = 'scratch operand']
  #allocation3 [shape = 'bf16[80,144]{1,0:T(8,128)(2,1)}', space=vmem, size = 0xa000, scoped, tag = 'scratch operand']
  %s0 = inlined_call_operand.vmem [shape: bf16[4,8,8,160], index: 0, kind: input, shape index: {}]
  %s1 = inlined_call_operand.vmem [shape: bf16[160,224], index: 1, kind: input, shape index: {}]
  %s2 = inlined_call_operand.vmem [shape: f32[1,224], index: 2, kind: input, shape index: {}]
  %s3 = inlined_call_operand.vmem [shape: bf16[2,224,144], index: 3, kind: input, shape index: {}]
  %s4 = inlined_call_operand.vmem [shape: bf16[5,144,224], index: 4, kind: input, shape index: {}]
  %s5 = inlined_call_operand.vmem [shape: f32[1,224], index: 5, kind: input, shape index: {}]
  %s6 = inlined_call_operand.vmem [shape: bf16[2,224,112], index: 6, kind: input, shape index: {}]
  %s7 = inlined_call_operand.vmem [shape: bf16[784,128], index: 7, kind: input, shape index: {}]
  %s8 = inlined_call_operand.vmem [shape: f32[1,128], index: 8, kind: input, shape index: {}]
  %s9 = inlined_call_operand.vmem [shape: f32[8,128], index: 9, kind: output, shape index: {}]
  %s10 = sld [smem:[#allocation0]]
  $region46: #{tiny_convnet_forward.1} parent=0
    _
  %s12 = ssub.s32 1, %s10
  %s13 = scalar_select 0, %s12, %s10
  // Predicated region
  $region2: #{tiny_convnet_forward.1} parent=0 // pred_check
    _
  $region3: #{tiny_convnet_forward.1} parent=0 // pred_check_branch
    %15 = sbr.rel (0) target = $region5
  $region4: #{tiny_convnet_forward.1} parent=0 // pred_region
    _
  $region5: #{tiny_convnet_forward.1} parent=0 // pred_fallthru
    _
  // Predicated region
  $region6: #{tiny_convnet_forward.1} parent=0 // pred_check
    _
  $region7: #{tiny_convnet_forward.1} parent=0 // pred_check_branch
    %17 = sbr.rel (0) target = $region9
  $region8: #{tiny_convnet_forward.1} parent=0 // pred_region
    _
  $region9: #{tiny_convnet_forward.1} parent=0 // pred_fallthru
    _
  // Predicated region
  $region10: #{tiny_convnet_forward.1} parent=0 // pred_check
    _
  $region11: #{tiny_convnet_forward.1} parent=0 // pred_check_branch
    %19 = sbr.rel (0) target = $region13
  $region12: #{tiny_convnet_forward.1} parent=0 // pred_region
    _
  $region13: #{tiny_convnet_forward.1} parent=0 // pred_fallthru
    _
  // Predicated region
  $region14: #{tiny_convnet_forward.1} parent=0 // pred_check
    _
  $region15: #{tiny_convnet_forward.1} parent=0 // pred_check_branch
    %21 = sbr.rel (0) target = $region17
  $region16: #{tiny_convnet_forward.1} parent=0 // pred_region
    _
  $region17: #{tiny_convnet_forward.1} parent=0 // pred_fallthru
    _
  // Predicated region
  $region18: #{tiny_convnet_forward.1} parent=0 // pred_check
    _
  $region19: #{tiny_convnet_forward.1} parent=0 // pred_check_branch
    %23 = sbr.rel (0) target = $region21
  $region20: #{tiny_convnet_forward.1} parent=0 // pred_region
    _
  $region21: #{tiny_convnet_forward.1} parent=0 // pred_fallthru
    _
  // Predicated region
  $region22: #{tiny_convnet_forward.1} parent=0 // pred_check
    _
  $region23: #{tiny_convnet_forward.1} parent=0 // pred_check_branch
    %25 = sbr.rel (0) target = $region25
  $region24: #{tiny_convnet_forward.1} parent=0 // pred_region
    _
  $region25: #{tiny_convnet_forward.1} parent=0 // pred_fallthru
    _
  // Predicated region
  $region26: #{tiny_convnet_forward.1} parent=0 // pred_check
    _
  $region27: #{tiny_convnet_forward.1} parent=0 // pred_check_branch
    %27 = sbr.rel (0) target = $region29
  $region28: #{tiny_convnet_forward.1} parent=0 // pred_region
    _
  $region29: #{tiny_convnet_forward.1} parent=0 // pred_fallthru
    _
  // Predicated region
  $region30: #{tiny_convnet_forward.1} parent=0 // pred_check
    _
  $region31: #{tiny_convnet_forward.1} parent=0 // pred_check_branch
    %29 = sbr.rel (0) target = $region33
  $region32: #{tiny_convnet_forward.1} parent=0 // pred_region
    _
  $region33: #{tiny_convnet_forward.1} parent=0 // pred_fallthru
    _
  // Predicated region
  $region34: #{tiny_convnet_forward.1} parent=0 // pred_check
    _
  $region35: #{tiny_convnet_forward.1} parent=0 // pred_check_branch
    %31 = sbr.rel (0) target = $region37
  $region36: #{tiny_convnet_forward.1} parent=0 // pred_region
    _
  $region37: #{tiny_convnet_forward.1} parent=0 // pred_fallthru
    _
  %v33 = vld [vmem:[%s1] sm:$0xff]
  %v34 = vld [vmem:[%s1 + $0x8] sm:$0xff]
  %v35 = vld [vmem:[%s1 + $0x10] sm:$0xff]
  %v36 = vld [vmem:[%s1 + $0x18] sm:$0xff]
  %v37 = vld [vmem:[%s1 + $0x20] sm:$0xff]
  %v38 = vld [vmem:[%s1 + $0x28] sm:$0xff]
  %v39 = vld [vmem:[%s1 + $0x30] sm:$0xff]
  %v40 = vld [vmem:[%s1 + $0x38] sm:$0xff]
  %v41 = vld [vmem:[%s1 + $0x40] sm:$0xff]
  %v42 = vld [vmem:[%s1 + $0x48] sm:$0xff]
  %v43 = vld [vmem:[%s1 + $0x50] sm:$0xff]
  %v44 = vld [vmem:[%s1 + $0x58] sm:$0xff]
  %v45 = vld [vmem:[%s1 + $0x60] sm:$0xff]
  %v46 = vld [vmem:[%s1 + $0x68] sm:$0xff]
  %v47 = vld [vmem:[%s1 + $0x70] sm:$0xff]
  %v48 = vld [vmem:[%s1 + $0x78] sm:$0xff]
  %v49 = vld [vmem:[%s1 + $0x80] sm:$0xff]
  %v50 = vld [vmem:[%s1 + $0x88] sm:$0xff]
  %v51 = vld [vmem:[%s1 + $0x90] sm:$0xff]
  %v52 = vld [vmem:[%s1 + $0x98] sm:$0xff]
  %v53 = vld [vmem:[%s0] sm:$0xff]
  %v54 = vld [vmem:[%s0 + $0x8] sm:$0xff]
  %v55 = vld [vmem:[%s0 + $0x10] sm:$0xff]
  %v56 = vld [vmem:[%s0 + $0x18] sm:$0xff]
  %v57 = vld [vmem:[%s0 + $0x20] sm:$0xff]
  %v58 = vld [vmem:[%s0 + $0x28] sm:$0xff]
  %v59 = vld [vmem:[%s0 + $0x30] sm:$0xff]
  %v60 = vld [vmem:[%s0 + $0x38] sm:$0xff]
  %v69 = vunpack.c.l.b16 %v53
  %v70 = vunpack.c.h.b16 %v53
  %v71 = vunpack.c.l.b16 %v54
  %v72 = vunpack.c.h.b16 %v54
  %v73 = vunpack.c.l.b16 %v55
  %v74 = vunpack.c.h.b16 %v55
  %v75 = vunpack.c.l.b16 %v56
  %v76 = vunpack.c.h.b16 %v56
  %v77 = vunpack.c.l.b16 %v57
  %v78 = vunpack.c.h.b16 %v57
  %v79 = vunpack.c.l.b16 %v58
  %v80 = vunpack.c.h.b16 %v58
  %v81 = vunpack.c.l.b16 %v59
  %v82 = vunpack.c.h.b16 %v59
  %v83 = vunpack.c.l.b16 %v60
  %v84 = vunpack.c.h.b16 %v60
  %v85 = vpack.c.b16 %v71, %v69
  %v86 = vpack.c.b16 %v72, %v70
  %v87 = vpack.c.b16 %v75, %v73
  %v88 = vpack.c.b16 %v76, %v74
  %v89 = vpack.c.b16 %v79, %v77
  %v90 = vpack.c.b16 %v80, %v78
  %v91 = vpack.c.b16 %v83, %v81
  %v92 = vpack.c.b16 %v84, %v82
  %v117 = vunpack.c.l.b16 %v33
  %v118 = vunpack.c.h.b16 %v33
  %v119 = vunpack.c.l.b16 %v34
  %v120 = vunpack.c.h.b16 %v34
  %v121 = vunpack.c.l.b16 %v35
  %v122 = vunpack.c.h.b16 %v35
  %v123 = vunpack.c.l.b16 %v36
  %v124 = vunpack.c.h.b16 %v36
  %v125 = vunpack.c.l.b16 %v37
  %v126 = vunpack.c.h.b16 %v37
  %v127 = vunpack.c.l.b16 %v38
  %v128 = vunpack.c.h.b16 %v38
  %v129 = vunpack.c.l.b16 %v39
  %v130 = vunpack.c.h.b16 %v39
  %v131 = vunpack.c.l.b16 %v40
  %v132 = vunpack.c.h.b16 %v40
  %v133 = vunpack.c.l.b16 %v41
  %v134 = vunpack.c.h.b16 %v41
  %v135 = vunpack.c.l.b16 %v42
  %v136 = vunpack.c.h.b16 %v42
  %v137 = vunpack.c.l.b16 %v43
  %v138 = vunpack.c.h.b16 %v43
  %v139 = vunpack.c.l.b16 %v44
  %v140 = vunpack.c.h.b16 %v44
  %v141 = vunpack.c.l.b16 %v45
  %v142 = vunpack.c.h.b16 %v45
  %v143 = vunpack.c.l.b16 %v46
  %v144 = vunpack.c.h.b16 %v46
  %v145 = vunpack.c.l.b16 %v47
  %v146 = vunpack.c.h.b16 %v47
  %v147 = vunpack.c.l.b16 %v48
  %v148 = vunpack.c.h.b16 %v48
  %v149 = vunpack.c.l.b16 %v49
  %v150 = vunpack.c.h.b16 %v49
  %v151 = vunpack.c.l.b16 %v50
  %v152 = vunpack.c.h.b16 %v50
  %v153 = vunpack.c.l.b16 %v51
  %v154 = vunpack.c.h.b16 %v51
  %v155 = vunpack.c.l.b16 %v52
  %v156 = vunpack.c.h.b16 %v52
  %v157 = vpack.c.b16 %v119, %v117
  %v158 = vpack.c.b16 %v120, %v118
  %v159 = vpack.c.b16 %v123, %v121
  %v160 = vpack.c.b16 %v124, %v122
  %v161 = vpack.c.b16 %v127, %v125
  %v162 = vpack.c.b16 %v128, %v126
  %v163 = vpack.c.b16 %v131, %v129
  %v164 = vpack.c.b16 %v132, %v130
  %v165 = vpack.c.b16 %v135, %v133
  %v166 = vpack.c.b16 %v136, %v134
  %v167 = vpack.c.b16 %v139, %v137
  %v168 = vpack.c.b16 %v140, %v138
  %v169 = vpack.c.b16 %v143, %v141
  %v170 = vpack.c.b16 %v144, %v142
  %v171 = vpack.c.b16 %v147, %v145
  %v172 = vpack.c.b16 %v148, %v146
  %v173 = vpack.c.b16 %v151, %v149
  %v174 = vpack.c.b16 %v152, %v150
  %v175 = vpack.c.b16 %v155, %v153
  %v176 = vpack.c.b16 %v156, %v154
  %vm197 = vcmask 261120
  %v199 = vsel %vm197, %v86, 0
  %v202 = vsel %vm197, %v88, 0
  %v205 = vsel %vm197, %v90, 0
  %v208 = vsel %vm197, %v92, 0
  %210 = vmatprep.subr.bf16.mxu0 %v172
  %211 = vmatpush1.bf16.msra.mxu0 %v171
  %212 = vmatprep.subr.bf16.mxu0 %v170
  %213 = vmatpush1.bf16.msra.mxu0 %v169
  %214 = vmatprep.subr.bf16.mxu0 %v168
  %215 = vmatpush1.bf16.msra.mxu0 %v167
  %216 = vmatprep.subr.bf16.mxu0 %v166
  %217 = vmatpush1.bf16.msra.mxu0 %v165
  %218 = vmatprep.subr.bf16.mxu0 %v164
  %219 = vmatpush1.bf16.msra.mxu0 %v163
  %220 = vmatprep.subr.bf16.mxu0 %v162
  %221 = vmatpush1.bf16.msra.mxu0 %v161
  %222 = vmatprep.subr.bf16.mxu0 %v160
  %223 = vmatpush1.bf16.msra.mxu0 %v159
  %224 = vmatprep.subr.bf16.mxu0 %v158
  %225 = vmatpush1.bf16.msra.mxu0 %v157
  %226 = vmatprep.subr.bf16.mxu0 0
  %227 = vmatpush2.bf16.msra.mxu0 0
  %228 = vmatprep.subr.bf16.mxu0 0
  %229 = vmatpush2.bf16.msra.mxu0 0
  %230 = vmatprep.subr.bf16.mxu0 0
  %231 = vmatpush2.bf16.msra.mxu0 0
  %232 = vmatprep.subr.bf16.mxu0 0
  %233 = vmatpush2.bf16.msra.mxu0 0
  %234 = vmatprep.subr.bf16.mxu0 0
  %235 = vmatpush2.bf16.msra.mxu0 0
  %236 = vmatprep.subr.bf16.mxu0 0
  %237 = vmatpush2.bf16.msra.mxu0 0
  %238 = vmatprep.subr.bf16.mxu0 %v176
  %239 = vmatpush2.bf16.msra.mxu0 %v175
  %240 = vmatprep.subr.bf16.mxu0 %v174
  %241 = vmatpush2.bf16.msra.mxu0 %v173
  %242 = vmatprep.mubr.bf16.mxu0 %v199
  %243 = vmatmul.mubr.bf16.gmra.mxu0 %v85
  %v244 = vpop.f32.mrf.mxu0
  %v245 = vadd.f32 0.0, %v244
  %v246 = vpop.f32.mrf.mxu0
  %v247 = vadd.f32 0.0, %v246
  %v248 = vpop.f32.mrf.mxu0
  %v249 = vadd.f32 0.0, %v248
  %v250 = vpop.f32.mrf.mxu0
  %v251 = vadd.f32 0.0, %v250
  %252 = vmatprep.mubr.bf16.mxu0 %v202
  %253 = vmatmul.mubr.bf16.gmra.mxu0 %v87
  %v254 = vpop.f32.mrf.mxu0
  %v255 = vadd.f32 0.0, %v254
  %v256 = vpop.f32.mrf.mxu0
  %v257 = vadd.f32 0.0, %v256
  %v258 = vpop.f32.mrf.mxu0
  %v259 = vadd.f32 0.0, %v258
  %v260 = vpop.f32.mrf.mxu0
  %v261 = vadd.f32 0.0, %v260
  %262 = vmatprep.mubr.bf16.mxu0 %v205
  %263 = vmatmul.mubr.bf16.gmra.mxu0 %v89
  %v264 = vpop.f32.mrf.mxu0
  %v265 = vadd.f32 0.0, %v264
  %v266 = vpop.f32.mrf.mxu0
  %v267 = vadd.f32 0.0, %v266
  %v268 = vpop.f32.mrf.mxu0
  %v269 = vadd.f32 0.0, %v268
  %v270 = vpop.f32.mrf.mxu0
  %v271 = vadd.f32 0.0, %v270
  %272 = vmatprep.mubr.bf16.mxu0 %v208
  %273 = vmatmul.mubr.bf16.gmra.mxu0 %v91
  %v274 = vpop.f32.mrf.mxu0
  %v275 = vadd.f32 0.0, %v274
  %v276 = vpop.f32.mrf.mxu0
  %v277 = vadd.f32 0.0, %v276
  %v278 = vpop.f32.mrf.mxu0
  %v279 = vadd.f32 0.0, %v278
  %v280 = vpop.f32.mrf.mxu0
  %v281 = vadd.f32 0.0, %v280
  %282 = vdwg.mxu0
  %s283 = scalar_lea.vmem %s0, 64
  %v284 = vld [vmem:[%s283] sm:$0xff]
  %v285 = vld [vmem:[%s283 + $0x8] sm:$0xff]
  %v286 = vld [vmem:[%s283 + $0x10] sm:$0xff]
  %v287 = vld [vmem:[%s283 + $0x18] sm:$0xff]
  %v288 = vld [vmem:[%s283 + $0x20] sm:$0xff]
  %v289 = vld [vmem:[%s283 + $0x28] sm:$0xff]
  %v290 = vld [vmem:[%s283 + $0x30] sm:$0xff]
  %v291 = vld [vmem:[%s283 + $0x38] sm:$0xff]
  %v300 = vunpack.c.l.b16 %v284
  %v301 = vunpack.c.h.b16 %v284
  %v302 = vunpack.c.l.b16 %v285
  %v303 = vunpack.c.h.b16 %v285
  %v304 = vunpack.c.l.b16 %v286
  %v305 = vunpack.c.h.b16 %v286
  %v306 = vunpack.c.l.b16 %v287
  %v307 = vunpack.c.h.b16 %v287
  %v308 = vunpack.c.l.b16 %v288
  %v309 = vunpack.c.h.b16 %v288
  %v310 = vunpack.c.l.b16 %v289
  %v311 = vunpack.c.h.b16 %v289
  %v312 = vunpack.c.l.b16 %v290
  %v313 = vunpack.c.h.b16 %v290
  %v314 = vunpack.c.l.b16 %v291
  %v315 = vunpack.c.h.b16 %v291
  %v316 = vpack.c.b16 %v302, %v300
  %v317 = vpack.c.b16 %v303, %v301
  %v318 = vpack.c.b16 %v306, %v304
  %v319 = vpack.c.b16 %v307, %v305
  %v320 = vpack.c.b16 %v310, %v308
  %v321 = vpack.c.b16 %v311, %v309
  %v322 = vpack.c.b16 %v314, %v312
  %v323 = vpack.c.b16 %v315, %v313
  %v329 = vsel %vm197, %v317, 0
  %v332 = vsel %vm197, %v319, 0
  %v335 = vsel %vm197, %v321, 0
  %v338 = vsel %vm197, %v323, 0
  %340 = vmatprep.subr.bf16.mxu0 %v172
  %341 = vmatpush1.bf16.msra.mxu0 %v171
  %342 = vmatprep.subr.bf16.mxu0 %v170
  %343 = vmatpush1.bf16.msra.mxu0 %v169
  %344 = vmatprep.subr.bf16.mxu0 %v168
  %345 = vmatpush1.bf16.msra.mxu0 %v167
  %346 = vmatprep.subr.bf16.mxu0 %v166
  %347 = vmatpush1.bf16.msra.mxu0 %v165
  %348 = vmatprep.subr.bf16.mxu0 %v164
  %349 = vmatpush1.bf16.msra.mxu0 %v163
  %350 = vmatprep.subr.bf16.mxu0 %v162
  %351 = vmatpush1.bf16.msra.mxu0 %v161
  %352 = vmatprep.subr.bf16.mxu0 %v160
  %353 = vmatpush1.bf16.msra.mxu0 %v159
  %354 = vmatprep.subr.bf16.mxu0 %v158
  %355 = vmatpush1.bf16.msra.mxu0 %v157
  %356 = vmatprep.subr.bf16.mxu0 0
  %357 = vmatpush2.bf16.msra.mxu0 0
  %358 = vmatprep.subr.bf16.mxu0 0
  %359 = vmatpush2.bf16.msra.mxu0 0
  %360 = vmatprep.subr.bf16.mxu0 0
  %361 = vmatpush2.bf16.msra.mxu0 0
  %362 = vmatprep.subr.bf16.mxu0 0
  %363 = vmatpush2.bf16.msra.mxu0 0
  %364 = vmatprep.subr.bf16.mxu0 0
  %365 = vmatpush2.bf16.msra.mxu0 0
  %366 = vmatprep.subr.bf16.mxu0 0
  %367 = vmatpush2.bf16.msra.mxu0 0
  %368 = vmatprep.subr.bf16.mxu0 %v176
  %369 = vmatpush2.bf16.msra.mxu0 %v175
  %370 = vmatprep.subr.bf16.mxu0 %v174
  %371 = vmatpush2.bf16.msra.mxu0 %v173
  %372 = vmatprep.mubr.bf16.mxu0 %v329
  %373 = vmatmul.mubr.bf16.gmra.mxu0 %v316
  %v374 = vpop.f32.mrf.mxu0
  %v375 = vadd.f32 0.0, %v374
  %v376 = vpop.f32.mrf.mxu0
  %v377 = vadd.f32 0.0, %v376
  %v378 = vpop.f32.mrf.mxu0
  %v379 = vadd.f32 0.0, %v378
  %v380 = vpop.f32.mrf.mxu0
  %v381 = vadd.f32 0.0, %v380
  %382 = vmatprep.mubr.bf16.mxu0 %v332
  %383 = vmatmul.mubr.bf16.gmra.mxu0 %v318
  %v384 = vpop.f32.mrf.mxu0
  %v385 = vadd.f32 0.0, %v384
  %v386 = vpop.f32.mrf.mxu0
  %v387 = vadd.f32 0.0, %v386
  %v388 = vpop.f32.mrf.mxu0
  %v389 = vadd.f32 0.0, %v388
  %v390 = vpop.f32.mrf.mxu0
  %v391 = vadd.f32 0.0, %v390
  %392 = vmatprep.mubr.bf16.mxu0 %v335
  %393 = vmatmul.mubr.bf16.gmra.mxu0 %v320
  %v394 = vpop.f32.mrf.mxu0
  %v395 = vadd.f32 0.0, %v394
  %v396 = vpop.f32.mrf.mxu0
  %v397 = vadd.f32 0.0, %v396
  %v398 = vpop.f32.mrf.mxu0
  %v399 = vadd.f32 0.0, %v398
  %v400 = vpop.f32.mrf.mxu0
  %v401 = vadd.f32 0.0, %v400
  %402 = vmatprep.mubr.bf16.mxu0 %v338
  %403 = vmatmul.mubr.bf16.gmra.mxu0 %v322
  %v404 = vpop.f32.mrf.mxu0
  %v405 = vadd.f32 0.0, %v404
  %v406 = vpop.f32.mrf.mxu0
  %v407 = vadd.f32 0.0, %v406
  %v408 = vpop.f32.mrf.mxu0
  %v409 = vadd.f32 0.0, %v408
  %v410 = vpop.f32.mrf.mxu0
  %v411 = vadd.f32 0.0, %v410
  %412 = vdwg.mxu0
  %s413 = scalar_lea.vmem %s0, 128
  %v414 = vld [vmem:[%s413] sm:$0xff]
  %v415 = vld [vmem:[%s413 + $0x8] sm:$0xff]
  %v416 = vld [vmem:[%s413 + $0x10] sm:$0xff]
  %v417 = vld [vmem:[%s413 + $0x18] sm:$0xff]
  %v418 = vld [vmem:[%s413 + $0x20] sm:$0xff]
  %v419 = vld [vmem:[%s413 + $0x28] sm:$0xff]
  %v420 = vld [vmem:[%s413 + $0x30] sm:$0xff]
  %v421 = vld [vmem:[%s413 + $0x38] sm:$0xff]
  %v430 = vunpack.c.l.b16 %v414
  %v431 = vunpack.c.h.b16 %v414
  %v432 = vunpack.c.l.b16 %v415
  %v433 = vunpack.c.h.b16 %v415
  %v434 = vunpack.c.l.b16 %v416
  %v435 = vunpack.c.h.b16 %v416
  %v436 = vunpack.c.l.b16 %v417
  %v437 = vunpack.c.h.b16 %v417
  %v438 = vunpack.c.l.b16 %v418
  %v439 = vunpack.c.h.b16 %v418
  %v440 = vunpack.c.l.b16 %v419
  %v441 = vunpack.c.h.b16 %v419
  %v442 = vunpack.c.l.b16 %v420
  %v443 = vunpack.c.h.b16 %v420
  %v444 = vunpack.c.l.b16 %v421
  %v445 = vunpack.c.h.b16 %v421
  %v446 = vpack.c.b16 %v432, %v430
  %v447 = vpack.c.b16 %v433, %v431
  %v448 = vpack.c.b16 %v436, %v434
  %v449 = vpack.c.b16 %v437, %v435
  %v450 = vpack.c.b16 %v440, %v438
  %v451 = vpack.c.b16 %v441, %v439
  %v452 = vpack.c.b16 %v444, %v442
  %v453 = vpack.c.b16 %v445, %v443
  %v459 = vsel %vm197, %v447, 0
  %v462 = vsel %vm197, %v449, 0
  %v465 = vsel %vm197, %v451, 0
  %v468 = vsel %vm197, %v453, 0
  %470 = vmatprep.subr.bf16.mxu0 %v172
  %471 = vmatpush1.bf16.msra.mxu0 %v171
  %472 = vmatprep.subr.bf16.mxu0 %v170
  %473 = vmatpush1.bf16.msra.mxu0 %v169
  %474 = vmatprep.subr.bf16.mxu0 %v168
  %475 = vmatpush1.bf16.msra.mxu0 %v167
  %476 = vmatprep.subr.bf16.mxu0 %v166
  %477 = vmatpush1.bf16.msra.mxu0 %v165
  %478 = vmatprep.subr.bf16.mxu0 %v164
  %479 = vmatpush1.bf16.msra.mxu0 %v163
  %480 = vmatprep.subr.bf16.mxu0 %v162
  %481 = vmatpush1.bf16.msra.mxu0 %v161
  %482 = vmatprep.subr.bf16.mxu0 %v160
  %483 = vmatpush1.bf16.msra.mxu0 %v159
  %484 = vmatprep.subr.bf16.mxu0 %v158
  %485 = vmatpush1.bf16.msra.mxu0 %v157
  %486 = vmatprep.subr.bf16.mxu0 0
  %487 = vmatpush2.bf16.msra.mxu0 0
  %488 = vmatprep.subr.bf16.mxu0 0
  %489 = vmatpush2.bf16.msra.mxu0 0
  %490 = vmatprep.subr.bf16.mxu0 0
  %491 = vmatpush2.bf16.msra.mxu0 0
  %492 = vmatprep.subr.bf16.mxu0 0
  %493 = vmatpush2.bf16.msra.mxu0 0
  %494 = vmatprep.subr.bf16.mxu0 0
  %495 = vmatpush2.bf16.msra.mxu0 0
  %496 = vmatprep.subr.bf16.mxu0 0
  %497 = vmatpush2.bf16.msra.mxu0 0
  %498 = vmatprep.subr.bf16.mxu0 %v176
  %499 = vmatpush2.bf16.msra.mxu0 %v175
  %500 = vmatprep.subr.bf16.mxu0 %v174
  %501 = vmatpush2.bf16.msra.mxu0 %v173
  %502 = vmatprep.mubr.bf16.mxu0 %v459
  %503 = vmatmul.mubr.bf16.gmra.mxu0 %v446
  %v504 = vpop.f32.mrf.mxu0
  %v505 = vadd.f32 0.0, %v504
  %v506 = vpop.f32.mrf.mxu0
  %v507 = vadd.f32 0.0, %v506
  %v508 = vpop.f32.mrf.mxu0
  %v509 = vadd.f32 0.0, %v508
  %v510 = vpop.f32.mrf.mxu0
  %v511 = vadd.f32 0.0, %v510
  %512 = vmatprep.mubr.bf16.mxu0 %v462
  %513 = vmatmul.mubr.bf16.gmra.mxu0 %v448
  %v514 = vpop.f32.mrf.mxu0
  %v515 = vadd.f32 0.0, %v514
  %v516 = vpop.f32.mrf.mxu0
  %v517 = vadd.f32 0.0, %v516
  %v518 = vpop.f32.mrf.mxu0
  %v519 = vadd.f32 0.0, %v518
  %v520 = vpop.f32.mrf.mxu0
  %v521 = vadd.f32 0.0, %v520
  %522 = vmatprep.mubr.bf16.mxu0 %v465
  %523 = vmatmul.mubr.bf16.gmra.mxu0 %v450
  %v524 = vpop.f32.mrf.mxu0
  %v525 = vadd.f32 0.0, %v524
  %v526 = vpop.f32.mrf.mxu0
  %v527 = vadd.f32 0.0, %v526
  %v528 = vpop.f32.mrf.mxu0
  %v529 = vadd.f32 0.0, %v528
  %v530 = vpop.f32.mrf.mxu0
  %v531 = vadd.f32 0.0, %v530
  %532 = vmatprep.mubr.bf16.mxu0 %v468
  %533 = vmatmul.mubr.bf16.gmra.mxu0 %v452
  %v534 = vpop.f32.mrf.mxu0
  %v535 = vadd.f32 0.0, %v534
  %v536 = vpop.f32.mrf.mxu0
  %v537 = vadd.f32 0.0, %v536
  %v538 = vpop.f32.mrf.mxu0
  %v539 = vadd.f32 0.0, %v538
  %v540 = vpop.f32.mrf.mxu0
  %v541 = vadd.f32 0.0, %v540
  %542 = vdwg.mxu0
  %s543 = scalar_lea.vmem %s0, 192
  %v544 = vld [vmem:[%s543] sm:$0xff]
  %v545 = vld [vmem:[%s543 + $0x8] sm:$0xff]
  %v546 = vld [vmem:[%s543 + $0x10] sm:$0xff]
  %v547 = vld [vmem:[%s543 + $0x18] sm:$0xff]
  %v548 = vld [vmem:[%s543 + $0x20] sm:$0xff]
  %v549 = vld [vmem:[%s543 + $0x28] sm:$0xff]
  %v550 = vld [vmem:[%s543 + $0x30] sm:$0xff]
  %v551 = vld [vmem:[%s543 + $0x38] sm:$0xff]
  %v560 = vunpack.c.l.b16 %v544
  %v561 = vunpack.c.h.b16 %v544
  %v562 = vunpack.c.l.b16 %v545
  %v563 = vunpack.c.h.b16 %v545
  %v564 = vunpack.c.l.b16 %v546
  %v565 = vunpack.c.h.b16 %v546
  %v566 = vunpack.c.l.b16 %v547
  %v567 = vunpack.c.h.b16 %v547
  %v568 = vunpack.c.l.b16 %v548
  %v569 = vunpack.c.h.b16 %v548
  %v570 = vunpack.c.l.b16 %v549
  %v571 = vunpack.c.h.b16 %v549
  %v572 = vunpack.c.l.b16 %v550
  %v573 = vunpack.c.h.b16 %v550
  %v574 = vunpack.c.l.b16 %v551
  %v575 = vunpack.c.h.b16 %v551
  %v576 = vpack.c.b16 %v562, %v560
  %v577 = vpack.c.b16 %v563, %v561
  %v578 = vpack.c.b16 %v566, %v564
  %v579 = vpack.c.b16 %v567, %v565
  %v580 = vpack.c.b16 %v570, %v568
  %v581 = vpack.c.b16 %v571, %v569
  %v582 = vpack.c.b16 %v574, %v572
  %v583 = vpack.c.b16 %v575, %v573
  %v589 = vsel %vm197, %v577, 0
  %v592 = vsel %vm197, %v579, 0
  %v595 = vsel %vm197, %v581, 0
  %v598 = vsel %vm197, %v583, 0
  %600 = vmatprep.subr.bf16.mxu0 %v172
  %601 = vmatpush1.bf16.msra.mxu0 %v171
  %602 = vmatprep.subr.bf16.mxu0 %v170
  %603 = vmatpush1.bf16.msra.mxu0 %v169
  %604 = vmatprep.subr.bf16.mxu0 %v168
  %605 = vmatpush1.bf16.msra.mxu0 %v167
  %606 = vmatprep.subr.bf16.mxu0 %v166
  %607 = vmatpush1.bf16.msra.mxu0 %v165
  %608 = vmatprep.subr.bf16.mxu0 %v164
  %609 = vmatpush1.bf16.msra.mxu0 %v163
  %610 = vmatprep.subr.bf16.mxu0 %v162
  %611 = vmatpush1.bf16.msra.mxu0 %v161
  %612 = vmatprep.subr.bf16.mxu0 %v160
  %613 = vmatpush1.bf16.msra.mxu0 %v159
  %614 = vmatprep.subr.bf16.mxu0 %v158
  %615 = vmatpush1.bf16.msra.mxu0 %v157
  %616 = vmatprep.subr.bf16.mxu0 0
  %617 = vmatpush2.bf16.msra.mxu0 0
  %618 = vmatprep.subr.bf16.mxu0 0
  %619 = vmatpush2.bf16.msra.mxu0 0
  %620 = vmatprep.subr.bf16.mxu0 0
  %621 = vmatpush2.bf16.msra.mxu0 0
  %622 = vmatprep.subr.bf16.mxu0 0
  %623 = vmatpush2.bf16.msra.mxu0 0
  %624 = vmatprep.subr.bf16.mxu0 0
  %625 = vmatpush2.bf16.msra.mxu0 0
  %626 = vmatprep.subr.bf16.mxu0 0
  %627 = vmatpush2.bf16.msra.mxu0 0
  %628 = vmatprep.subr.bf16.mxu0 %v176
  %629 = vmatpush2.bf16.msra.mxu0 %v175
  %630 = vmatprep.subr.bf16.mxu0 %v174
  %631 = vmatpush2.bf16.msra.mxu0 %v173
  %632 = vmatprep.mubr.bf16.mxu0 %v589
  %633 = vmatmul.mubr.bf16.gmra.mxu0 %v576
  %v634 = vpop.f32.mrf.mxu0
  %v635 = vadd.f32 0.0, %v634
  %v636 = vpop.f32.mrf.mxu0
  %v637 = vadd.f32 0.0, %v636
  %v638 = vpop.f32.mrf.mxu0
  %v639 = vadd.f32 0.0, %v638
  %v640 = vpop.f32.mrf.mxu0
  %v641 = vadd.f32 0.0, %v640
  %642 = vmatprep.mubr.bf16.mxu0 %v592
  %643 = vmatmul.mubr.bf16.gmra.mxu0 %v578
  %v644 = vpop.f32.mrf.mxu0
  %v645 = vadd.f32 0.0, %v644
  %v646 = vpop.f32.mrf.mxu0
  %v647 = vadd.f32 0.0, %v646
  %v648 = vpop.f32.mrf.mxu0
  %v649 = vadd.f32 0.0, %v648
  %v650 = vpop.f32.mrf.mxu0
  %v651 = vadd.f32 0.0, %v650
  %652 = vmatprep.mubr.bf16.mxu0 %v595
  %653 = vmatmul.mubr.bf16.gmra.mxu0 %v580
  %v654 = vpop.f32.mrf.mxu0
  %v655 = vadd.f32 0.0, %v654
  %v656 = vpop.f32.mrf.mxu0
  %v657 = vadd.f32 0.0, %v656
  %v658 = vpop.f32.mrf.mxu0
  %v659 = vadd.f32 0.0, %v658
  %v660 = vpop.f32.mrf.mxu0
  %v661 = vadd.f32 0.0, %v660
  %662 = vmatprep.mubr.bf16.mxu0 %v598
  %663 = vmatmul.mubr.bf16.gmra.mxu0 %v582
  %v664 = vpop.f32.mrf.mxu0
  %v665 = vadd.f32 0.0, %v664
  %v666 = vpop.f32.mrf.mxu0
  %v667 = vadd.f32 0.0, %v666
  %v668 = vpop.f32.mrf.mxu0
  %v669 = vadd.f32 0.0, %v668
  %v670 = vpop.f32.mrf.mxu0
  %v671 = vadd.f32 0.0, %v670
  %672 = vdwg.mxu0
  %v673 = vld [vmem:[%s2] sm:$0x3]
  %v674 = vmax.f32 %v245, %v375
  %v675 = vmax.f32 %v247, %v377
  %v676 = vmax.f32 %v249, %v379
  %v677 = vmax.f32 %v251, %v381
  %v678 = vmax.f32 %v255, %v385
  %v679 = vmax.f32 %v257, %v387
  %v680 = vmax.f32 %v259, %v389
  %v681 = vmax.f32 %v261, %v391
  %v682 = vmax.f32 %v265, %v395
  %v683 = vmax.f32 %v267, %v397
  %v684 = vmax.f32 %v269, %v399
  %v685 = vmax.f32 %v271, %v401
  %v686 = vmax.f32 %v275, %v405
  %v687 = vmax.f32 %v277, %v407
  %v688 = vmax.f32 %v279, %v409
  %v689 = vmax.f32 %v281, %v411
  %v691 = vlaneseq
  %v692 = vshrl.u32 %v691, 7
  %v693 = vsub.s32 0, %v692
  %v694 = vrot.slane %v673, %v693
  %v695 = vlaneseq
  %v696 = vshrl.u32 %v695, 7
  %v697 = vsub.s32 1, %v696
  %v698 = vrot.slane %v673, %v697
  %v701 = vadd.f32 %v674, %v694
  %v702 = vadd.f32 %v675, %v698
  %v703 = vadd.f32 %v676, %v694
  %v704 = vadd.f32 %v677, %v698
  %v705 = vadd.f32 %v678, %v694
  %v706 = vadd.f32 %v679, %v698
  %v707 = vadd.f32 %v680, %v694
  %v708 = vadd.f32 %v681, %v698
  %v709 = vadd.f32 %v682, %v694
  %v710 = vadd.f32 %v683, %v698
  %v711 = vadd.f32 %v684, %v694
  %v712 = vadd.f32 %v685, %v698
  %v713 = vadd.f32 %v686, %v694
  %v714 = vadd.f32 %v687, %v698
  %v715 = vadd.f32 %v688, %v694
  %v716 = vadd.f32 %v689, %v698
  %v717 = vmax.f32 %v701, 0.0
  %v718 = vmax.f32 %v702, 0.0
  %v719 = vmax.f32 %v703, 0.0
  %v720 = vmax.f32 %v704, 0.0
  %v721 = vmax.f32 %v705, 0.0
  %v722 = vmax.f32 %v706, 0.0
  %v723 = vmax.f32 %v707, 0.0
  %v724 = vmax.f32 %v708, 0.0
  %v725 = vmax.f32 %v709, 0.0
  %v726 = vmax.f32 %v710, 0.0
  %v727 = vmax.f32 %v711, 0.0
  %v728 = vmax.f32 %v712, 0.0
  %v729 = vmax.f32 %v713, 0.0
  %v730 = vmax.f32 %v714, 0.0
  %v731 = vmax.f32 %v715, 0.0
  %v732 = vmax.f32 %v716, 0.0
  %v733 = vmax.f32 %v505, %v635
  %v734 = vmax.f32 %v507, %v637
  %v735 = vmax.f32 %v509, %v639
  %v736 = vmax.f32 %v511, %v641
  %v737 = vmax.f32 %v515, %v645
  %v738 = vmax.f32 %v517, %v647
  %v739 = vmax.f32 %v519, %v649
  %v740 = vmax.f32 %v521, %v651
  %v741 = vmax.f32 %v525, %v655
  %v742 = vmax.f32 %v527, %v657
  %v743 = vmax.f32 %v529, %v659
  %v744 = vmax.f32 %v531, %v661
  %v745 = vmax.f32 %v535, %v665
  %v746 = vmax.f32 %v537, %v667
  %v747 = vmax.f32 %v539, %v669
  %v748 = vmax.f32 %v541, %v671
  %v749 = vadd.f32 %v733, %v694
  %v750 = vadd.f32 %v734, %v698
  %v751 = vadd.f32 %v735, %v694
  %v752 = vadd.f32 %v736, %v698
  %v753 = vadd.f32 %v737, %v694
  %v754 = vadd.f32 %v738, %v698
  %v755 = vadd.f32 %v739, %v694
  %v756 = vadd.f32 %v740, %v698
  %v757 = vadd.f32 %v741, %v694
  %v758 = vadd.f32 %v742, %v698
  %v759 = vadd.f32 %v743, %v694
  %v760 = vadd.f32 %v744, %v698
  %v761 = vadd.f32 %v745, %v694
  %v762 = vadd.f32 %v746, %v698
  %v763 = vadd.f32 %v747, %v694
  %v764 = vadd.f32 %v748, %v698
  %v765 = vmax.f32 %v749, 0.0
  %v766 = vmax.f32 %v750, 0.0
  %v767 = vmax.f32 %v751, 0.0
  %v768 = vmax.f32 %v752, 0.0
  %v769 = vmax.f32 %v753, 0.0
  %v770 = vmax.f32 %v754, 0.0
  %v771 = vmax.f32 %v755, 0.0
  %v772 = vmax.f32 %v756, 0.0
  %v773 = vmax.f32 %v757, 0.0
  %v774 = vmax.f32 %v758, 0.0
  %v775 = vmax.f32 %v759, 0.0
  %v776 = vmax.f32 %v760, 0.0
  %v777 = vmax.f32 %v761, 0.0
  %v778 = vmax.f32 %v762, 0.0
  %v779 = vmax.f32 %v763, 0.0
  %v780 = vmax.f32 %v764, 0.0
  %v781 = vpack.c.bf16 %v719, %v717
  %v782 = vpack.c.bf16 %v720, %v718
  %v783 = vpack.c.bf16 %v723, %v721
  %v784 = vpack.c.bf16 %v724, %v722
  %v785 = vpack.c.bf16 %v727, %v725
  %v786 = vpack.c.bf16 %v728, %v726
  %v787 = vpack.c.bf16 %v731, %v729
  %v788 = vpack.c.bf16 %v732, %v730
  %v789 = vld [vmem:[%s3] sm:$0xff]
  %v790 = vld [vmem:[%s3 + $0x8] sm:$0xff]
  %v791 = vld [vmem:[%s3 + $0x10] sm:$0xff]
  %v792 = vld [vmem:[%s3 + $0x18] sm:$0xff]
  %v793 = vld [vmem:[%s3 + $0x20] sm:$0xff]
  %v794 = vld [vmem:[%s3 + $0x28] sm:$0xff]
  %v795 = vld [vmem:[%s3 + $0x30] sm:$0xff]
  %v796 = vld [vmem:[%s3 + $0x38] sm:$0xff]
  %v797 = vld [vmem:[%s3 + $0x40] sm:$0xff]
  %v798 = vld [vmem:[%s3 + $0x48] sm:$0xff]
  %v799 = vld [vmem:[%s3 + $0x50] sm:$0xff]
  %v800 = vld [vmem:[%s3 + $0x58] sm:$0xff]
  %v801 = vld [vmem:[%s3 + $0x60] sm:$0xff]
  %v802 = vld [vmem:[%s3 + $0x68] sm:$0xff]
  %v803 = vld [vmem:[%s3 + $0x70] sm:$0xff]
  %v804 = vld [vmem:[%s3 + $0x78] sm:$0xff]
  %v805 = vld [vmem:[%s3 + $0x80] sm:$0xff]
  %v806 = vld [vmem:[%s3 + $0x88] sm:$0xff]
  %v807 = vld [vmem:[%s3 + $0x90] sm:$0xff]
  %v808 = vld [vmem:[%s3 + $0x98] sm:$0xff]
  %v809 = vld [vmem:[%s3 + $0xa0] sm:$0xff]
  %v810 = vld [vmem:[%s3 + $0xa8] sm:$0xff]
  %v811 = vld [vmem:[%s3 + $0xb0] sm:$0xff]
  %v812 = vld [vmem:[%s3 + $0xb8] sm:$0xff]
  %v813 = vld [vmem:[%s3 + $0xc0] sm:$0xff]
  %v814 = vld [vmem:[%s3 + $0xc8] sm:$0xff]
  %v815 = vld [vmem:[%s3 + $0xd0] sm:$0xff]
  %v816 = vld [vmem:[%s3 + $0xd8] sm:$0xff]
  %v845 = vunpack.c.l.b16 %v789
  %v846 = vunpack.c.h.b16 %v789
  %v847 = vunpack.c.l.b16 %v790
  %v848 = vunpack.c.h.b16 %v790
  %v849 = vunpack.c.l.b16 %v791
  %v850 = vunpack.c.h.b16 %v791
  %v851 = vunpack.c.l.b16 %v792
  %v852 = vunpack.c.h.b16 %v792
  %v853 = vunpack.c.l.b16 %v793
  %v854 = vunpack.c.h.b16 %v793
  %v855 = vunpack.c.l.b16 %v794
  %v856 = vunpack.c.h.b16 %v794
  %v857 = vunpack.c.l.b16 %v795
  %v858 = vunpack.c.h.b16 %v795
  %v859 = vunpack.c.l.b16 %v796
  %v860 = vunpack.c.h.b16 %v796
  %v861 = vunpack.c.l.b16 %v797
  %v862 = vunpack.c.h.b16 %v797
  %v863 = vunpack.c.l.b16 %v798
  %v864 = vunpack.c.h.b16 %v798
  %v865 = vunpack.c.l.b16 %v799
  %v866 = vunpack.c.h.b16 %v799
  %v867 = vunpack.c.l.b16 %v800
  %v868 = vunpack.c.h.b16 %v800
  %v869 = vunpack.c.l.b16 %v801
  %v870 = vunpack.c.h.b16 %v801
  %v871 = vunpack.c.l.b16 %v802
  %v872 = vunpack.c.h.b16 %v802
  %v873 = vunpack.c.l.b16 %v803
  %v874 = vunpack.c.h.b16 %v803
  %v875 = vunpack.c.l.b16 %v804
  %v876 = vunpack.c.h.b16 %v804
  %v877 = vunpack.c.l.b16 %v805
  %v878 = vunpack.c.h.b16 %v805
  %v879 = vunpack.c.l.b16 %v806
  %v880 = vunpack.c.h.b16 %v806
  %v881 = vunpack.c.l.b16 %v807
  %v882 = vunpack.c.h.b16 %v807
  %v883 = vunpack.c.l.b16 %v808
  %v884 = vunpack.c.h.b16 %v808
  %v885 = vunpack.c.l.b16 %v809
  %v886 = vunpack.c.h.b16 %v809
  %v887 = vunpack.c.l.b16 %v810
  %v888 = vunpack.c.h.b16 %v810
  %v889 = vunpack.c.l.b16 %v811
  %v890 = vunpack.c.h.b16 %v811
  %v891 = vunpack.c.l.b16 %v812
  %v892 = vunpack.c.h.b16 %v812
  %v893 = vunpack.c.l.b16 %v813
  %v894 = vunpack.c.h.b16 %v813
  %v895 = vunpack.c.l.b16 %v814
  %v896 = vunpack.c.h.b16 %v814
  %v897 = vunpack.c.l.b16 %v815
  %v898 = vunpack.c.h.b16 %v815
  %v899 = vunpack.c.l.b16 %v816
  %v900 = vunpack.c.h.b16 %v816
  %v901 = vpack.c.b16 %v847, %v845
  %v902 = vpack.c.b16 %v848, %v846
  %v903 = vpack.c.b16 %v851, %v849
  %v904 = vpack.c.b16 %v852, %v850
  %v905 = vpack.c.b16 %v855, %v853
  %v906 = vpack.c.b16 %v856, %v854
  %v907 = vpack.c.b16 %v859, %v857
  %v908 = vpack.c.b16 %v860, %v858
  %v909 = vpack.c.b16 %v863, %v861
  %v910 = vpack.c.b16 %v864, %v862
  %v911 = vpack.c.b16 %v867, %v865
  %v912 = vpack.c.b16 %v868, %v866
  %v913 = vpack.c.b16 %v871, %v869
  %v914 = vpack.c.b16 %v872, %v870
  %v915 = vpack.c.b16 %v875, %v873
  %v916 = vpack.c.b16 %v876, %v874
  %v917 = vpack.c.b16 %v879, %v877
  %v918 = vpack.c.b16 %v880, %v878
  %v919 = vpack.c.b16 %v883, %v881
  %v920 = vpack.c.b16 %v884, %v882
  %v921 = vpack.c.b16 %v887, %v885
  %v922 = vpack.c.b16 %v888, %v886
  %v923 = vpack.c.b16 %v891, %v889
  %v924 = vpack.c.b16 %v892, %v890
  %v925 = vpack.c.b16 %v895, %v893
  %v926 = vpack.c.b16 %v896, %v894
  %v927 = vpack.c.b16 %v899, %v897
  %v928 = vpack.c.b16 %v900, %v898
  %vm957 = vcmask 785408
  %v959 = vsel %vm957, %v782, 0
  %v962 = vsel %vm957, %v784, 0
  %v965 = vsel %vm957, %v786, 0
  %v968 = vsel %vm957, %v788, 0
  %970 = vmatprep.subr.bf16.mxu0 %v916
  %971 = vmatpush1.bf16.msra.mxu0 %v915
  %972 = vmatprep.subr.bf16.mxu0 %v914
  %973 = vmatpush1.bf16.msra.mxu0 %v913
  %974 = vmatprep.subr.bf16.mxu0 %v912
  %975 = vmatpush1.bf16.msra.mxu0 %v911
  %976 = vmatprep.subr.bf16.mxu0 %v910
  %977 = vmatpush1.bf16.msra.mxu0 %v909
  %978 = vmatprep.subr.bf16.mxu0 %v908
  %979 = vmatpush1.bf16.msra.mxu0 %v907
  %980 = vmatprep.subr.bf16.mxu0 %v906
  %981 = vmatpush1.bf16.msra.mxu0 %v905
  %982 = vmatprep.subr.bf16.mxu0 %v904
  %983 = vmatpush1.bf16.msra.mxu0 %v903
  %984 = vmatprep.subr.bf16.mxu0 %v902
  %985 = vmatpush1.bf16.msra.mxu0 %v901
  %986 = vmatprep.subr.bf16.mxu0 0
  %987 = vmatpush2.bf16.msra.mxu0 0
  %988 = vmatprep.subr.bf16.mxu0 0
  %989 = vmatpush2.bf16.msra.mxu0 0
  %990 = vmatprep.subr.bf16.mxu0 %v928
  %991 = vmatpush2.bf16.msra.mxu0 %v927
  %992 = vmatprep.subr.bf16.mxu0 %v926
  %993 = vmatpush2.bf16.msra.mxu0 %v925
  %994 = vmatprep.subr.bf16.mxu0 %v924
  %995 = vmatpush2.bf16.msra.mxu0 %v923
  %996 = vmatprep.subr.bf16.mxu0 %v922
  %997 = vmatpush2.bf16.msra.mxu0 %v921
  %998 = vmatprep.subr.bf16.mxu0 %v920
  %999 = vmatpush2.bf16.msra.mxu0 %v919
  %1000 = vmatprep.subr.bf16.mxu0 %v918
  %1001 = vmatpush2.bf16.msra.mxu0 %v917
  %1002 = vmatprep.mubr.bf16.mxu0 %v959
  %1003 = vmatmul.mubr.bf16.gmra.mxu0 %v781
  %v1004 = vpop.f32.mrf.mxu0
  %v1005 = vadd.f32 0.0, %v1004
  %v1006 = vpop.f32.mrf.mxu0
  %v1007 = vadd.f32 0.0, %v1006
  %v1008 = vpop.f32.mrf.mxu0
  %v1009 = vadd.f32 0.0, %v1008
  %v1010 = vpop.f32.mrf.mxu0
  %v1011 = vadd.f32 0.0, %v1010
  %1012 = vmatprep.mubr.bf16.mxu0 %v962
  %1013 = vmatmul.mubr.bf16.gmra.mxu0 %v783
  %v1014 = vpop.f32.mrf.mxu0
  %v1015 = vadd.f32 0.0, %v1014
  %v1016 = vpop.f32.mrf.mxu0
  %v1017 = vadd.f32 0.0, %v1016
  %v1018 = vpop.f32.mrf.mxu0
  %v1019 = vadd.f32 0.0, %v1018
  %v1020 = vpop.f32.mrf.mxu0
  %v1021 = vadd.f32 0.0, %v1020
  %1022 = vmatprep.mubr.bf16.mxu0 %v965
  %1023 = vmatmul.mubr.bf16.gmra.mxu0 %v785
  %v1024 = vpop.f32.mrf.mxu0
  %v1025 = vadd.f32 0.0, %v1024
  %v1026 = vpop.f32.mrf.mxu0
  %v1027 = vadd.f32 0.0, %v1026
  %v1028 = vpop.f32.mrf.mxu0
  %v1029 = vadd.f32 0.0, %v1028
  %v1030 = vpop.f32.mrf.mxu0
  %v1031 = vadd.f32 0.0, %v1030
  %1032 = vmatprep.mubr.bf16.mxu0 %v968
  %1033 = vmatmul.mubr.bf16.gmra.mxu0 %v787
  %v1034 = vpop.f32.mrf.mxu0
  %v1035 = vadd.f32 0.0, %v1034
  %v1036 = vpop.f32.mrf.mxu0
  %v1037 = vadd.f32 0.0, %v1036
  %v1038 = vpop.f32.mrf.mxu0
  %v1039 = vadd.f32 0.0, %v1038
  %v1040 = vpop.f32.mrf.mxu0
  %v1041 = vadd.f32 0.0, %v1040
  %1042 = vdwg.mxu0
  %s1043 = scalar_lea.vmem %s3, 224
  %v1044 = vld [vmem:[%s1043] sm:$0xff]
  %v1045 = vld [vmem:[%s1043 + $0x8] sm:$0xff]
  %v1046 = vld [vmem:[%s1043 + $0x10] sm:$0xff]
  %v1047 = vld [vmem:[%s1043 + $0x18] sm:$0xff]
  %v1048 = vld [vmem:[%s1043 + $0x20] sm:$0xff]
  %v1049 = vld [vmem:[%s1043 + $0x28] sm:$0xff]
  %v1050 = vld [vmem:[%s1043 + $0x30] sm:$0xff]
  %v1051 = vld [vmem:[%s1043 + $0x38] sm:$0xff]
  %v1052 = vld [vmem:[%s1043 + $0x40] sm:$0xff]
  %v1053 = vld [vmem:[%s1043 + $0x48] sm:$0xff]
  %v1054 = vld [vmem:[%s1043 + $0x50] sm:$0xff]
  %v1055 = vld [vmem:[%s1043 + $0x58] sm:$0xff]
  %v1056 = vld [vmem:[%s1043 + $0x60] sm:$0xff]
  %v1057 = vld [vmem:[%s1043 + $0x68] sm:$0xff]
  %v1058 = vld [vmem:[%s1043 + $0x70] sm:$0xff]
  %v1059 = vld [vmem:[%s1043 + $0x78] sm:$0xff]
  %v1060 = vld [vmem:[%s1043 + $0x80] sm:$0xff]
  %v1061 = vld [vmem:[%s1043 + $0x88] sm:$0xff]
  %v1062 = vld [vmem:[%s1043 + $0x90] sm:$0xff]
  %v1063 = vld [vmem:[%s1043 + $0x98] sm:$0xff]
  %v1064 = vld [vmem:[%s1043 + $0xa0] sm:$0xff]
  %v1065 = vld [vmem:[%s1043 + $0xa8] sm:$0xff]
  %v1066 = vld [vmem:[%s1043 + $0xb0] sm:$0xff]
  %v1067 = vld [vmem:[%s1043 + $0xb8] sm:$0xff]
  %v1068 = vld [vmem:[%s1043 + $0xc0] sm:$0xff]
  %v1069 = vld [vmem:[%s1043 + $0xc8] sm:$0xff]
  %v1070 = vld [vmem:[%s1043 + $0xd0] sm:$0xff]
  %v1071 = vld [vmem:[%s1043 + $0xd8] sm:$0xff]
  %v1100 = vunpack.c.l.b16 %v1044
  %v1101 = vunpack.c.h.b16 %v1044
  %v1102 = vunpack.c.l.b16 %v1045
  %v1103 = vunpack.c.h.b16 %v1045
  %v1104 = vunpack.c.l.b16 %v1046
  %v1105 = vunpack.c.h.b16 %v1046
  %v1106 = vunpack.c.l.b16 %v1047
  %v1107 = vunpack.c.h.b16 %v1047
  %v1108 = vunpack.c.l.b16 %v1048
  %v1109 = vunpack.c.h.b16 %v1048
  %v1110 = vunpack.c.l.b16 %v1049
  %v1111 = vunpack.c.h.b16 %v1049
  %v1112 = vunpack.c.l.b16 %v1050
  %v1113 = vunpack.c.h.b16 %v1050
  %v1114 = vunpack.c.l.b16 %v1051
  %v1115 = vunpack.c.h.b16 %v1051
  %v1116 = vunpack.c.l.b16 %v1052
  %v1117 = vunpack.c.h.b16 %v1052
  %v1118 = vunpack.c.l.b16 %v1053
  %v1119 = vunpack.c.h.b16 %v1053
  %v1120 = vunpack.c.l.b16 %v1054
  %v1121 = vunpack.c.h.b16 %v1054
  %v1122 = vunpack.c.l.b16 %v1055
  %v1123 = vunpack.c.h.b16 %v1055
  %v1124 = vunpack.c.l.b16 %v1056
  %v1125 = vunpack.c.h.b16 %v1056
  %v1126 = vunpack.c.l.b16 %v1057
  %v1127 = vunpack.c.h.b16 %v1057
  %v1128 = vunpack.c.l.b16 %v1058
  %v1129 = vunpack.c.h.b16 %v1058
  %v1130 = vunpack.c.l.b16 %v1059
  %v1131 = vunpack.c.h.b16 %v1059
  %v1132 = vunpack.c.l.b16 %v1060
  %v1133 = vunpack.c.h.b16 %v1060
  %v1134 = vunpack.c.l.b16 %v1061
  %v1135 = vunpack.c.h.b16 %v1061
  %v1136 = vunpack.c.l.b16 %v1062
  %v1137 = vunpack.c.h.b16 %v1062
  %v1138 = vunpack.c.l.b16 %v1063
  %v1139 = vunpack.c.h.b16 %v1063
  %v1140 = vunpack.c.l.b16 %v1064
  %v1141 = vunpack.c.h.b16 %v1064
  %v1142 = vunpack.c.l.b16 %v1065
  %v1143 = vunpack.c.h.b16 %v1065
  %v1144 = vunpack.c.l.b16 %v1066
  %v1145 = vunpack.c.h.b16 %v1066
  %v1146 = vunpack.c.l.b16 %v1067
  %v1147 = vunpack.c.h.b16 %v1067
  %v1148 = vunpack.c.l.b16 %v1068
  %v1149 = vunpack.c.h.b16 %v1068
  %v1150 = vunpack.c.l.b16 %v1069
  %v1151 = vunpack.c.h.b16 %v1069
  %v1152 = vunpack.c.l.b16 %v1070
  %v1153 = vunpack.c.h.b16 %v1070
  %v1154 = vunpack.c.l.b16 %v1071
  %v1155 = vunpack.c.h.b16 %v1071
  %v1156 = vpack.c.b16 %v1102, %v1100
  %v1157 = vpack.c.b16 %v1103, %v1101
  %v1158 = vpack.c.b16 %v1106, %v1104
  %v1159 = vpack.c.b16 %v1107, %v1105
  %v1160 = vpack.c.b16 %v1110, %v1108
  %v1161 = vpack.c.b16 %v1111, %v1109
  %v1162 = vpack.c.b16 %v1114, %v1112
  %v1163 = vpack.c.b16 %v1115, %v1113
  %v1164 = vpack.c.b16 %v1118, %v1116
  %v1165 = vpack.c.b16 %v1119, %v1117
  %v1166 = vpack.c.b16 %v1122, %v1120
  %v1167 = vpack.c.b16 %v1123, %v1121
  %v1168 = vpack.c.b16 %v1126, %v1124
  %v1169 = vpack.c.b16 %v1127, %v1125
  %v1170 = vpack.c.b16 %v1130, %v1128
  %v1171 = vpack.c.b16 %v1131, %v1129
  %v1172 = vpack.c.b16 %v1134, %v1132
  %v1173 = vpack.c.b16 %v1135, %v1133
  %v1174 = vpack.c.b16 %v1138, %v1136
  %v1175 = vpack.c.b16 %v1139, %v1137
  %v1176 = vpack.c.b16 %v1142, %v1140
  %v1177 = vpack.c.b16 %v1143, %v1141
  %v1178 = vpack.c.b16 %v1146, %v1144
  %v1179 = vpack.c.b16 %v1147, %v1145
  %v1180 = vpack.c.b16 %v1150, %v1148
  %v1181 = vpack.c.b16 %v1151, %v1149
  %v1182 = vpack.c.b16 %v1154, %v1152
  %v1183 = vpack.c.b16 %v1155, %v1153
  %1212 = vmatprep.subr.bf16.mxu0 %v1171
  %1213 = vmatpush1.bf16.msra.mxu0 %v1170
  %1214 = vmatprep.subr.bf16.mxu0 %v1169
  %1215 = vmatpush1.bf16.msra.mxu0 %v1168
  %1216 = vmatprep.subr.bf16.mxu0 %v1167
  %1217 = vmatpush1.bf16.msra.mxu0 %v1166
  %1218 = vmatprep.subr.bf16.mxu0 %v1165
  %1219 = vmatpush1.bf16.msra.mxu0 %v1164
  %1220 = vmatprep.subr.bf16.mxu0 %v1163
  %1221 = vmatpush1.bf16.msra.mxu0 %v1162
  %1222 = vmatprep.subr.bf16.mxu0 %v1161
  %1223 = vmatpush1.bf16.msra.mxu0 %v1160
  %1224 = vmatprep.subr.bf16.mxu0 %v1159
  %1225 = vmatpush1.bf16.msra.mxu0 %v1158
  %1226 = vmatprep.subr.bf16.mxu0 %v1157
  %1227 = vmatpush1.bf16.msra.mxu0 %v1156
  %1228 = vmatprep.subr.bf16.mxu0 0
  %1229 = vmatpush2.bf16.msra.mxu0 0
  %1230 = vmatprep.subr.bf16.mxu0 0
  %1231 = vmatpush2.bf16.msra.mxu0 0
  %1232 = vmatprep.subr.bf16.mxu0 %v1183
  %1233 = vmatpush2.bf16.msra.mxu0 %v1182
  %1234 = vmatprep.subr.bf16.mxu0 %v1181
  %1235 = vmatpush2.bf16.msra.mxu0 %v1180
  %1236 = vmatprep.subr.bf16.mxu0 %v1179
  %1237 = vmatpush2.bf16.msra.mxu0 %v1178
  %1238 = vmatprep.subr.bf16.mxu0 %v1177
  %1239 = vmatpush2.bf16.msra.mxu0 %v1176
  %1240 = vmatprep.subr.bf16.mxu0 %v1175
  %1241 = vmatpush2.bf16.msra.mxu0 %v1174
  %1242 = vmatprep.subr.bf16.mxu0 %v1173
  %1243 = vmatpush2.bf16.msra.mxu0 %v1172
  %1244 = vmatprep.mubr.bf16.mxu0 %v959
  %1245 = vmatmul.mubr.bf16.gmra.mxu0 %v781
  %v1246 = vpop.f32.mrf.mxu0
  %v1247 = vadd.f32 0.0, %v1246
  %v1248 = vpop.f32.mrf.mxu0
  %v1249 = vadd.f32 0.0, %v1248
  %v1250 = vpop.f32.mrf.mxu0
  %v1251 = vadd.f32 0.0, %v1250
  %v1252 = vpop.f32.mrf.mxu0
  %v1253 = vadd.f32 0.0, %v1252
  %1254 = vmatprep.mubr.bf16.mxu0 %v962
  %1255 = vmatmul.mubr.bf16.gmra.mxu0 %v783
  %v1256 = vpop.f32.mrf.mxu0
  %v1257 = vadd.f32 0.0, %v1256
  %v1258 = vpop.f32.mrf.mxu0
  %v1259 = vadd.f32 0.0, %v1258
  %v1260 = vpop.f32.mrf.mxu0
  %v1261 = vadd.f32 0.0, %v1260
  %v1262 = vpop.f32.mrf.mxu0
  %v1263 = vadd.f32 0.0, %v1262
  %1264 = vmatprep.mubr.bf16.mxu0 %v965
  %1265 = vmatmul.mubr.bf16.gmra.mxu0 %v785
  %v1266 = vpop.f32.mrf.mxu0
  %v1267 = vadd.f32 0.0, %v1266
  %v1268 = vpop.f32.mrf.mxu0
  %v1269 = vadd.f32 0.0, %v1268
  %v1270 = vpop.f32.mrf.mxu0
  %v1271 = vadd.f32 0.0, %v1270
  %v1272 = vpop.f32.mrf.mxu0
  %v1273 = vadd.f32 0.0, %v1272
  %1274 = vmatprep.mubr.bf16.mxu0 %v968
  %1275 = vmatmul.mubr.bf16.gmra.mxu0 %v787
  %v1276 = vpop.f32.mrf.mxu0
  %v1277 = vadd.f32 0.0, %v1276
  %v1278 = vpop.f32.mrf.mxu0
  %v1279 = vadd.f32 0.0, %v1278
  %v1280 = vpop.f32.mrf.mxu0
  %v1281 = vadd.f32 0.0, %v1280
  %v1282 = vpop.f32.mrf.mxu0
  %v1283 = vadd.f32 0.0, %v1282
  %1284 = vdwg.mxu0
  %v1285 = vmax.f32 %v1005, %v1247
  %v1286 = vmax.f32 %v1007, %v1249
  %v1287 = vmax.f32 %v1009, %v1251
  %v1288 = vmax.f32 %v1011, %v1253
  %v1289 = vmax.f32 %v1015, %v1257
  %v1290 = vmax.f32 %v1017, %v1259
  %v1291 = vmax.f32 %v1019, %v1261
  %v1292 = vmax.f32 %v1021, %v1263
  %v1293 = vmax.f32 %v1025, %v1267
  %v1294 = vmax.f32 %v1027, %v1269
  %v1295 = vmax.f32 %v1029, %v1271
  %v1296 = vmax.f32 %v1031, %v1273
  %v1297 = vmax.f32 %v1035, %v1277
  %v1298 = vmax.f32 %v1037, %v1279
  %v1299 = vmax.f32 %v1039, %v1281
  %v1300 = vmax.f32 %v1041, %v1283
  %v1301 = vpack.c.bf16 %v1287, %v1285
  %v1302 = vpack.c.bf16 %v1288, %v1286
  %v1303 = vpack.c.bf16 %v1291, %v1289
  %v1304 = vpack.c.bf16 %v1292, %v1290
  %v1305 = vpack.c.bf16 %v1295, %v1293
  %v1306 = vpack.c.bf16 %v1296, %v1294
  %v1307 = vpack.c.bf16 %v1299, %v1297
  %v1308 = vpack.c.bf16 %v1300, %v1298
  %v1309 = vpack.c.bf16 %v767, %v765
  %v1310 = vpack.c.bf16 %v768, %v766
  %v1311 = vpack.c.bf16 %v771, %v769
  %v1312 = vpack.c.bf16 %v772, %v770
  %v1313 = vpack.c.bf16 %v775, %v773
  %v1314 = vpack.c.bf16 %v776, %v774
  %v1315 = vpack.c.bf16 %v779, %v777
  %v1316 = vpack.c.bf16 %v780, %v778
  %v1318 = vsel %vm957, %v1310, 0
  %v1321 = vsel %vm957, %v1312, 0
  %v1324 = vsel %vm957, %v1314, 0
  %v1327 = vsel %vm957, %v1316, 0
  %1329 = vmatprep.subr.bf16.mxu0 %v916
  %1330 = vmatpush1.bf16.msra.mxu0 %v915
  %1331 = vmatprep.subr.bf16.mxu0 %v914
  %1332 = vmatpush1.bf16.msra.mxu0 %v913
  %1333 = vmatprep.subr.bf16.mxu0 %v912
  %1334 = vmatpush1.bf16.msra.mxu0 %v911
  %1335 = vmatprep.subr.bf16.mxu0 %v910
  %1336 = vmatpush1.bf16.msra.mxu0 %v909
  %1337 = vmatprep.subr.bf16.mxu0 %v908
  %1338 = vmatpush1.bf16.msra.mxu0 %v907
  %1339 = vmatprep.subr.bf16.mxu0 %v906
  %1340 = vmatpush1.bf16.msra.mxu0 %v905
  %1341 = vmatprep.subr.bf16.mxu0 %v904
  %1342 = vmatpush1.bf16.msra.mxu0 %v903
  %1343 = vmatprep.subr.bf16.mxu0 %v902
  %1344 = vmatpush1.bf16.msra.mxu0 %v901
  %1345 = vmatprep.subr.bf16.mxu0 0
  %1346 = vmatpush2.bf16.msra.mxu0 0
  %1347 = vmatprep.subr.bf16.mxu0 0
  %1348 = vmatpush2.bf16.msra.mxu0 0
  %1349 = vmatprep.subr.bf16.mxu0 %v928
  %1350 = vmatpush2.bf16.msra.mxu0 %v927
  %1351 = vmatprep.subr.bf16.mxu0 %v926
  %1352 = vmatpush2.bf16.msra.mxu0 %v925
  %1353 = vmatprep.subr.bf16.mxu0 %v924
  %1354 = vmatpush2.bf16.msra.mxu0 %v923
  %1355 = vmatprep.subr.bf16.mxu0 %v922
  %1356 = vmatpush2.bf16.msra.mxu0 %v921
  %1357 = vmatprep.subr.bf16.mxu0 %v920
  %1358 = vmatpush2.bf16.msra.mxu0 %v919
  %1359 = vmatprep.subr.bf16.mxu0 %v918
  %1360 = vmatpush2.bf16.msra.mxu0 %v917
  %1361 = vmatprep.mubr.bf16.mxu0 %v1318
  %1362 = vmatmul.mubr.bf16.gmra.mxu0 %v1309
  %v1363 = vpop.f32.mrf.mxu0
  %v1364 = vadd.f32 0.0, %v1363
  %v1365 = vpop.f32.mrf.mxu0
  %v1366 = vadd.f32 0.0, %v1365
  %v1367 = vpop.f32.mrf.mxu0
  %v1368 = vadd.f32 0.0, %v1367
  %v1369 = vpop.f32.mrf.mxu0
  %v1370 = vadd.f32 0.0, %v1369
  %1371 = vmatprep.mubr.bf16.mxu0 %v1321
  %1372 = vmatmul.mubr.bf16.gmra.mxu0 %v1311
  %v1373 = vpop.f32.mrf.mxu0
  %v1374 = vadd.f32 0.0, %v1373
  %v1375 = vpop.f32.mrf.mxu0
  %v1376 = vadd.f32 0.0, %v1375
  %v1377 = vpop.f32.mrf.mxu0
  %v1378 = vadd.f32 0.0, %v1377
  %v1379 = vpop.f32.mrf.mxu0
  %v1380 = vadd.f32 0.0, %v1379
  %1381 = vmatprep.mubr.bf16.mxu0 %v1324
  %1382 = vmatmul.mubr.bf16.gmra.mxu0 %v1313
  %v1383 = vpop.f32.mrf.mxu0
  %v1384 = vadd.f32 0.0, %v1383
  %v1385 = vpop.f32.mrf.mxu0
  %v1386 = vadd.f32 0.0, %v1385
  %v1387 = vpop.f32.mrf.mxu0
  %v1388 = vadd.f32 0.0, %v1387
  %v1389 = vpop.f32.mrf.mxu0
  %v1390 = vadd.f32 0.0, %v1389
  %1391 = vmatprep.mubr.bf16.mxu0 %v1327
  %1392 = vmatmul.mubr.bf16.gmra.mxu0 %v1315
  %v1393 = vpop.f32.mrf.mxu0
  %v1394 = vadd.f32 0.0, %v1393
  %v1395 = vpop.f32.mrf.mxu0
  %v1396 = vadd.f32 0.0, %v1395
  %v1397 = vpop.f32.mrf.mxu0
  %v1398 = vadd.f32 0.0, %v1397
  %v1399 = vpop.f32.mrf.mxu0
  %v1400 = vadd.f32 0.0, %v1399
  %1401 = vdwg.mxu0
  %1402 = vmatprep.subr.bf16.mxu0 %v1171
  %1403 = vmatpush1.bf16.msra.mxu0 %v1170
  %1404 = vmatprep.subr.bf16.mxu0 %v1169
  %1405 = vmatpush1.bf16.msra.mxu0 %v1168
  %1406 = vmatprep.subr.bf16.mxu0 %v1167
  %1407 = vmatpush1.bf16.msra.mxu0 %v1166
  %1408 = vmatprep.subr.bf16.mxu0 %v1165
  %1409 = vmatpush1.bf16.msra.mxu0 %v1164
  %1410 = vmatprep.subr.bf16.mxu0 %v1163
  %1411 = vmatpush1.bf16.msra.mxu0 %v1162
  %1412 = vmatprep.subr.bf16.mxu0 %v1161
  %1413 = vmatpush1.bf16.msra.mxu0 %v1160
  %1414 = vmatprep.subr.bf16.mxu0 %v1159
  %1415 = vmatpush1.bf16.msra.mxu0 %v1158
  %1416 = vmatprep.subr.bf16.mxu0 %v1157
  %1417 = vmatpush1.bf16.msra.mxu0 %v1156
  %1418 = vmatprep.subr.bf16.mxu0 0
  %1419 = vmatpush2.bf16.msra.mxu0 0
  %1420 = vmatprep.subr.bf16.mxu0 0
  %1421 = vmatpush2.bf16.msra.mxu0 0
  %1422 = vmatprep.subr.bf16.mxu0 %v1183
  %1423 = vmatpush2.bf16.msra.mxu0 %v1182
  %1424 = vmatprep.subr.bf16.mxu0 %v1181
  %1425 = vmatpush2.bf16.msra.mxu0 %v1180
  %1426 = vmatprep.subr.bf16.mxu0 %v1179
  %1427 = vmatpush2.bf16.msra.mxu0 %v1178
  %1428 = vmatprep.subr.bf16.mxu0 %v1177
  %1429 = vmatpush2.bf16.msra.mxu0 %v1176
  %1430 = vmatprep.subr.bf16.mxu0 %v1175
  %1431 = vmatpush2.bf16.msra.mxu0 %v1174
  %1432 = vmatprep.subr.bf16.mxu0 %v1173
  %1433 = vmatpush2.bf16.msra.mxu0 %v1172
  %1434 = vmatprep.mubr.bf16.mxu0 %v1318
  %1435 = vmatmul.mubr.bf16.gmra.mxu0 %v1309
  %v1436 = vpop.f32.mrf.mxu0
  %v1437 = vadd.f32 0.0, %v1436
  %v1438 = vpop.f32.mrf.mxu0
  %v1439 = vadd.f32 0.0, %v1438
  %v1440 = vpop.f32.mrf.mxu0
  %v1441 = vadd.f32 0.0, %v1440
  %v1442 = vpop.f32.mrf.mxu0
  %v1443 = vadd.f32 0.0, %v1442
  %1444 = vmatprep.mubr.bf16.mxu0 %v1321
  %1445 = vmatmul.mubr.bf16.gmra.mxu0 %v1311
  %v1446 = vpop.f32.mrf.mxu0
  %v1447 = vadd.f32 0.0, %v1446
  %v1448 = vpop.f32.mrf.mxu0
  %v1449 = vadd.f32 0.0, %v1448
  %v1450 = vpop.f32.mrf.mxu0
  %v1451 = vadd.f32 0.0, %v1450
  %v1452 = vpop.f32.mrf.mxu0
  %v1453 = vadd.f32 0.0, %v1452
  %1454 = vmatprep.mubr.bf16.mxu0 %v1324
  %1455 = vmatmul.mubr.bf16.gmra.mxu0 %v1313
  %v1456 = vpop.f32.mrf.mxu0
  %v1457 = vadd.f32 0.0, %v1456
  %v1458 = vpop.f32.mrf.mxu0
  %v1459 = vadd.f32 0.0, %v1458
  %v1460 = vpop.f32.mrf.mxu0
  %v1461 = vadd.f32 0.0, %v1460
  %v1462 = vpop.f32.mrf.mxu0
  %v1463 = vadd.f32 0.0, %v1462
  %1464 = vmatprep.mubr.bf16.mxu0 %v1327
  %1465 = vmatmul.mubr.bf16.gmra.mxu0 %v1315
  %v1466 = vpop.f32.mrf.mxu0
  %v1467 = vadd.f32 0.0, %v1466
  %v1468 = vpop.f32.mrf.mxu0
  %v1469 = vadd.f32 0.0, %v1468
  %v1470 = vpop.f32.mrf.mxu0
  %v1471 = vadd.f32 0.0, %v1470
  %v1472 = vpop.f32.mrf.mxu0
  %v1473 = vadd.f32 0.0, %v1472
  %1474 = vdwg.mxu0
  %v1475 = vmax.f32 %v1364, %v1437
  %v1476 = vmax.f32 %v1366, %v1439
  %v1477 = vmax.f32 %v1368, %v1441
  %v1478 = vmax.f32 %v1370, %v1443
  %v1479 = vmax.f32 %v1374, %v1447
  %v1480 = vmax.f32 %v1376, %v1449
  %v1481 = vmax.f32 %v1378, %v1451
  %v1482 = vmax.f32 %v1380, %v1453
  %v1483 = vmax.f32 %v1384, %v1457
  %v1484 = vmax.f32 %v1386, %v1459
  %v1485 = vmax.f32 %v1388, %v1461
  %v1486 = vmax.f32 %v1390, %v1463
  %v1487 = vmax.f32 %v1394, %v1467
  %v1488 = vmax.f32 %v1396, %v1469
  %v1489 = vmax.f32 %v1398, %v1471
  %v1490 = vmax.f32 %v1400, %v1473
  %v1491 = vpack.c.bf16 %v1477, %v1475
  %v1492 = vpack.c.bf16 %v1478, %v1476
  %v1493 = vpack.c.bf16 %v1481, %v1479
  %v1494 = vpack.c.bf16 %v1482, %v1480
  %v1495 = vpack.c.bf16 %v1485, %v1483
  %v1496 = vpack.c.bf16 %v1486, %v1484
  %v1497 = vpack.c.bf16 %v1489, %v1487
  %v1498 = vpack.c.bf16 %v1490, %v1488
  %vm1499 = vcmask 1043456
  %vm1500 = vcmask 130052
  %vm1501 = vmor %vm1500, %vm1499
  %1502 = vst.msk [vmem:[#allocation2] sm:$0xff] %vm1501, 0
  %1503 = vst.msk [vmem:[#allocation3] sm:$0xff] %vm1501, 0
  %v1512 = vunpack.c.l.b16 %v1301
  %v1513 = vunpack.c.l.b16 %v1302
  %v1514 = vunpack.c.h.b16 %v1301
  %v1515 = vunpack.c.h.b16 %v1302
  %v1516 = vunpack.c.l.b16 %v1303
  %v1517 = vunpack.c.l.b16 %v1304
  %v1518 = vunpack.c.h.b16 %v1303
  %v1519 = vunpack.c.h.b16 %v1304
  %v1520 = vunpack.c.l.b16 %v1305
  %v1521 = vunpack.c.l.b16 %v1306
  %v1522 = vunpack.c.h.b16 %v1305
  %v1523 = vunpack.c.h.b16 %v1306
  %v1524 = vunpack.c.l.b16 %v1307
  %v1525 = vunpack.c.l.b16 %v1308
  %v1526 = vpack.c.b16 %v1513, %v1512
  %v1527 = vpack.c.b16 %v1515, %v1514
  %v1528 = vpack.c.b16 %v1517, %v1516
  %v1529 = vpack.c.b16 %v1519, %v1518
  %v1530 = vpack.c.b16 %v1521, %v1520
  %v1531 = vpack.c.b16 %v1523, %v1522
  %v1532 = vpack.c.b16 %v1525, %v1524
  %1540 = vst.msk [vmem:[#allocation2 + $0x8] sm:$0xff] %vm1501, %v1526
  %1541 = vst.msk [vmem:[#allocation2 + $0x10] sm:$0xff] %vm1501, %v1527
  %1542 = vst.msk [vmem:[#allocation2 + $0x18] sm:$0xff] %vm1501, %v1528
  %1543 = vst.msk [vmem:[#allocation2 + $0x20] sm:$0xff] %vm1501, %v1529
  %1544 = vst.msk [vmem:[#allocation2 + $0x28] sm:$0xff] %vm1501, %v1530
  %1545 = vst.msk [vmem:[#allocation2 + $0x30] sm:$0xff] %vm1501, %v1531
  %1546 = vst.msk [vmem:[#allocation2 + $0x38] sm:$0xff] %vm1501, %v1532
  %v1555 = vunpack.c.l.b16 %v1491
  %v1556 = vunpack.c.l.b16 %v1492
  %v1557 = vunpack.c.h.b16 %v1491
  %v1558 = vunpack.c.h.b16 %v1492
  %v1559 = vunpack.c.l.b16 %v1493
  %v1560 = vunpack.c.l.b16 %v1494
  %v1561 = vunpack.c.h.b16 %v1493
  %v1562 = vunpack.c.h.b16 %v1494
  %v1563 = vunpack.c.l.b16 %v1495
  %v1564 = vunpack.c.l.b16 %v1496
  %v1565 = vunpack.c.h.b16 %v1495
  %v1566 = vunpack.c.h.b16 %v1496
  %v1567 = vunpack.c.l.b16 %v1497
  %v1568 = vunpack.c.l.b16 %v1498
  %v1569 = vpack.c.b16 %v1556, %v1555
  %v1570 = vpack.c.b16 %v1558, %v1557
  %v1571 = vpack.c.b16 %v1560, %v1559
  %v1572 = vpack.c.b16 %v1562, %v1561
  %v1573 = vpack.c.b16 %v1564, %v1563
  %v1574 = vpack.c.b16 %v1566, %v1565
  %v1575 = vpack.c.b16 %v1568, %v1567
  %1583 = vst.msk [vmem:[#allocation3 + $0x8] sm:$0xff] %vm1501, %v1569
  %1584 = vst.msk [vmem:[#allocation3 + $0x10] sm:$0xff] %vm1501, %v1570
  %1585 = vst.msk [vmem:[#allocation3 + $0x18] sm:$0xff] %vm1501, %v1571
  %1586 = vst.msk [vmem:[#allocation3 + $0x20] sm:$0xff] %vm1501, %v1572
  %1587 = vst.msk [vmem:[#allocation3 + $0x28] sm:$0xff] %vm1501, %v1573
  %1588 = vst.msk [vmem:[#allocation3 + $0x30] sm:$0xff] %vm1501, %v1574
  %1589 = vst.msk [vmem:[#allocation3 + $0x38] sm:$0xff] %vm1501, %v1575
  %1590 = vst.msk [vmem:[#allocation2 + $0x40] sm:$0xff] %vm1501, 0
  %1591 = vst.msk [vmem:[#allocation2 + $0x48] sm:$0xff] %vm1501, 0
  %1592 = vst.msk [vmem:[#allocation3 + $0x40] sm:$0xff] %vm1501, 0
  %1593 = vst.msk [vmem:[#allocation3 + $0x48] sm:$0xff] %vm1501, 0
  %v1594 = vld [vmem:[#allocation2] sm:$0xff]
  %v1595 = vld [vmem:[#allocation2 + $0x8] sm:$0xff]
  %v1596 = vld [vmem:[#allocation2 + $0x10] sm:$0xff]
  %v1597 = vld [vmem:[#allocation2 + $0x18] sm:$0xff]
  %v1598 = vld [vmem:[#allocation2 + $0x20] sm:$0xff]
  %v1599 = vld [vmem:[#allocation2 + $0x28] sm:$0xff]
  %v1600 = vld [vmem:[#allocation2 + $0x30] sm:$0xff]
  %v1601 = vld [vmem:[#allocation2 + $0x38] sm:$0xff]
  %v1602 = vld [vmem:[%s4] sm:$0xff]
  %v1603 = vld [vmem:[%s4 + $0x8] sm:$0xff]
  %v1604 = vld [vmem:[%s4 + $0x10] sm:$0xff]
  %v1605 = vld [vmem:[%s4 + $0x18] sm:$0xff]
  %v1606 = vld [vmem:[%s4 + $0x20] sm:$0xff]
  %v1607 = vld [vmem:[%s4 + $0x28] sm:$0xff]
  %v1608 = vld [vmem:[%s4 + $0x30] sm:$0xff]
  %v1609 = vld [vmem:[%s4 + $0x38] sm:$0xff]
  %v1610 = vld [vmem:[%s4 + $0x40] sm:$0xff]
  %v1611 = vld [vmem:[%s4 + $0x48] sm:$0xff]
  %v1612 = vld [vmem:[%s4 + $0x50] sm:$0xff]
  %v1613 = vld [vmem:[%s4 + $0x58] sm:$0xff]
  %v1614 = vld [vmem:[%s4 + $0x60] sm:$0xff]
  %v1615 = vld [vmem:[%s4 + $0x68] sm:$0xff]
  %v1616 = vld [vmem:[%s4 + $0x70] sm:$0xff]
  %v1617 = vld [vmem:[%s4 + $0x78] sm:$0xff]
  %v1618 = vld [vmem:[%s4 + $0x80] sm:$0xff]
  %v1619 = vld [vmem:[%s4 + $0x88] sm:$0xff]
  %v1620 = vld [vmem:[#allocation3] sm:$0xff]
  %v1621 = vld [vmem:[#allocation3 + $0x8] sm:$0xff]
  %v1622 = vld [vmem:[#allocation3 + $0x10] sm:$0xff]
  %v1623 = vld [vmem:[#allocation3 + $0x18] sm:$0xff]
  %v1624 = vld [vmem:[#allocation3 + $0x20] sm:$0xff]
  %v1625 = vld [vmem:[#allocation3 + $0x28] sm:$0xff]
  %v1626 = vld [vmem:[#allocation3 + $0x30] sm:$0xff]
  %v1627 = vld [vmem:[#allocation3 + $0x38] sm:$0xff]
  %s1628 = scalar_lea.vmem %s4, 144
  %v1629 = vld [vmem:[%s1628] sm:$0xff]
  %v1630 = vld [vmem:[%s1628 + $0x8] sm:$0xff]
  %v1631 = vld [vmem:[%s1628 + $0x10] sm:$0xff]
  %v1632 = vld [vmem:[%s1628 + $0x18] sm:$0xff]
  %v1633 = vld [vmem:[%s1628 + $0x20] sm:$0xff]
  %v1634 = vld [vmem:[%s1628 + $0x28] sm:$0xff]
  %v1635 = vld [vmem:[%s1628 + $0x30] sm:$0xff]
  %v1636 = vld [vmem:[%s1628 + $0x38] sm:$0xff]
  %v1637 = vld [vmem:[%s1628 + $0x40] sm:$0xff]
  %v1638 = vld [vmem:[%s1628 + $0x48] sm:$0xff]
  %v1639 = vld [vmem:[%s1628 + $0x50] sm:$0xff]
  %v1640 = vld [vmem:[%s1628 + $0x58] sm:$0xff]
  %v1641 = vld [vmem:[%s1628 + $0x60] sm:$0xff]
  %v1642 = vld [vmem:[%s1628 + $0x68] sm:$0xff]
  %v1643 = vld [vmem:[%s1628 + $0x70] sm:$0xff]
  %v1644 = vld [vmem:[%s1628 + $0x78] sm:$0xff]
  %v1645 = vld [vmem:[%s1628 + $0x80] sm:$0xff]
  %v1646 = vld [vmem:[%s1628 + $0x88] sm:$0xff]
  %v1655 = vunpack.c.l.b16 %v1620
  %v1656 = vunpack.c.h.b16 %v1620
  %v1657 = vunpack.c.l.b16 %v1621
  %v1658 = vunpack.c.h.b16 %v1621
  %v1659 = vunpack.c.l.b16 %v1622
  %v1660 = vunpack.c.h.b16 %v1622
  %v1661 = vunpack.c.l.b16 %v1623
  %v1662 = vunpack.c.h.b16 %v1623
  %v1663 = vunpack.c.l.b16 %v1624
  %v1664 = vunpack.c.h.b16 %v1624
  %v1665 = vunpack.c.l.b16 %v1625
  %v1666 = vunpack.c.h.b16 %v1625
  %v1667 = vunpack.c.l.b16 %v1626
  %v1668 = vunpack.c.h.b16 %v1626
  %v1669 = vunpack.c.l.b16 %v1627
  %v1670 = vunpack.c.h.b16 %v1627
  %v1671 = vpack.c.b16 %v1657, %v1655
  %v1672 = vpack.c.b16 %v1658, %v1656
  %v1673 = vpack.c.b16 %v1661, %v1659
  %v1674 = vpack.c.b16 %v1662, %v1660
  %v1675 = vpack.c.b16 %v1665, %v1663
  %v1676 = vpack.c.b16 %v1666, %v1664
  %v1677 = vpack.c.b16 %v1669, %v1667
  %v1678 = vpack.c.b16 %v1670, %v1668
  %v1701 = vunpack.c.l.b16 %v1629
  %v1702 = vunpack.c.h.b16 %v1629
  %v1703 = vunpack.c.l.b16 %v1630
  %v1704 = vunpack.c.h.b16 %v1630
  %v1705 = vunpack.c.l.b16 %v1631
  %v1706 = vunpack.c.h.b16 %v1631
  %v1707 = vunpack.c.l.b16 %v1632
  %v1708 = vunpack.c.h.b16 %v1632
  %v1709 = vunpack.c.l.b16 %v1633
  %v1710 = vunpack.c.h.b16 %v1633
  %v1711 = vunpack.c.l.b16 %v1634
  %v1712 = vunpack.c.h.b16 %v1634
  %v1713 = vunpack.c.l.b16 %v1635
  %v1714 = vunpack.c.h.b16 %v1635
  %v1715 = vunpack.c.l.b16 %v1636
  %v1716 = vunpack.c.h.b16 %v1636
  %v1717 = vunpack.c.l.b16 %v1637
  %v1718 = vunpack.c.h.b16 %v1637
  %v1719 = vunpack.c.l.b16 %v1638
  %v1720 = vunpack.c.h.b16 %v1638
  %v1721 = vunpack.c.l.b16 %v1639
  %v1722 = vunpack.c.h.b16 %v1639
  %v1723 = vunpack.c.l.b16 %v1640
  %v1724 = vunpack.c.h.b16 %v1640
  %v1725 = vunpack.c.l.b16 %v1641
  %v1726 = vunpack.c.h.b16 %v1641
  %v1727 = vunpack.c.l.b16 %v1642
  %v1728 = vunpack.c.h.b16 %v1642
  %v1729 = vunpack.c.l.b16 %v1643
  %v1730 = vunpack.c.h.b16 %v1643
  %v1731 = vunpack.c.l.b16 %v1644
  %v1732 = vunpack.c.h.b16 %v1644
  %v1733 = vunpack.c.l.b16 %v1645
  %v1734 = vunpack.c.h.b16 %v1645
  %v1735 = vunpack.c.l.b16 %v1646
  %v1736 = vunpack.c.h.b16 %v1646
  %v1737 = vpack.c.b16 %v1703, %v1701
  %v1738 = vpack.c.b16 %v1704, %v1702
  %v1739 = vpack.c.b16 %v1707, %v1705
  %v1740 = vpack.c.b16 %v1708, %v1706
  %v1741 = vpack.c.b16 %v1711, %v1709
  %v1742 = vpack.c.b16 %v1712, %v1710
  %v1743 = vpack.c.b16 %v1715, %v1713
  %v1744 = vpack.c.b16 %v1716, %v1714
  %v1745 = vpack.c.b16 %v1719, %v1717
  %v1746 = vpack.c.b16 %v1720, %v1718
  %v1747 = vpack.c.b16 %v1723, %v1721
  %v1748 = vpack.c.b16 %v1724, %v1722
  %v1749 = vpack.c.b16 %v1727, %v1725
  %v1750 = vpack.c.b16 %v1728, %v1726
  %v1751 = vpack.c.b16 %v1731, %v1729
  %v1752 = vpack.c.b16 %v1732, %v1730
  %v1753 = vpack.c.b16 %v1735, %v1733
  %v1754 = vpack.c.b16 %v1736, %v1734
  %vm1773 = vcmask 130048
  %v1775 = vsel %vm1773, %v1672, 0
  %v1778 = vsel %vm1773, %v1674, 0
  %v1781 = vsel %vm1773, %v1676, 0
  %v1784 = vsel %vm1773, %v1678, 0
  %1786 = vmatprep.subr.bf16.mxu0 %v1752
  %1787 = vmatpush1.bf16.msra.mxu0 %v1751
  %1788 = vmatprep.subr.bf16.mxu0 %v1750
  %1789 = vmatpush1.bf16.msra.mxu0 %v1749
  %1790 = vmatprep.subr.bf16.mxu0 %v1748
  %1791 = vmatpush1.bf16.msra.mxu0 %v1747
  %1792 = vmatprep.subr.bf16.mxu0 %v1746
  %1793 = vmatpush1.bf16.msra.mxu0 %v1745
  %1794 = vmatprep.subr.bf16.mxu0 %v1744
  %1795 = vmatpush1.bf16.msra.mxu0 %v1743
  %1796 = vmatprep.subr.bf16.mxu0 %v1742
  %1797 = vmatpush1.bf16.msra.mxu0 %v1741
  %1798 = vmatprep.subr.bf16.mxu0 %v1740
  %1799 = vmatpush1.bf16.msra.mxu0 %v1739
  %1800 = vmatprep.subr.bf16.mxu0 %v1738
  %1801 = vmatpush1.bf16.msra.mxu0 %v1737
  %1802 = vmatprep.subr.bf16.mxu0 0
  %1803 = vmatpush2.bf16.msra.mxu0 0
  %1804 = vmatprep.subr.bf16.mxu0 0
  %1805 = vmatpush2.bf16.msra.mxu0 0
  %1806 = vmatprep.subr.bf16.mxu0 0
  %1807 = vmatpush2.bf16.msra.mxu0 0
  %1808 = vmatprep.subr.bf16.mxu0 0
  %1809 = vmatpush2.bf16.msra.mxu0 0
  %1810 = vmatprep.subr.bf16.mxu0 0
  %1811 = vmatpush2.bf16.msra.mxu0 0
  %1812 = vmatprep.subr.bf16.mxu0 0
  %1813 = vmatpush2.bf16.msra.mxu0 0
  %1814 = vmatprep.subr.bf16.mxu0 0
  %1815 = vmatpush2.bf16.msra.mxu0 0
  %1816 = vmatprep.subr.bf16.mxu0 %v1754
  %1817 = vmatpush2.bf16.msra.mxu0 %v1753
  %1818 = vmatprep.mubr.bf16.mxu0 %v1775
  %1819 = vmatmul.mubr.bf16.gmra.mxu0 %v1671
  %v1820 = vpop.f32.mrf.mxu0
  %v1821 = vadd.f32 0.0, %v1820
  %v1822 = vpop.f32.mrf.mxu0
  %v1823 = vadd.f32 0.0, %v1822
  %v1824 = vpop.f32.mrf.mxu0
  %v1825 = vadd.f32 0.0, %v1824
  %v1826 = vpop.f32.mrf.mxu0
  %v1827 = vadd.f32 0.0, %v1826
  %1828 = vmatprep.mubr.bf16.mxu0 %v1778
  %1829 = vmatmul.mubr.bf16.gmra.mxu0 %v1673
  %v1830 = vpop.f32.mrf.mxu0
  %v1831 = vadd.f32 0.0, %v1830
  %v1832 = vpop.f32.mrf.mxu0
  %v1833 = vadd.f32 0.0, %v1832
  %v1834 = vpop.f32.mrf.mxu0
  %v1835 = vadd.f32 0.0, %v1834
  %v1836 = vpop.f32.mrf.mxu0
  %v1837 = vadd.f32 0.0, %v1836
  %1838 = vmatprep.mubr.bf16.mxu0 %v1781
  %1839 = vmatmul.mubr.bf16.gmra.mxu0 %v1675
  %v1840 = vpop.f32.mrf.mxu0
  %v1841 = vadd.f32 0.0, %v1840
  %v1842 = vpop.f32.mrf.mxu0
  %v1843 = vadd.f32 0.0, %v1842
  %v1844 = vpop.f32.mrf.mxu0
  %v1845 = vadd.f32 0.0, %v1844
  %v1846 = vpop.f32.mrf.mxu0
  %v1847 = vadd.f32 0.0, %v1846
  %1848 = vmatprep.mubr.bf16.mxu0 %v1784
  %1849 = vmatmul.mubr.bf16.gmra.mxu0 %v1677
  %v1850 = vpop.f32.mrf.mxu0
  %v1851 = vadd.f32 0.0, %v1850
  %v1852 = vpop.f32.mrf.mxu0
  %v1853 = vadd.f32 0.0, %v1852
  %v1854 = vpop.f32.mrf.mxu0
  %v1855 = vadd.f32 0.0, %v1854
  %v1856 = vpop.f32.mrf.mxu0
  %v1857 = vadd.f32 0.0, %v1856
  %1858 = vdwg.mxu0
  %v1867 = vunpack.c.l.b16 %v1594
  %v1868 = vunpack.c.h.b16 %v1594
  %v1869 = vunpack.c.l.b16 %v1595
  %v1870 = vunpack.c.h.b16 %v1595
  %v1871 = vunpack.c.l.b16 %v1596
  %v1872 = vunpack.c.h.b16 %v1596
  %v1873 = vunpack.c.l.b16 %v1597
  %v1874 = vunpack.c.h.b16 %v1597
  %v1875 = vunpack.c.l.b16 %v1598
  %v1876 = vunpack.c.h.b16 %v1598
  %v1877 = vunpack.c.l.b16 %v1599
  %v1878 = vunpack.c.h.b16 %v1599
  %v1879 = vunpack.c.l.b16 %v1600
  %v1880 = vunpack.c.h.b16 %v1600
  %v1881 = vunpack.c.l.b16 %v1601
  %v1882 = vunpack.c.h.b16 %v1601
  %v1883 = vpack.c.b16 %v1869, %v1867
  %v1884 = vpack.c.b16 %v1870, %v1868
  %v1885 = vpack.c.b16 %v1873, %v1871
  %v1886 = vpack.c.b16 %v1874, %v1872
  %v1887 = vpack.c.b16 %v1877, %v1875
  %v1888 = vpack.c.b16 %v1878, %v1876
  %v1889 = vpack.c.b16 %v1881, %v1879
  %v1890 = vpack.c.b16 %v1882, %v1880
  %v1913 = vunpack.c.l.b16 %v1602
  %v1914 = vunpack.c.h.b16 %v1602
  %v1915 = vunpack.c.l.b16 %v1603
  %v1916 = vunpack.c.h.b16 %v1603
  %v1917 = vunpack.c.l.b16 %v1604
  %v1918 = vunpack.c.h.b16 %v1604
  %v1919 = vunpack.c.l.b16 %v1605
  %v1920 = vunpack.c.h.b16 %v1605
  %v1921 = vunpack.c.l.b16 %v1606
  %v1922 = vunpack.c.h.b16 %v1606
  %v1923 = vunpack.c.l.b16 %v1607
  %v1924 = vunpack.c.h.b16 %v1607
  %v1925 = vunpack.c.l.b16 %v1608
  %v1926 = vunpack.c.h.b16 %v1608
  %v1927 = vunpack.c.l.b16 %v1609
  %v1928 = vunpack.c.h.b16 %v1609
  %v1929 = vunpack.c.l.b16 %v1610
  %v1930 = vunpack.c.h.b16 %v1610
  %v1931 = vunpack.c.l.b16 %v1611
  %v1932 = vunpack.c.h.b16 %v1611
  %v1933 = vunpack.c.l.b16 %v1612
  %v1934 = vunpack.c.h.b16 %v1612
  %v1935 = vunpack.c.l.b16 %v1613
  %v1936 = vunpack.c.h.b16 %v1613
  %v1937 = vunpack.c.l.b16 %v1614
  %v1938 = vunpack.c.h.b16 %v1614
  %v1939 = vunpack.c.l.b16 %v1615
  %v1940 = vunpack.c.h.b16 %v1615
  %v1941 = vunpack.c.l.b16 %v1616
  %v1942 = vunpack.c.h.b16 %v1616
  %v1943 = vunpack.c.l.b16 %v1617
  %v1944 = vunpack.c.h.b16 %v1617
  %v1945 = vunpack.c.l.b16 %v1618
  %v1946 = vunpack.c.h.b16 %v1618
  %v1947 = vunpack.c.l.b16 %v1619
  %v1948 = vunpack.c.h.b16 %v1619
  %v1949 = vpack.c.b16 %v1915, %v1913
  %v1950 = vpack.c.b16 %v1916, %v1914
  %v1951 = vpack.c.b16 %v1919, %v1917
  %v1952 = vpack.c.b16 %v1920, %v1918
  %v1953 = vpack.c.b16 %v1923, %v1921
  %v1954 = vpack.c.b16 %v1924, %v1922
  %v1955 = vpack.c.b16 %v1927, %v1925
  %v1956 = vpack.c.b16 %v1928, %v1926
  %v1957 = vpack.c.b16 %v1931, %v1929
  %v1958 = vpack.c.b16 %v1932, %v1930
  %v1959 = vpack.c.b16 %v1935, %v1933
  %v1960 = vpack.c.b16 %v1936, %v1934
  %v1961 = vpack.c.b16 %v1939, %v1937
  %v1962 = vpack.c.b16 %v1940, %v1938
  %v1963 = vpack.c.b16 %v1943, %v1941
  %v1964 = vpack.c.b16 %v1944, %v1942
  %v1965 = vpack.c.b16 %v1947, %v1945
  %v1966 = vpack.c.b16 %v1948, %v1946
  %v1986 = vsel %vm1773, %v1884, 0
  %v1989 = vsel %vm1773, %v1886, 0
  %v1992 = vsel %vm1773, %v1888, 0
  %v1995 = vsel %vm1773, %v1890, 0
  %1997 = vmatprep.subr.bf16.mxu0 %v1964
  %1998 = vmatpush1.bf16.msra.mxu0 %v1963
  %1999 = vmatprep.subr.bf16.mxu0 %v1962
  %2000 = vmatpush1.bf16.msra.mxu0 %v1961
  %2001 = vmatprep.subr.bf16.mxu0 %v1960
  %2002 = vmatpush1.bf16.msra.mxu0 %v1959
  %2003 = vmatprep.subr.bf16.mxu0 %v1958
  %2004 = vmatpush1.bf16.msra.mxu0 %v1957
  %2005 = vmatprep.subr.bf16.mxu0 %v1956
  %2006 = vmatpush1.bf16.msra.mxu0 %v1955
  %2007 = vmatprep.subr.bf16.mxu0 %v1954
  %2008 = vmatpush1.bf16.msra.mxu0 %v1953
  %2009 = vmatprep.subr.bf16.mxu0 %v1952
  %2010 = vmatpush1.bf16.msra.mxu0 %v1951
  %2011 = vmatprep.subr.bf16.mxu0 %v1950
  %2012 = vmatpush1.bf16.msra.mxu0 %v1949
  %2013 = vmatprep.subr.bf16.mxu0 0
  %2014 = vmatpush2.bf16.msra.mxu0 0
  %2015 = vmatprep.subr.bf16.mxu0 0
  %2016 = vmatpush2.bf16.msra.mxu0 0
  %2017 = vmatprep.subr.bf16.mxu0 0
  %2018 = vmatpush2.bf16.msra.mxu0 0
  %2019 = vmatprep.subr.bf16.mxu0 0
  %2020 = vmatpush2.bf16.msra.mxu0 0
  %2021 = vmatprep.subr.bf16.mxu0 0
  %2022 = vmatpush2.bf16.msra.mxu0 0
  %2023 = vmatprep.subr.bf16.mxu0 0
  %2024 = vmatpush2.bf16.msra.mxu0 0
  %2025 = vmatprep.subr.bf16.mxu0 0
  %2026 = vmatpush2.bf16.msra.mxu0 0
  %2027 = vmatprep.subr.bf16.mxu0 %v1966
  %2028 = vmatpush2.bf16.msra.mxu0 %v1965
  %2029 = vmatprep.mubr.bf16.mxu0 %v1986
  %2030 = vmatmul.mubr.bf16.gmra.mxu0 %v1883
  %v2031 = vpop.f32.mrf.mxu0
  %v2032 = vadd.f32 %v1821, %v2031
  %v2033 = vpop.f32.mrf.mxu0
  %v2034 = vadd.f32 %v1823, %v2033
  %v2035 = vpop.f32.mrf.mxu0
  %v2036 = vadd.f32 %v1825, %v2035
  %v2037 = vpop.f32.mrf.mxu0
  %v2038 = vadd.f32 %v1827, %v2037
  %2039 = vmatprep.mubr.bf16.mxu0 %v1989
  %2040 = vmatmul.mubr.bf16.gmra.mxu0 %v1885
  %v2041 = vpop.f32.mrf.mxu0
  %v2042 = vadd.f32 %v1831, %v2041
  %v2043 = vpop.f32.mrf.mxu0
  %v2044 = vadd.f32 %v1833, %v2043
  %v2045 = vpop.f32.mrf.mxu0
  %v2046 = vadd.f32 %v1835, %v2045
  %v2047 = vpop.f32.mrf.mxu0
  %v2048 = vadd.f32 %v1837, %v2047
  %2049 = vmatprep.mubr.bf16.mxu0 %v1992
  %2050 = vmatmul.mubr.bf16.gmra.mxu0 %v1887
  %v2051 = vpop.f32.mrf.mxu0
  %v2052 = vadd.f32 %v1841, %v2051
  %v2053 = vpop.f32.mrf.mxu0
  %v2054 = vadd.f32 %v1843, %v2053
  %v2055 = vpop.f32.mrf.mxu0
  %v2056 = vadd.f32 %v1845, %v2055
  %v2057 = vpop.f32.mrf.mxu0
  %v2058 = vadd.f32 %v1847, %v2057
  %2059 = vmatprep.mubr.bf16.mxu0 %v1995
  %2060 = vmatmul.mubr.bf16.gmra.mxu0 %v1889
  %v2061 = vpop.f32.mrf.mxu0
  %v2062 = vadd.f32 %v1851, %v2061
  %v2063 = vpop.f32.mrf.mxu0
  %v2064 = vadd.f32 %v1853, %v2063
  %v2065 = vpop.f32.mrf.mxu0
  %v2066 = vadd.f32 %v1855, %v2065
  %v2067 = vpop.f32.mrf.mxu0
  %v2068 = vadd.f32 %v1857, %v2067
  %2069 = vdwg.mxu0
  %v2070 = vld [vmem:[#allocation2 + $0x8] sm:$0xff]
  %v2071 = vld [vmem:[#allocation2 + $0x10] sm:$0xff]
  %v2072 = vld [vmem:[#allocation2 + $0x18] sm:$0xff]
  %v2073 = vld [vmem:[#allocation2 + $0x20] sm:$0xff]
  %v2074 = vld [vmem:[#allocation2 + $0x28] sm:$0xff]
  %v2075 = vld [vmem:[#allocation2 + $0x30] sm:$0xff]
  %v2076 = vld [vmem:[#allocation2 + $0x38] sm:$0xff]
  %v2077 = vld [vmem:[#allocation2 + $0x40] sm:$0xff]
  %v2086 = vunpack.c.l.b16 %v2070
  %v2087 = vunpack.c.h.b16 %v2070
  %v2088 = vunpack.c.l.b16 %v2071
  %v2089 = vunpack.c.h.b16 %v2071
  %v2090 = vunpack.c.l.b16 %v2072
  %v2091 = vunpack.c.h.b16 %v2072
  %v2092 = vunpack.c.l.b16 %v2073
  %v2093 = vunpack.c.h.b16 %v2073
  %v2094 = vunpack.c.l.b16 %v2074
  %v2095 = vunpack.c.h.b16 %v2074
  %v2096 = vunpack.c.l.b16 %v2075
  %v2097 = vunpack.c.h.b16 %v2075
  %v2098 = vunpack.c.l.b16 %v2076
  %v2099 = vunpack.c.h.b16 %v2076
  %v2100 = vunpack.c.l.b16 %v2077
  %v2101 = vunpack.c.h.b16 %v2077
  %v2102 = vpack.c.b16 %v2088, %v2086
  %v2103 = vpack.c.b16 %v2089, %v2087
  %v2104 = vpack.c.b16 %v2092, %v2090
  %v2105 = vpack.c.b16 %v2093, %v2091
  %v2106 = vpack.c.b16 %v2096, %v2094
  %v2107 = vpack.c.b16 %v2097, %v2095
  %v2108 = vpack.c.b16 %v2100, %v2098
  %v2109 = vpack.c.b16 %v2101, %v2099
  %v2115 = vsel %vm1773, %v2103, 0
  %v2118 = vsel %vm1773, %v2105, 0
  %v2121 = vsel %vm1773, %v2107, 0
  %v2124 = vsel %vm1773, %v2109, 0
  %2126 = vmatprep.subr.bf16.mxu0 %v1752
  %2127 = vmatpush1.bf16.msra.mxu0 %v1751
  %2128 = vmatprep.subr.bf16.mxu0 %v1750
  %2129 = vmatpush1.bf16.msra.mxu0 %v1749
  %2130 = vmatprep.subr.bf16.mxu0 %v1748
  %2131 = vmatpush1.bf16.msra.mxu0 %v1747
  %2132 = vmatprep.subr.bf16.mxu0 %v1746
  %2133 = vmatpush1.bf16.msra.mxu0 %v1745
  %2134 = vmatprep.subr.bf16.mxu0 %v1744
  %2135 = vmatpush1.bf16.msra.mxu0 %v1743
  %2136 = vmatprep.subr.bf16.mxu0 %v1742
  %2137 = vmatpush1.bf16.msra.mxu0 %v1741
  %2138 = vmatprep.subr.bf16.mxu0 %v1740
  %2139 = vmatpush1.bf16.msra.mxu0 %v1739
  %2140 = vmatprep.subr.bf16.mxu0 %v1738
  %2141 = vmatpush1.bf16.msra.mxu0 %v1737
  %2142 = vmatprep.subr.bf16.mxu0 0
  %2143 = vmatpush2.bf16.msra.mxu0 0
  %2144 = vmatprep.subr.bf16.mxu0 0
  %2145 = vmatpush2.bf16.msra.mxu0 0
  %2146 = vmatprep.subr.bf16.mxu0 0
  %2147 = vmatpush2.bf16.msra.mxu0 0
  %2148 = vmatprep.subr.bf16.mxu0 0
  %2149 = vmatpush2.bf16.msra.mxu0 0
  %2150 = vmatprep.subr.bf16.mxu0 0
  %2151 = vmatpush2.bf16.msra.mxu0 0
  %2152 = vmatprep.subr.bf16.mxu0 0
  %2153 = vmatpush2.bf16.msra.mxu0 0
  %2154 = vmatprep.subr.bf16.mxu0 0
  %2155 = vmatpush2.bf16.msra.mxu0 0
  %2156 = vmatprep.subr.bf16.mxu0 %v1754
  %2157 = vmatpush2.bf16.msra.mxu0 %v1753
  %2158 = vmatprep.mubr.bf16.mxu0 %v2115
  %2159 = vmatmul.mubr.bf16.gmra.mxu0 %v2102
  %v2160 = vpop.f32.mrf.mxu0
  %v2161 = vadd.f32 0.0, %v2160
  %v2162 = vpop.f32.mrf.mxu0
  %v2163 = vadd.f32 0.0, %v2162
  %v2164 = vpop.f32.mrf.mxu0
  %v2165 = vadd.f32 0.0, %v2164
  %v2166 = vpop.f32.mrf.mxu0
  %v2167 = vadd.f32 0.0, %v2166
  %2168 = vmatprep.mubr.bf16.mxu0 %v2118
  %2169 = vmatmul.mubr.bf16.gmra.mxu0 %v2104
  %v2170 = vpop.f32.mrf.mxu0
  %v2171 = vadd.f32 0.0, %v2170
  %v2172 = vpop.f32.mrf.mxu0
  %v2173 = vadd.f32 0.0, %v2172
  %v2174 = vpop.f32.mrf.mxu0
  %v2175 = vadd.f32 0.0, %v2174
  %v2176 = vpop.f32.mrf.mxu0
  %v2177 = vadd.f32 0.0, %v2176
  %2178 = vmatprep.mubr.bf16.mxu0 %v2121
  %2179 = vmatmul.mubr.bf16.gmra.mxu0 %v2106
  %v2180 = vpop.f32.mrf.mxu0
  %v2181 = vadd.f32 0.0, %v2180
  %v2182 = vpop.f32.mrf.mxu0
  %v2183 = vadd.f32 0.0, %v2182
  %v2184 = vpop.f32.mrf.mxu0
  %v2185 = vadd.f32 0.0, %v2184
  %v2186 = vpop.f32.mrf.mxu0
  %v2187 = vadd.f32 0.0, %v2186
  %2188 = vmatprep.mubr.bf16.mxu0 %v2124
  %2189 = vmatmul.mubr.bf16.gmra.mxu0 %v2108
  %v2190 = vpop.f32.mrf.mxu0
  %v2191 = vadd.f32 0.0, %v2190
  %v2192 = vpop.f32.mrf.mxu0
  %v2193 = vadd.f32 0.0, %v2192
  %v2194 = vpop.f32.mrf.mxu0
  %v2195 = vadd.f32 0.0, %v2194
  %v2196 = vpop.f32.mrf.mxu0
  %v2197 = vadd.f32 0.0, %v2196
  %2198 = vdwg.mxu0
  %2199 = vmatprep.subr.bf16.mxu0 %v1964
  %2200 = vmatpush1.bf16.msra.mxu0 %v1963
  %2201 = vmatprep.subr.bf16.mxu0 %v1962
  %2202 = vmatpush1.bf16.msra.mxu0 %v1961
  %2203 = vmatprep.subr.bf16.mxu0 %v1960
  %2204 = vmatpush1.bf16.msra.mxu0 %v1959
  %2205 = vmatprep.subr.bf16.mxu0 %v1958
  %2206 = vmatpush1.bf16.msra.mxu0 %v1957
  %2207 = vmatprep.subr.bf16.mxu0 %v1956
  %2208 = vmatpush1.bf16.msra.mxu0 %v1955
  %2209 = vmatprep.subr.bf16.mxu0 %v1954
  %2210 = vmatpush1.bf16.msra.mxu0 %v1953
  %2211 = vmatprep.subr.bf16.mxu0 %v1952
  %2212 = vmatpush1.bf16.msra.mxu0 %v1951
  %2213 = vmatprep.subr.bf16.mxu0 %v1950
  %2214 = vmatpush1.bf16.msra.mxu0 %v1949
  %2215 = vmatprep.subr.bf16.mxu0 0
  %2216 = vmatpush2.bf16.msra.mxu0 0
  %2217 = vmatprep.subr.bf16.mxu0 0
  %2218 = vmatpush2.bf16.msra.mxu0 0
  %2219 = vmatprep.subr.bf16.mxu0 0
  %2220 = vmatpush2.bf16.msra.mxu0 0
  %2221 = vmatprep.subr.bf16.mxu0 0
  %2222 = vmatpush2.bf16.msra.mxu0 0
  %2223 = vmatprep.subr.bf16.mxu0 0
  %2224 = vmatpush2.bf16.msra.mxu0 0
  %2225 = vmatprep.subr.bf16.mxu0 0
  %2226 = vmatpush2.bf16.msra.mxu0 0
  %2227 = vmatprep.subr.bf16.mxu0 0
  %2228 = vmatpush2.bf16.msra.mxu0 0
  %2229 = vmatprep.subr.bf16.mxu0 %v1966
  %2230 = vmatpush2.bf16.msra.mxu0 %v1965
  %2231 = vmatprep.mubr.bf16.mxu0 %v1775
  %2232 = vmatmul.mubr.bf16.gmra.mxu0 %v1671
  %v2233 = vpop.f32.mrf.mxu0
  %v2234 = vadd.f32 %v2161, %v2233
  %v2235 = vpop.f32.mrf.mxu0
  %v2236 = vadd.f32 %v2163, %v2235
  %v2237 = vpop.f32.mrf.mxu0
  %v2238 = vadd.f32 %v2165, %v2237
  %v2239 = vpop.f32.mrf.mxu0
  %v2240 = vadd.f32 %v2167, %v2239
  %2241 = vmatprep.mubr.bf16.mxu0 %v1778
  %2242 = vmatmul.mubr.bf16.gmra.mxu0 %v1673
  %v2243 = vpop.f32.mrf.mxu0
  %v2244 = vadd.f32 %v2171, %v2243
  %v2245 = vpop.f32.mrf.mxu0
  %v2246 = vadd.f32 %v2173, %v2245
  %v2247 = vpop.f32.mrf.mxu0
  %v2248 = vadd.f32 %v2175, %v2247
  %v2249 = vpop.f32.mrf.mxu0
  %v2250 = vadd.f32 %v2177, %v2249
  %2251 = vmatprep.mubr.bf16.mxu0 %v1781
  %2252 = vmatmul.mubr.bf16.gmra.mxu0 %v1675
  %v2253 = vpop.f32.mrf.mxu0
  %v2254 = vadd.f32 %v2181, %v2253
  %v2255 = vpop.f32.mrf.mxu0
  %v2256 = vadd.f32 %v2183, %v2255
  %v2257 = vpop.f32.mrf.mxu0
  %v2258 = vadd.f32 %v2185, %v2257
  %v2259 = vpop.f32.mrf.mxu0
  %v2260 = vadd.f32 %v2187, %v2259
  %2261 = vmatprep.mubr.bf16.mxu0 %v1784
  %2262 = vmatmul.mubr.bf16.gmra.mxu0 %v1677
  %v2263 = vpop.f32.mrf.mxu0
  %v2264 = vadd.f32 %v2191, %v2263
  %v2265 = vpop.f32.mrf.mxu0
  %v2266 = vadd.f32 %v2193, %v2265
  %v2267 = vpop.f32.mrf.mxu0
  %v2268 = vadd.f32 %v2195, %v2267
  %v2269 = vpop.f32.mrf.mxu0
  %v2270 = vadd.f32 %v2197, %v2269
  %2271 = vdwg.mxu0
  %s2272 = scalar_lea.vmem %s4, 288
  %v2273 = vld [vmem:[%s2272] sm:$0xff]
  %v2274 = vld [vmem:[%s2272 + $0x8] sm:$0xff]
  %v2275 = vld [vmem:[%s2272 + $0x10] sm:$0xff]
  %v2276 = vld [vmem:[%s2272 + $0x18] sm:$0xff]
  %v2277 = vld [vmem:[%s2272 + $0x20] sm:$0xff]
  %v2278 = vld [vmem:[%s2272 + $0x28] sm:$0xff]
  %v2279 = vld [vmem:[%s2272 + $0x30] sm:$0xff]
  %v2280 = vld [vmem:[%s2272 + $0x38] sm:$0xff]
  %v2281 = vld [vmem:[%s2272 + $0x40] sm:$0xff]
  %v2282 = vld [vmem:[%s2272 + $0x48] sm:$0xff]
  %v2283 = vld [vmem:[%s2272 + $0x50] sm:$0xff]
  %v2284 = vld [vmem:[%s2272 + $0x58] sm:$0xff]
  %v2285 = vld [vmem:[%s2272 + $0x60] sm:$0xff]
  %v2286 = vld [vmem:[%s2272 + $0x68] sm:$0xff]
  %v2287 = vld [vmem:[%s2272 + $0x70] sm:$0xff]
  %v2288 = vld [vmem:[%s2272 + $0x78] sm:$0xff]
  %v2289 = vld [vmem:[%s2272 + $0x80] sm:$0xff]
  %v2290 = vld [vmem:[%s2272 + $0x88] sm:$0xff]
  %v2309 = vunpack.c.l.b16 %v2273
  %v2310 = vunpack.c.h.b16 %v2273
  %v2311 = vunpack.c.l.b16 %v2274
  %v2312 = vunpack.c.h.b16 %v2274
  %v2313 = vunpack.c.l.b16 %v2275
  %v2314 = vunpack.c.h.b16 %v2275
  %v2315 = vunpack.c.l.b16 %v2276
  %v2316 = vunpack.c.h.b16 %v2276
  %v2317 = vunpack.c.l.b16 %v2277
  %v2318 = vunpack.c.h.b16 %v2277
  %v2319 = vunpack.c.l.b16 %v2278
  %v2320 = vunpack.c.h.b16 %v2278
  %v2321 = vunpack.c.l.b16 %v2279
  %v2322 = vunpack.c.h.b16 %v2279
  %v2323 = vunpack.c.l.b16 %v2280
  %v2324 = vunpack.c.h.b16 %v2280
  %v2325 = vunpack.c.l.b16 %v2281
  %v2326 = vunpack.c.h.b16 %v2281
  %v2327 = vunpack.c.l.b16 %v2282
  %v2328 = vunpack.c.h.b16 %v2282
  %v2329 = vunpack.c.l.b16 %v2283
  %v2330 = vunpack.c.h.b16 %v2283
  %v2331 = vunpack.c.l.b16 %v2284
  %v2332 = vunpack.c.h.b16 %v2284
  %v2333 = vunpack.c.l.b16 %v2285
  %v2334 = vunpack.c.h.b16 %v2285
  %v2335 = vunpack.c.l.b16 %v2286
  %v2336 = vunpack.c.h.b16 %v2286
  %v2337 = vunpack.c.l.b16 %v2287
  %v2338 = vunpack.c.h.b16 %v2287
  %v2339 = vunpack.c.l.b16 %v2288
  %v2340 = vunpack.c.h.b16 %v2288
  %v2341 = vunpack.c.l.b16 %v2289
  %v2342 = vunpack.c.h.b16 %v2289
  %v2343 = vunpack.c.l.b16 %v2290
  %v2344 = vunpack.c.h.b16 %v2290
  %v2345 = vpack.c.b16 %v2311, %v2309
  %v2346 = vpack.c.b16 %v2312, %v2310
  %v2347 = vpack.c.b16 %v2315, %v2313
  %v2348 = vpack.c.b16 %v2316, %v2314
  %v2349 = vpack.c.b16 %v2319, %v2317
  %v2350 = vpack.c.b16 %v2320, %v2318
  %v2351 = vpack.c.b16 %v2323, %v2321
  %v2352 = vpack.c.b16 %v2324, %v2322
  %v2353 = vpack.c.b16 %v2327, %v2325
  %v2354 = vpack.c.b16 %v2328, %v2326
  %v2355 = vpack.c.b16 %v2331, %v2329
  %v2356 = vpack.c.b16 %v2332, %v2330
  %v2357 = vpack.c.b16 %v2335, %v2333
  %v2358 = vpack.c.b16 %v2336, %v2334
  %v2359 = vpack.c.b16 %v2339, %v2337
  %v2360 = vpack.c.b16 %v2340, %v2338
  %v2361 = vpack.c.b16 %v2343, %v2341
  %v2362 = vpack.c.b16 %v2344, %v2342
  %2381 = vmatprep.subr.bf16.mxu0 %v2360
  %2382 = vmatpush1.bf16.msra.mxu0 %v2359
  %2383 = vmatprep.subr.bf16.mxu0 %v2358
  %2384 = vmatpush1.bf16.msra.mxu0 %v2357
  %2385 = vmatprep.subr.bf16.mxu0 %v2356
  %2386 = vmatpush1.bf16.msra.mxu0 %v2355
  %2387 = vmatprep.subr.bf16.mxu0 %v2354
  %2388 = vmatpush1.bf16.msra.mxu0 %v2353
  %2389 = vmatprep.subr.bf16.mxu0 %v2352
  %2390 = vmatpush1.bf16.msra.mxu0 %v2351
  %2391 = vmatprep.subr.bf16.mxu0 %v2350
  %2392 = vmatpush1.bf16.msra.mxu0 %v2349
  %2393 = vmatprep.subr.bf16.mxu0 %v2348
  %2394 = vmatpush1.bf16.msra.mxu0 %v2347
  %2395 = vmatprep.subr.bf16.mxu0 %v2346
  %2396 = vmatpush1.bf16.msra.mxu0 %v2345
  %2397 = vmatprep.subr.bf16.mxu0 0
  %2398 = vmatpush2.bf16.msra.mxu0 0
  %2399 = vmatprep.subr.bf16.mxu0 0
  %2400 = vmatpush2.bf16.msra.mxu0 0
  %2401 = vmatprep.subr.bf16.mxu0 0
  %2402 = vmatpush2.bf16.msra.mxu0 0
  %2403 = vmatprep.subr.bf16.mxu0 0
  %2404 = vmatpush2.bf16.msra.mxu0 0
  %2405 = vmatprep.subr.bf16.mxu0 0
  %2406 = vmatpush2.bf16.msra.mxu0 0
  %2407 = vmatprep.subr.bf16.mxu0 0
  %2408 = vmatpush2.bf16.msra.mxu0 0
  %2409 = vmatprep.subr.bf16.mxu0 0
  %2410 = vmatpush2.bf16.msra.mxu0 0
  %2411 = vmatprep.subr.bf16.mxu0 %v2362
  %2412 = vmatpush2.bf16.msra.mxu0 %v2361
  %2413 = vmatprep.mubr.bf16.mxu0 %v2115
  %2414 = vmatmul.mubr.bf16.gmra.mxu0 %v2102
  %v2415 = vpop.f32.mrf.mxu0
  %v2416 = vadd.f32 0.0, %v2415
  %v2417 = vpop.f32.mrf.mxu0
  %v2418 = vadd.f32 0.0, %v2417
  %v2419 = vpop.f32.mrf.mxu0
  %v2420 = vadd.f32 0.0, %v2419
  %v2421 = vpop.f32.mrf.mxu0
  %v2422 = vadd.f32 0.0, %v2421
  %2423 = vmatprep.mubr.bf16.mxu0 %v2118
  %2424 = vmatmul.mubr.bf16.gmra.mxu0 %v2104
  %v2425 = vpop.f32.mrf.mxu0
  %v2426 = vadd.f32 0.0, %v2425
  %v2427 = vpop.f32.mrf.mxu0
  %v2428 = vadd.f32 0.0, %v2427
  %v2429 = vpop.f32.mrf.mxu0
  %v2430 = vadd.f32 0.0, %v2429
  %v2431 = vpop.f32.mrf.mxu0
  %v2432 = vadd.f32 0.0, %v2431
  %2433 = vmatprep.mubr.bf16.mxu0 %v2121
  %2434 = vmatmul.mubr.bf16.gmra.mxu0 %v2106
  %v2435 = vpop.f32.mrf.mxu0
  %v2436 = vadd.f32 0.0, %v2435
  %v2437 = vpop.f32.mrf.mxu0
  %v2438 = vadd.f32 0.0, %v2437
  %v2439 = vpop.f32.mrf.mxu0
  %v2440 = vadd.f32 0.0, %v2439
  %v2441 = vpop.f32.mrf.mxu0
  %v2442 = vadd.f32 0.0, %v2441
  %2443 = vmatprep.mubr.bf16.mxu0 %v2124
  %2444 = vmatmul.mubr.bf16.gmra.mxu0 %v2108
  %v2445 = vpop.f32.mrf.mxu0
  %v2446 = vadd.f32 0.0, %v2445
  %v2447 = vpop.f32.mrf.mxu0
  %v2448 = vadd.f32 0.0, %v2447
  %v2449 = vpop.f32.mrf.mxu0
  %v2450 = vadd.f32 0.0, %v2449
  %v2451 = vpop.f32.mrf.mxu0
  %v2452 = vadd.f32 0.0, %v2451
  %2453 = vdwg.mxu0
  %v2454 = vadd.f32 %v2032, %v2416
  %v2455 = vadd.f32 %v2034, %v2418
  %v2456 = vadd.f32 %v2036, %v2420
  %v2457 = vadd.f32 %v2038, %v2422
  %v2458 = vadd.f32 %v2042, %v2426
  %v2459 = vadd.f32 %v2044, %v2428
  %v2460 = vadd.f32 %v2046, %v2430
  %v2461 = vadd.f32 %v2048, %v2432
  %v2462 = vadd.f32 %v2052, %v2436
  %v2463 = vadd.f32 %v2054, %v2438
  %v2464 = vadd.f32 %v2056, %v2440
  %v2465 = vadd.f32 %v2058, %v2442
  %v2466 = vadd.f32 %v2062, %v2446
  %v2467 = vadd.f32 %v2064, %v2448
  %v2468 = vadd.f32 %v2066, %v2450
  %v2469 = vadd.f32 %v2068, %v2452
  %v2470 = vld [vmem:[#allocation3 + $0x8] sm:$0xff]
  %v2471 = vld [vmem:[#allocation3 + $0x10] sm:$0xff]
  %v2472 = vld [vmem:[#allocation3 + $0x18] sm:$0xff]
  %v2473 = vld [vmem:[#allocation3 + $0x20] sm:$0xff]
  %v2474 = vld [vmem:[#allocation3 + $0x28] sm:$0xff]
  %v2475 = vld [vmem:[#allocation3 + $0x30] sm:$0xff]
  %v2476 = vld [vmem:[#allocation3 + $0x38] sm:$0xff]
  %v2477 = vld [vmem:[#allocation3 + $0x40] sm:$0xff]
  %v2486 = vunpack.c.l.b16 %v2470
  %v2487 = vunpack.c.h.b16 %v2470
  %v2488 = vunpack.c.l.b16 %v2471
  %v2489 = vunpack.c.h.b16 %v2471
  %v2490 = vunpack.c.l.b16 %v2472
  %v2491 = vunpack.c.h.b16 %v2472
  %v2492 = vunpack.c.l.b16 %v2473
  %v2493 = vunpack.c.h.b16 %v2473
  %v2494 = vunpack.c.l.b16 %v2474
  %v2495 = vunpack.c.h.b16 %v2474
  %v2496 = vunpack.c.l.b16 %v2475
  %v2497 = vunpack.c.h.b16 %v2475
  %v2498 = vunpack.c.l.b16 %v2476
  %v2499 = vunpack.c.h.b16 %v2476
  %v2500 = vunpack.c.l.b16 %v2477
  %v2501 = vunpack.c.h.b16 %v2477
  %v2502 = vpack.c.b16 %v2488, %v2486
  %v2503 = vpack.c.b16 %v2489, %v2487
  %v2504 = vpack.c.b16 %v2492, %v2490
  %v2505 = vpack.c.b16 %v2493, %v2491
  %v2506 = vpack.c.b16 %v2496, %v2494
  %v2507 = vpack.c.b16 %v2497, %v2495
  %v2508 = vpack.c.b16 %v2500, %v2498
  %v2509 = vpack.c.b16 %v2501, %v2499
  %v2515 = vsel %vm1773, %v2503, 0
  %v2518 = vsel %vm1773, %v2505, 0
  %v2521 = vsel %vm1773, %v2507, 0
  %v2524 = vsel %vm1773, %v2509, 0
  %2526 = vmatprep.subr.bf16.mxu0 %v2360
  %2527 = vmatpush1.bf16.msra.mxu0 %v2359
  %2528 = vmatprep.subr.bf16.mxu0 %v2358
  %2529 = vmatpush1.bf16.msra.mxu0 %v2357
  %2530 = vmatprep.subr.bf16.mxu0 %v2356
  %2531 = vmatpush1.bf16.msra.mxu0 %v2355
  %2532 = vmatprep.subr.bf16.mxu0 %v2354
  %2533 = vmatpush1.bf16.msra.mxu0 %v2353
  %2534 = vmatprep.subr.bf16.mxu0 %v2352
  %2535 = vmatpush1.bf16.msra.mxu0 %v2351
  %2536 = vmatprep.subr.bf16.mxu0 %v2350
  %2537 = vmatpush1.bf16.msra.mxu0 %v2349
  %2538 = vmatprep.subr.bf16.mxu0 %v2348
  %2539 = vmatpush1.bf16.msra.mxu0 %v2347
  %2540 = vmatprep.subr.bf16.mxu0 %v2346
  %2541 = vmatpush1.bf16.msra.mxu0 %v2345
  %2542 = vmatprep.subr.bf16.mxu0 0
  %2543 = vmatpush2.bf16.msra.mxu0 0
  %2544 = vmatprep.subr.bf16.mxu0 0
  %2545 = vmatpush2.bf16.msra.mxu0 0
  %2546 = vmatprep.subr.bf16.mxu0 0
  %2547 = vmatpush2.bf16.msra.mxu0 0
  %2548 = vmatprep.subr.bf16.mxu0 0
  %2549 = vmatpush2.bf16.msra.mxu0 0
  %2550 = vmatprep.subr.bf16.mxu0 0
  %2551 = vmatpush2.bf16.msra.mxu0 0
  %2552 = vmatprep.subr.bf16.mxu0 0
  %2553 = vmatpush2.bf16.msra.mxu0 0
  %2554 = vmatprep.subr.bf16.mxu0 0
  %2555 = vmatpush2.bf16.msra.mxu0 0
  %2556 = vmatprep.subr.bf16.mxu0 %v2362
  %2557 = vmatpush2.bf16.msra.mxu0 %v2361
  %2558 = vmatprep.mubr.bf16.mxu0 %v2515
  %2559 = vmatmul.mubr.bf16.gmra.mxu0 %v2502
  %v2560 = vpop.f32.mrf.mxu0
  %v2561 = vadd.f32 0.0, %v2560
  %v2562 = vpop.f32.mrf.mxu0
  %v2563 = vadd.f32 0.0, %v2562
  %v2564 = vpop.f32.mrf.mxu0
  %v2565 = vadd.f32 0.0, %v2564
  %v2566 = vpop.f32.mrf.mxu0
  %v2567 = vadd.f32 0.0, %v2566
  %2568 = vmatprep.mubr.bf16.mxu0 %v2518
  %2569 = vmatmul.mubr.bf16.gmra.mxu0 %v2504
  %v2570 = vpop.f32.mrf.mxu0
  %v2571 = vadd.f32 0.0, %v2570
  %v2572 = vpop.f32.mrf.mxu0
  %v2573 = vadd.f32 0.0, %v2572
  %v2574 = vpop.f32.mrf.mxu0
  %v2575 = vadd.f32 0.0, %v2574
  %v2576 = vpop.f32.mrf.mxu0
  %v2577 = vadd.f32 0.0, %v2576
  %2578 = vmatprep.mubr.bf16.mxu0 %v2521
  %2579 = vmatmul.mubr.bf16.gmra.mxu0 %v2506
  %v2580 = vpop.f32.mrf.mxu0
  %v2581 = vadd.f32 0.0, %v2580
  %v2582 = vpop.f32.mrf.mxu0
  %v2583 = vadd.f32 0.0, %v2582
  %v2584 = vpop.f32.mrf.mxu0
  %v2585 = vadd.f32 0.0, %v2584
  %v2586 = vpop.f32.mrf.mxu0
  %v2587 = vadd.f32 0.0, %v2586
  %2588 = vmatprep.mubr.bf16.mxu0 %v2524
  %2589 = vmatmul.mubr.bf16.gmra.mxu0 %v2508
  %v2590 = vpop.f32.mrf.mxu0
  %v2591 = vadd.f32 0.0, %v2590
  %v2592 = vpop.f32.mrf.mxu0
  %v2593 = vadd.f32 0.0, %v2592
  %v2594 = vpop.f32.mrf.mxu0
  %v2595 = vadd.f32 0.0, %v2594
  %v2596 = vpop.f32.mrf.mxu0
  %v2597 = vadd.f32 0.0, %v2596
  %2598 = vdwg.mxu0
  %v2599 = vadd.f32 %v2234, %v2561
  %v2600 = vadd.f32 %v2236, %v2563
  %v2601 = vadd.f32 %v2238, %v2565
  %v2602 = vadd.f32 %v2240, %v2567
  %v2603 = vadd.f32 %v2244, %v2571
  %v2604 = vadd.f32 %v2246, %v2573
  %v2605 = vadd.f32 %v2248, %v2575
  %v2606 = vadd.f32 %v2250, %v2577
  %v2607 = vadd.f32 %v2254, %v2581
  %v2608 = vadd.f32 %v2256, %v2583
  %v2609 = vadd.f32 %v2258, %v2585
  %v2610 = vadd.f32 %v2260, %v2587
  %v2611 = vadd.f32 %v2264, %v2591
  %v2612 = vadd.f32 %v2266, %v2593
  %v2613 = vadd.f32 %v2268, %v2595
  %v2614 = vadd.f32 %v2270, %v2597
  %s2615 = scalar_lea.vmem %s4, 432
  %v2616 = vld [vmem:[%s2615] sm:$0xff]
  %v2617 = vld [vmem:[%s2615 + $0x8] sm:$0xff]
  %v2618 = vld [vmem:[%s2615 + $0x10] sm:$0xff]
  %v2619 = vld [vmem:[%s2615 + $0x18] sm:$0xff]
  %v2620 = vld [vmem:[%s2615 + $0x20] sm:$0xff]
  %v2621 = vld [vmem:[%s2615 + $0x28] sm:$0xff]
  %v2622 = vld [vmem:[%s2615 + $0x30] sm:$0xff]
  %v2623 = vld [vmem:[%s2615 + $0x38] sm:$0xff]
  %v2624 = vld [vmem:[%s2615 + $0x40] sm:$0xff]
  %v2625 = vld [vmem:[%s2615 + $0x48] sm:$0xff]
  %v2626 = vld [vmem:[%s2615 + $0x50] sm:$0xff]
  %v2627 = vld [vmem:[%s2615 + $0x58] sm:$0xff]
  %v2628 = vld [vmem:[%s2615 + $0x60] sm:$0xff]
  %v2629 = vld [vmem:[%s2615 + $0x68] sm:$0xff]
  %v2630 = vld [vmem:[%s2615 + $0x70] sm:$0xff]
  %v2631 = vld [vmem:[%s2615 + $0x78] sm:$0xff]
  %v2632 = vld [vmem:[%s2615 + $0x80] sm:$0xff]
  %v2633 = vld [vmem:[%s2615 + $0x88] sm:$0xff]
  %v2652 = vunpack.c.l.b16 %v2616
  %v2653 = vunpack.c.h.b16 %v2616
  %v2654 = vunpack.c.l.b16 %v2617
  %v2655 = vunpack.c.h.b16 %v2617
  %v2656 = vunpack.c.l.b16 %v2618
  %v2657 = vunpack.c.h.b16 %v2618
  %v2658 = vunpack.c.l.b16 %v2619
  %v2659 = vunpack.c.h.b16 %v2619
  %v2660 = vunpack.c.l.b16 %v2620
  %v2661 = vunpack.c.h.b16 %v2620
  %v2662 = vunpack.c.l.b16 %v2621
  %v2663 = vunpack.c.h.b16 %v2621
  %v2664 = vunpack.c.l.b16 %v2622
  %v2665 = vunpack.c.h.b16 %v2622
  %v2666 = vunpack.c.l.b16 %v2623
  %v2667 = vunpack.c.h.b16 %v2623
  %v2668 = vunpack.c.l.b16 %v2624
  %v2669 = vunpack.c.h.b16 %v2624
  %v2670 = vunpack.c.l.b16 %v2625
  %v2671 = vunpack.c.h.b16 %v2625
  %v2672 = vunpack.c.l.b16 %v2626
  %v2673 = vunpack.c.h.b16 %v2626
  %v2674 = vunpack.c.l.b16 %v2627
  %v2675 = vunpack.c.h.b16 %v2627
  %v2676 = vunpack.c.l.b16 %v2628
  %v2677 = vunpack.c.h.b16 %v2628
  %v2678 = vunpack.c.l.b16 %v2629
  %v2679 = vunpack.c.h.b16 %v2629
  %v2680 = vunpack.c.l.b16 %v2630
  %v2681 = vunpack.c.h.b16 %v2630
  %v2682 = vunpack.c.l.b16 %v2631
  %v2683 = vunpack.c.h.b16 %v2631
  %v2684 = vunpack.c.l.b16 %v2632
  %v2685 = vunpack.c.h.b16 %v2632
  %v2686 = vunpack.c.l.b16 %v2633
  %v2687 = vunpack.c.h.b16 %v2633
  %v2688 = vpack.c.b16 %v2654, %v2652
  %v2689 = vpack.c.b16 %v2655, %v2653
  %v2690 = vpack.c.b16 %v2658, %v2656
  %v2691 = vpack.c.b16 %v2659, %v2657
  %v2692 = vpack.c.b16 %v2662, %v2660
  %v2693 = vpack.c.b16 %v2663, %v2661
  %v2694 = vpack.c.b16 %v2666, %v2664
  %v2695 = vpack.c.b16 %v2667, %v2665
  %v2696 = vpack.c.b16 %v2670, %v2668
  %v2697 = vpack.c.b16 %v2671, %v2669
  %v2698 = vpack.c.b16 %v2674, %v2672
  %v2699 = vpack.c.b16 %v2675, %v2673
  %v2700 = vpack.c.b16 %v2678, %v2676
  %v2701 = vpack.c.b16 %v2679, %v2677
  %v2702 = vpack.c.b16 %v2682, %v2680
  %v2703 = vpack.c.b16 %v2683, %v2681
  %v2704 = vpack.c.b16 %v2686, %v2684
  %v2705 = vpack.c.b16 %v2687, %v2685
  %2724 = vmatprep.subr.bf16.mxu0 %v2703
  %2725 = vmatpush1.bf16.msra.mxu0 %v2702
  %2726 = vmatprep.subr.bf16.mxu0 %v2701
  %2727 = vmatpush1.bf16.msra.mxu0 %v2700
  %2728 = vmatprep.subr.bf16.mxu0 %v2699
  %2729 = vmatpush1.bf16.msra.mxu0 %v2698
  %2730 = vmatprep.subr.bf16.mxu0 %v2697
  %2731 = vmatpush1.bf16.msra.mxu0 %v2696
  %2732 = vmatprep.subr.bf16.mxu0 %v2695
  %2733 = vmatpush1.bf16.msra.mxu0 %v2694
  %2734 = vmatprep.subr.bf16.mxu0 %v2693
  %2735 = vmatpush1.bf16.msra.mxu0 %v2692
  %2736 = vmatprep.subr.bf16.mxu0 %v2691
  %2737 = vmatpush1.bf16.msra.mxu0 %v2690
  %2738 = vmatprep.subr.bf16.mxu0 %v2689
  %2739 = vmatpush1.bf16.msra.mxu0 %v2688
  %2740 = vmatprep.subr.bf16.mxu0 0
  %2741 = vmatpush2.bf16.msra.mxu0 0
  %2742 = vmatprep.subr.bf16.mxu0 0
  %2743 = vmatpush2.bf16.msra.mxu0 0
  %2744 = vmatprep.subr.bf16.mxu0 0
  %2745 = vmatpush2.bf16.msra.mxu0 0
  %2746 = vmatprep.subr.bf16.mxu0 0
  %2747 = vmatpush2.bf16.msra.mxu0 0
  %2748 = vmatprep.subr.bf16.mxu0 0
  %2749 = vmatpush2.bf16.msra.mxu0 0
  %2750 = vmatprep.subr.bf16.mxu0 0
  %2751 = vmatpush2.bf16.msra.mxu0 0
  %2752 = vmatprep.subr.bf16.mxu0 0
  %2753 = vmatpush2.bf16.msra.mxu0 0
  %2754 = vmatprep.subr.bf16.mxu0 %v2705
  %2755 = vmatpush2.bf16.msra.mxu0 %v2704
  %2756 = vmatprep.mubr.bf16.mxu0 %v2515
  %2757 = vmatmul.mubr.bf16.gmra.mxu0 %v2502
  %v2758 = vpop.f32.mrf.mxu0
  %v2759 = vadd.f32 0.0, %v2758
  %v2760 = vpop.f32.mrf.mxu0
  %v2761 = vadd.f32 0.0, %v2760
  %v2762 = vpop.f32.mrf.mxu0
  %v2763 = vadd.f32 0.0, %v2762
  %v2764 = vpop.f32.mrf.mxu0
  %v2765 = vadd.f32 0.0, %v2764
  %2766 = vmatprep.mubr.bf16.mxu0 %v2518
  %2767 = vmatmul.mubr.bf16.gmra.mxu0 %v2504
  %v2768 = vpop.f32.mrf.mxu0
  %v2769 = vadd.f32 0.0, %v2768
  %v2770 = vpop.f32.mrf.mxu0
  %v2771 = vadd.f32 0.0, %v2770
  %v2772 = vpop.f32.mrf.mxu0
  %v2773 = vadd.f32 0.0, %v2772
  %v2774 = vpop.f32.mrf.mxu0
  %v2775 = vadd.f32 0.0, %v2774
  %2776 = vmatprep.mubr.bf16.mxu0 %v2521
  %2777 = vmatmul.mubr.bf16.gmra.mxu0 %v2506
  %v2778 = vpop.f32.mrf.mxu0
  %v2779 = vadd.f32 0.0, %v2778
  %v2780 = vpop.f32.mrf.mxu0
  %v2781 = vadd.f32 0.0, %v2780
  %v2782 = vpop.f32.mrf.mxu0
  %v2783 = vadd.f32 0.0, %v2782
  %v2784 = vpop.f32.mrf.mxu0
  %v2785 = vadd.f32 0.0, %v2784
  %2786 = vmatprep.mubr.bf16.mxu0 %v2524
  %2787 = vmatmul.mubr.bf16.gmra.mxu0 %v2508
  %v2788 = vpop.f32.mrf.mxu0
  %v2789 = vadd.f32 0.0, %v2788
  %v2790 = vpop.f32.mrf.mxu0
  %v2791 = vadd.f32 0.0, %v2790
  %v2792 = vpop.f32.mrf.mxu0
  %v2793 = vadd.f32 0.0, %v2792
  %v2794 = vpop.f32.mrf.mxu0
  %v2795 = vadd.f32 0.0, %v2794
  %2796 = vdwg.mxu0
  %v2797 = vadd.f32 %v2454, %v2759
  %v2798 = vadd.f32 %v2455, %v2761
  %v2799 = vadd.f32 %v2456, %v2763
  %v2800 = vadd.f32 %v2457, %v2765
  %v2801 = vadd.f32 %v2458, %v2769
  %v2802 = vadd.f32 %v2459, %v2771
  %v2803 = vadd.f32 %v2460, %v2773
  %v2804 = vadd.f32 %v2461, %v2775
  %v2805 = vadd.f32 %v2462, %v2779
  %v2806 = vadd.f32 %v2463, %v2781
  %v2807 = vadd.f32 %v2464, %v2783
  %v2808 = vadd.f32 %v2465, %v2785
  %v2809 = vadd.f32 %v2466, %v2789
  %v2810 = vadd.f32 %v2467, %v2791
  %v2811 = vadd.f32 %v2468, %v2793
  %v2812 = vadd.f32 %v2469, %v2795
  %v2813 = vld [vmem:[#allocation2 + $0x10] sm:$0xff]
  %v2814 = vld [vmem:[#allocation2 + $0x18] sm:$0xff]
  %v2815 = vld [vmem:[#allocation2 + $0x20] sm:$0xff]
  %v2816 = vld [vmem:[#allocation2 + $0x28] sm:$0xff]
  %v2817 = vld [vmem:[#allocation2 + $0x30] sm:$0xff]
  %v2818 = vld [vmem:[#allocation2 + $0x38] sm:$0xff]
  %v2819 = vld [vmem:[#allocation2 + $0x40] sm:$0xff]
  %v2820 = vld [vmem:[#allocation2 + $0x48] sm:$0xff]
  %v2829 = vunpack.c.l.b16 %v2813
  %v2830 = vunpack.c.h.b16 %v2813
  %v2831 = vunpack.c.l.b16 %v2814
  %v2832 = vunpack.c.h.b16 %v2814
  %v2833 = vunpack.c.l.b16 %v2815
  %v2834 = vunpack.c.h.b16 %v2815
  %v2835 = vunpack.c.l.b16 %v2816
  %v2836 = vunpack.c.h.b16 %v2816
  %v2837 = vunpack.c.l.b16 %v2817
  %v2838 = vunpack.c.h.b16 %v2817
  %v2839 = vunpack.c.l.b16 %v2818
  %v2840 = vunpack.c.h.b16 %v2818
  %v2841 = vunpack.c.l.b16 %v2819
  %v2842 = vunpack.c.h.b16 %v2819
  %v2843 = vunpack.c.l.b16 %v2820
  %v2844 = vunpack.c.h.b16 %v2820
  %v2845 = vpack.c.b16 %v2831, %v2829
  %v2846 = vpack.c.b16 %v2832, %v2830
  %v2847 = vpack.c.b16 %v2835, %v2833
  %v2848 = vpack.c.b16 %v2836, %v2834
  %v2849 = vpack.c.b16 %v2839, %v2837
  %v2850 = vpack.c.b16 %v2840, %v2838
  %v2851 = vpack.c.b16 %v2843, %v2841
  %v2852 = vpack.c.b16 %v2844, %v2842
  %v2858 = vsel %vm1773, %v2846, 0
  %v2861 = vsel %vm1773, %v2848, 0
  %v2864 = vsel %vm1773, %v2850, 0
  %v2867 = vsel %vm1773, %v2852, 0
  %2869 = vmatprep.subr.bf16.mxu0 %v2703
  %2870 = vmatpush1.bf16.msra.mxu0 %v2702
  %2871 = vmatprep.subr.bf16.mxu0 %v2701
  %2872 = vmatpush1.bf16.msra.mxu0 %v2700
  %2873 = vmatprep.subr.bf16.mxu0 %v2699
  %2874 = vmatpush1.bf16.msra.mxu0 %v2698
  %2875 = vmatprep.subr.bf16.mxu0 %v2697
  %2876 = vmatpush1.bf16.msra.mxu0 %v2696
  %2877 = vmatprep.subr.bf16.mxu0 %v2695
  %2878 = vmatpush1.bf16.msra.mxu0 %v2694
  %2879 = vmatprep.subr.bf16.mxu0 %v2693
  %2880 = vmatpush1.bf16.msra.mxu0 %v2692
  %2881 = vmatprep.subr.bf16.mxu0 %v2691
  %2882 = vmatpush1.bf16.msra.mxu0 %v2690
  %2883 = vmatprep.subr.bf16.mxu0 %v2689
  %2884 = vmatpush1.bf16.msra.mxu0 %v2688
  %2885 = vmatprep.subr.bf16.mxu0 0
  %2886 = vmatpush2.bf16.msra.mxu0 0
  %2887 = vmatprep.subr.bf16.mxu0 0
  %2888 = vmatpush2.bf16.msra.mxu0 0
  %2889 = vmatprep.subr.bf16.mxu0 0
  %2890 = vmatpush2.bf16.msra.mxu0 0
  %2891 = vmatprep.subr.bf16.mxu0 0
  %2892 = vmatpush2.bf16.msra.mxu0 0
  %2893 = vmatprep.subr.bf16.mxu0 0
  %2894 = vmatpush2.bf16.msra.mxu0 0
  %2895 = vmatprep.subr.bf16.mxu0 0
  %2896 = vmatpush2.bf16.msra.mxu0 0
  %2897 = vmatprep.subr.bf16.mxu0 0
  %2898 = vmatpush2.bf16.msra.mxu0 0
  %2899 = vmatprep.subr.bf16.mxu0 %v2705
  %2900 = vmatpush2.bf16.msra.mxu0 %v2704
  %2901 = vmatprep.mubr.bf16.mxu0 %v2858
  %2902 = vmatmul.mubr.bf16.gmra.mxu0 %v2845
  %v2903 = vpop.f32.mrf.mxu0
  %v2904 = vadd.f32 0.0, %v2903
  %v2905 = vpop.f32.mrf.mxu0
  %v2906 = vadd.f32 0.0, %v2905
  %v2907 = vpop.f32.mrf.mxu0
  %v2908 = vadd.f32 0.0, %v2907
  %v2909 = vpop.f32.mrf.mxu0
  %v2910 = vadd.f32 0.0, %v2909
  %2911 = vmatprep.mubr.bf16.mxu0 %v2861
  %2912 = vmatmul.mubr.bf16.gmra.mxu0 %v2847
  %v2913 = vpop.f32.mrf.mxu0
  %v2914 = vadd.f32 0.0, %v2913
  %v2915 = vpop.f32.mrf.mxu0
  %v2916 = vadd.f32 0.0, %v2915
  %v2917 = vpop.f32.mrf.mxu0
  %v2918 = vadd.f32 0.0, %v2917
  %v2919 = vpop.f32.mrf.mxu0
  %v2920 = vadd.f32 0.0, %v2919
  %2921 = vmatprep.mubr.bf16.mxu0 %v2864
  %2922 = vmatmul.mubr.bf16.gmra.mxu0 %v2849
  %v2923 = vpop.f32.mrf.mxu0
  %v2924 = vadd.f32 0.0, %v2923
  %v2925 = vpop.f32.mrf.mxu0
  %v2926 = vadd.f32 0.0, %v2925
  %v2927 = vpop.f32.mrf.mxu0
  %v2928 = vadd.f32 0.0, %v2927
  %v2929 = vpop.f32.mrf.mxu0
  %v2930 = vadd.f32 0.0, %v2929
  %2931 = vmatprep.mubr.bf16.mxu0 %v2867
  %2932 = vmatmul.mubr.bf16.gmra.mxu0 %v2851
  %v2933 = vpop.f32.mrf.mxu0
  %v2934 = vadd.f32 0.0, %v2933
  %v2935 = vpop.f32.mrf.mxu0
  %v2936 = vadd.f32 0.0, %v2935
  %v2937 = vpop.f32.mrf.mxu0
  %v2938 = vadd.f32 0.0, %v2937
  %v2939 = vpop.f32.mrf.mxu0
  %v2940 = vadd.f32 0.0, %v2939
  %2941 = vdwg.mxu0
  %v2942 = vadd.f32 %v2599, %v2904
  %v2943 = vadd.f32 %v2600, %v2906
  %v2944 = vadd.f32 %v2601, %v2908
  %v2945 = vadd.f32 %v2602, %v2910
  %v2946 = vadd.f32 %v2603, %v2914
  %v2947 = vadd.f32 %v2604, %v2916
  %v2948 = vadd.f32 %v2605, %v2918
  %v2949 = vadd.f32 %v2606, %v2920
  %v2950 = vadd.f32 %v2607, %v2924
  %v2951 = vadd.f32 %v2608, %v2926
  %v2952 = vadd.f32 %v2609, %v2928
  %v2953 = vadd.f32 %v2610, %v2930
  %v2954 = vadd.f32 %v2611, %v2934
  %v2955 = vadd.f32 %v2612, %v2936
  %v2956 = vadd.f32 %v2613, %v2938
  %v2957 = vadd.f32 %v2614, %v2940
  %s2958 = scalar_lea.vmem %s4, 576
  %v2959 = vld [vmem:[%s2958] sm:$0xff]
  %v2960 = vld [vmem:[%s2958 + $0x8] sm:$0xff]
  %v2961 = vld [vmem:[%s2958 + $0x10] sm:$0xff]
  %v2962 = vld [vmem:[%s2958 + $0x18] sm:$0xff]
  %v2963 = vld [vmem:[%s2958 + $0x20] sm:$0xff]
  %v2964 = vld [vmem:[%s2958 + $0x28] sm:$0xff]
  %v2965 = vld [vmem:[%s2958 + $0x30] sm:$0xff]
  %v2966 = vld [vmem:[%s2958 + $0x38] sm:$0xff]
  %v2967 = vld [vmem:[%s2958 + $0x40] sm:$0xff]
  %v2968 = vld [vmem:[%s2958 + $0x48] sm:$0xff]
  %v2969 = vld [vmem:[%s2958 + $0x50] sm:$0xff]
  %v2970 = vld [vmem:[%s2958 + $0x58] sm:$0xff]
  %v2971 = vld [vmem:[%s2958 + $0x60] sm:$0xff]
  %v2972 = vld [vmem:[%s2958 + $0x68] sm:$0xff]
  %v2973 = vld [vmem:[%s2958 + $0x70] sm:$0xff]
  %v2974 = vld [vmem:[%s2958 + $0x78] sm:$0xff]
  %v2975 = vld [vmem:[%s2958 + $0x80] sm:$0xff]
  %v2976 = vld [vmem:[%s2958 + $0x88] sm:$0xff]
  %v2995 = vunpack.c.l.b16 %v2959
  %v2996 = vunpack.c.h.b16 %v2959
  %v2997 = vunpack.c.l.b16 %v2960
  %v2998 = vunpack.c.h.b16 %v2960
  %v2999 = vunpack.c.l.b16 %v2961
  %v3000 = vunpack.c.h.b16 %v2961
  %v3001 = vunpack.c.l.b16 %v2962
  %v3002 = vunpack.c.h.b16 %v2962
  %v3003 = vunpack.c.l.b16 %v2963
  %v3004 = vunpack.c.h.b16 %v2963
  %v3005 = vunpack.c.l.b16 %v2964
  %v3006 = vunpack.c.h.b16 %v2964
  %v3007 = vunpack.c.l.b16 %v2965
  %v3008 = vunpack.c.h.b16 %v2965
  %v3009 = vunpack.c.l.b16 %v2966
  %v3010 = vunpack.c.h.b16 %v2966
  %v3011 = vunpack.c.l.b16 %v2967
  %v3012 = vunpack.c.h.b16 %v2967
  %v3013 = vunpack.c.l.b16 %v2968
  %v3014 = vunpack.c.h.b16 %v2968
  %v3015 = vunpack.c.l.b16 %v2969
  %v3016 = vunpack.c.h.b16 %v2969
  %v3017 = vunpack.c.l.b16 %v2970
  %v3018 = vunpack.c.h.b16 %v2970
  %v3019 = vunpack.c.l.b16 %v2971
  %v3020 = vunpack.c.h.b16 %v2971
  %v3021 = vunpack.c.l.b16 %v2972
  %v3022 = vunpack.c.h.b16 %v2972
  %v3023 = vunpack.c.l.b16 %v2973
  %v3024 = vunpack.c.h.b16 %v2973
  %v3025 = vunpack.c.l.b16 %v2974
  %v3026 = vunpack.c.h.b16 %v2974
  %v3027 = vunpack.c.l.b16 %v2975
  %v3028 = vunpack.c.h.b16 %v2975
  %v3029 = vunpack.c.l.b16 %v2976
  %v3030 = vunpack.c.h.b16 %v2976
  %v3031 = vpack.c.b16 %v2997, %v2995
  %v3032 = vpack.c.b16 %v2998, %v2996
  %v3033 = vpack.c.b16 %v3001, %v2999
  %v3034 = vpack.c.b16 %v3002, %v3000
  %v3035 = vpack.c.b16 %v3005, %v3003
  %v3036 = vpack.c.b16 %v3006, %v3004
  %v3037 = vpack.c.b16 %v3009, %v3007
  %v3038 = vpack.c.b16 %v3010, %v3008
  %v3039 = vpack.c.b16 %v3013, %v3011
  %v3040 = vpack.c.b16 %v3014, %v3012
  %v3041 = vpack.c.b16 %v3017, %v3015
  %v3042 = vpack.c.b16 %v3018, %v3016
  %v3043 = vpack.c.b16 %v3021, %v3019
  %v3044 = vpack.c.b16 %v3022, %v3020
  %v3045 = vpack.c.b16 %v3025, %v3023
  %v3046 = vpack.c.b16 %v3026, %v3024
  %v3047 = vpack.c.b16 %v3029, %v3027
  %v3048 = vpack.c.b16 %v3030, %v3028
  %3067 = vmatprep.subr.bf16.mxu0 %v3046
  %3068 = vmatpush1.bf16.msra.mxu0 %v3045
  %3069 = vmatprep.subr.bf16.mxu0 %v3044
  %3070 = vmatpush1.bf16.msra.mxu0 %v3043
  %3071 = vmatprep.subr.bf16.mxu0 %v3042
  %3072 = vmatpush1.bf16.msra.mxu0 %v3041
  %3073 = vmatprep.subr.bf16.mxu0 %v3040
  %3074 = vmatpush1.bf16.msra.mxu0 %v3039
  %3075 = vmatprep.subr.bf16.mxu0 %v3038
  %3076 = vmatpush1.bf16.msra.mxu0 %v3037
  %3077 = vmatprep.subr.bf16.mxu0 %v3036
  %3078 = vmatpush1.bf16.msra.mxu0 %v3035
  %3079 = vmatprep.subr.bf16.mxu0 %v3034
  %3080 = vmatpush1.bf16.msra.mxu0 %v3033
  %3081 = vmatprep.subr.bf16.mxu0 %v3032
  %3082 = vmatpush1.bf16.msra.mxu0 %v3031
  %3083 = vmatprep.subr.bf16.mxu0 0
  %3084 = vmatpush2.bf16.msra.mxu0 0
  %3085 = vmatprep.subr.bf16.mxu0 0
  %3086 = vmatpush2.bf16.msra.mxu0 0
  %3087 = vmatprep.subr.bf16.mxu0 0
  %3088 = vmatpush2.bf16.msra.mxu0 0
  %3089 = vmatprep.subr.bf16.mxu0 0
  %3090 = vmatpush2.bf16.msra.mxu0 0
  %3091 = vmatprep.subr.bf16.mxu0 0
  %3092 = vmatpush2.bf16.msra.mxu0 0
  %3093 = vmatprep.subr.bf16.mxu0 0
  %3094 = vmatpush2.bf16.msra.mxu0 0
  %3095 = vmatprep.subr.bf16.mxu0 0
  %3096 = vmatpush2.bf16.msra.mxu0 0
  %3097 = vmatprep.subr.bf16.mxu0 %v3048
  %3098 = vmatpush2.bf16.msra.mxu0 %v3047
  %3099 = vmatprep.mubr.bf16.mxu0 %v2858
  %3100 = vmatmul.mubr.bf16.gmra.mxu0 %v2845
  %v3101 = vpop.f32.mrf.mxu0
  %v3102 = vadd.f32 0.0, %v3101
  %v3103 = vpop.f32.mrf.mxu0
  %v3104 = vadd.f32 0.0, %v3103
  %v3105 = vpop.f32.mrf.mxu0
  %v3106 = vadd.f32 0.0, %v3105
  %v3107 = vpop.f32.mrf.mxu0
  %v3108 = vadd.f32 0.0, %v3107
  %3109 = vmatprep.mubr.bf16.mxu0 %v2861
  %3110 = vmatmul.mubr.bf16.gmra.mxu0 %v2847
  %v3111 = vpop.f32.mrf.mxu0
  %v3112 = vadd.f32 0.0, %v3111
  %v3113 = vpop.f32.mrf.mxu0
  %v3114 = vadd.f32 0.0, %v3113
  %v3115 = vpop.f32.mrf.mxu0
  %v3116 = vadd.f32 0.0, %v3115
  %v3117 = vpop.f32.mrf.mxu0
  %v3118 = vadd.f32 0.0, %v3117
  %3119 = vmatprep.mubr.bf16.mxu0 %v2864
  %3120 = vmatmul.mubr.bf16.gmra.mxu0 %v2849
  %v3121 = vpop.f32.mrf.mxu0
  %v3122 = vadd.f32 0.0, %v3121
  %v3123 = vpop.f32.mrf.mxu0
  %v3124 = vadd.f32 0.0, %v3123
  %v3125 = vpop.f32.mrf.mxu0
  %v3126 = vadd.f32 0.0, %v3125
  %v3127 = vpop.f32.mrf.mxu0
  %v3128 = vadd.f32 0.0, %v3127
  %3129 = vmatprep.mubr.bf16.mxu0 %v2867
  %3130 = vmatmul.mubr.bf16.gmra.mxu0 %v2851
  %v3131 = vpop.f32.mrf.mxu0
  %v3132 = vadd.f32 0.0, %v3131
  %v3133 = vpop.f32.mrf.mxu0
  %v3134 = vadd.f32 0.0, %v3133
  %v3135 = vpop.f32.mrf.mxu0
  %v3136 = vadd.f32 0.0, %v3135
  %v3137 = vpop.f32.mrf.mxu0
  %v3138 = vadd.f32 0.0, %v3137
  %3139 = vdwg.mxu0
  %v3140 = vadd.f32 %v2797, %v3102
  %v3141 = vadd.f32 %v2798, %v3104
  %v3142 = vadd.f32 %v2799, %v3106
  %v3143 = vadd.f32 %v2800, %v3108
  %v3144 = vadd.f32 %v2801, %v3112
  %v3145 = vadd.f32 %v2802, %v3114
  %v3146 = vadd.f32 %v2803, %v3116
  %v3147 = vadd.f32 %v2804, %v3118
  %v3148 = vadd.f32 %v2805, %v3122
  %v3149 = vadd.f32 %v2806, %v3124
  %v3150 = vadd.f32 %v2807, %v3126
  %v3151 = vadd.f32 %v2808, %v3128
  %v3152 = vadd.f32 %v2809, %v3132
  %v3153 = vadd.f32 %v2810, %v3134
  %v3154 = vadd.f32 %v2811, %v3136
  %v3155 = vadd.f32 %v2812, %v3138
  %v3156 = vld [vmem:[#allocation3 + $0x10] sm:$0xff]
  %v3157 = vld [vmem:[#allocation3 + $0x18] sm:$0xff]
  %v3158 = vld [vmem:[#allocation3 + $0x20] sm:$0xff]
  %v3159 = vld [vmem:[#allocation3 + $0x28] sm:$0xff]
  %v3160 = vld [vmem:[#allocation3 + $0x30] sm:$0xff]
  %v3161 = vld [vmem:[#allocation3 + $0x38] sm:$0xff]
  %v3162 = vld [vmem:[#allocation3 + $0x40] sm:$0xff]
  %v3163 = vld [vmem:[#allocation3 + $0x48] sm:$0xff]
  %v3172 = vunpack.c.l.b16 %v3156
  %v3173 = vunpack.c.h.b16 %v3156
  %v3174 = vunpack.c.l.b16 %v3157
  %v3175 = vunpack.c.h.b16 %v3157
  %v3176 = vunpack.c.l.b16 %v3158
  %v3177 = vunpack.c.h.b16 %v3158
  %v3178 = vunpack.c.l.b16 %v3159
  %v3179 = vunpack.c.h.b16 %v3159
  %v3180 = vunpack.c.l.b16 %v3160
  %v3181 = vunpack.c.h.b16 %v3160
  %v3182 = vunpack.c.l.b16 %v3161
  %v3183 = vunpack.c.h.b16 %v3161
  %v3184 = vunpack.c.l.b16 %v3162
  %v3185 = vunpack.c.h.b16 %v3162
  %v3186 = vunpack.c.l.b16 %v3163
  %v3187 = vunpack.c.h.b16 %v3163
  %v3188 = vpack.c.b16 %v3174, %v3172
  %v3189 = vpack.c.b16 %v3175, %v3173
  %v3190 = vpack.c.b16 %v3178, %v3176
  %v3191 = vpack.c.b16 %v3179, %v3177
  %v3192 = vpack.c.b16 %v3182, %v3180
  %v3193 = vpack.c.b16 %v3183, %v3181
  %v3194 = vpack.c.b16 %v3186, %v3184
  %v3195 = vpack.c.b16 %v3187, %v3185
  %v3201 = vsel %vm1773, %v3189, 0
  %v3204 = vsel %vm1773, %v3191, 0
  %v3207 = vsel %vm1773, %v3193, 0
  %v3210 = vsel %vm1773, %v3195, 0
  %3212 = vmatprep.subr.bf16.mxu0 %v3046
  %3213 = vmatpush1.bf16.msra.mxu0 %v3045
  %3214 = vmatprep.subr.bf16.mxu0 %v3044
  %3215 = vmatpush1.bf16.msra.mxu0 %v3043
  %3216 = vmatprep.subr.bf16.mxu0 %v3042
  %3217 = vmatpush1.bf16.msra.mxu0 %v3041
  %3218 = vmatprep.subr.bf16.mxu0 %v3040
  %3219 = vmatpush1.bf16.msra.mxu0 %v3039
  %3220 = vmatprep.subr.bf16.mxu0 %v3038
  %3221 = vmatpush1.bf16.msra.mxu0 %v3037
  %3222 = vmatprep.subr.bf16.mxu0 %v3036
  %3223 = vmatpush1.bf16.msra.mxu0 %v3035
  %3224 = vmatprep.subr.bf16.mxu0 %v3034
  %3225 = vmatpush1.bf16.msra.mxu0 %v3033
  %3226 = vmatprep.subr.bf16.mxu0 %v3032
  %3227 = vmatpush1.bf16.msra.mxu0 %v3031
  %3228 = vmatprep.subr.bf16.mxu0 0
  %3229 = vmatpush2.bf16.msra.mxu0 0
  %3230 = vmatprep.subr.bf16.mxu0 0
  %3231 = vmatpush2.bf16.msra.mxu0 0
  %3232 = vmatprep.subr.bf16.mxu0 0
  %3233 = vmatpush2.bf16.msra.mxu0 0
  %3234 = vmatprep.subr.bf16.mxu0 0
  %3235 = vmatpush2.bf16.msra.mxu0 0
  %3236 = vmatprep.subr.bf16.mxu0 0
  %3237 = vmatpush2.bf16.msra.mxu0 0
  %3238 = vmatprep.subr.bf16.mxu0 0
  %3239 = vmatpush2.bf16.msra.mxu0 0
  %3240 = vmatprep.subr.bf16.mxu0 0
  %3241 = vmatpush2.bf16.msra.mxu0 0
  %3242 = vmatprep.subr.bf16.mxu0 %v3048
  %3243 = vmatpush2.bf16.msra.mxu0 %v3047
  %3244 = vmatprep.mubr.bf16.mxu0 %v3201
  %3245 = vmatmul.mubr.bf16.gmra.mxu0 %v3188
  %v3246 = vpop.f32.mrf.mxu0
  %v3247 = vadd.f32 0.0, %v3246
  %v3248 = vpop.f32.mrf.mxu0
  %v3249 = vadd.f32 0.0, %v3248
  %v3250 = vpop.f32.mrf.mxu0
  %v3251 = vadd.f32 0.0, %v3250
  %v3252 = vpop.f32.mrf.mxu0
  %v3253 = vadd.f32 0.0, %v3252
  %3254 = vmatprep.mubr.bf16.mxu0 %v3204
  %3255 = vmatmul.mubr.bf16.gmra.mxu0 %v3190
  %v3256 = vpop.f32.mrf.mxu0
  %v3257 = vadd.f32 0.0, %v3256
  %v3258 = vpop.f32.mrf.mxu0
  %v3259 = vadd.f32 0.0, %v3258
  %v3260 = vpop.f32.mrf.mxu0
  %v3261 = vadd.f32 0.0, %v3260
  %v3262 = vpop.f32.mrf.mxu0
  %v3263 = vadd.f32 0.0, %v3262
  %3264 = vmatprep.mubr.bf16.mxu0 %v3207
  %3265 = vmatmul.mubr.bf16.gmra.mxu0 %v3192
  %v3266 = vpop.f32.mrf.mxu0
  %v3267 = vadd.f32 0.0, %v3266
  %v3268 = vpop.f32.mrf.mxu0
  %v3269 = vadd.f32 0.0, %v3268
  %v3270 = vpop.f32.mrf.mxu0
  %v3271 = vadd.f32 0.0, %v3270
  %v3272 = vpop.f32.mrf.mxu0
  %v3273 = vadd.f32 0.0, %v3272
  %3274 = vmatprep.mubr.bf16.mxu0 %v3210
  %3275 = vmatmul.mubr.bf16.gmra.mxu0 %v3194
  %v3276 = vpop.f32.mrf.mxu0
  %v3277 = vadd.f32 0.0, %v3276
  %v3278 = vpop.f32.mrf.mxu0
  %v3279 = vadd.f32 0.0, %v3278
  %v3280 = vpop.f32.mrf.mxu0
  %v3281 = vadd.f32 0.0, %v3280
  %v3282 = vpop.f32.mrf.mxu0
  %v3283 = vadd.f32 0.0, %v3282
  %3284 = vdwg.mxu0
  %v3285 = vadd.f32 %v2942, %v3247
  %v3286 = vadd.f32 %v2943, %v3249
  %v3287 = vadd.f32 %v2944, %v3251
  %v3288 = vadd.f32 %v2945, %v3253
  %v3289 = vadd.f32 %v2946, %v3257
  %v3290 = vadd.f32 %v2947, %v3259
  %v3291 = vadd.f32 %v2948, %v3261
  %v3292 = vadd.f32 %v2949, %v3263
  %v3293 = vadd.f32 %v2950, %v3267
  %v3294 = vadd.f32 %v2951, %v3269
  %v3295 = vadd.f32 %v2952, %v3271
  %v3296 = vadd.f32 %v2953, %v3273
  %v3297 = vadd.f32 %v2954, %v3277
  %v3298 = vadd.f32 %v2955, %v3279
  %v3299 = vadd.f32 %v2956, %v3281
  %v3300 = vadd.f32 %v2957, %v3283
  %v3301 = vmax.f32 %v3140, %v3285
  %v3302 = vmax.f32 %v3141, %v3286
  %v3303 = vmax.f32 %v3142, %v3287
  %v3304 = vmax.f32 %v3143, %v3288
  %v3305 = vmax.f32 %v3144, %v3289
  %v3306 = vmax.f32 %v3145, %v3290
  %v3307 = vmax.f32 %v3146, %v3291
  %v3308 = vmax.f32 %v3147, %v3292
  %v3309 = vmax.f32 %v3148, %v3293
  %v3310 = vmax.f32 %v3149, %v3294
  %v3311 = vmax.f32 %v3150, %v3295
  %v3312 = vmax.f32 %v3151, %v3296
  %v3313 = vmax.f32 %v3152, %v3297
  %v3314 = vmax.f32 %v3153, %v3298
  %v3315 = vmax.f32 %v3154, %v3299
  %v3316 = vmax.f32 %v3155, %v3300
  %v3317 = vld [vmem:[%s5] sm:$0x3]
  %v3319 = vlaneseq
  %v3320 = vshrl.u32 %v3319, 7
  %v3321 = vsub.s32 0, %v3320
  %v3322 = vrot.slane %v3317, %v3321
  %v3323 = vlaneseq
  %v3324 = vshrl.u32 %v3323, 7
  %v3325 = vsub.s32 1, %v3324
  %v3326 = vrot.slane %v3317, %v3325
  %v3329 = vadd.f32 %v3301, %v3322
  %v3330 = vadd.f32 %v3302, %v3326
  %v3331 = vadd.f32 %v3303, %v3322
  %v3332 = vadd.f32 %v3304, %v3326
  %v3333 = vadd.f32 %v3305, %v3322
  %v3334 = vadd.f32 %v3306, %v3326
  %v3335 = vadd.f32 %v3307, %v3322
  %v3336 = vadd.f32 %v3308, %v3326
  %v3337 = vadd.f32 %v3309, %v3322
  %v3338 = vadd.f32 %v3310, %v3326
  %v3339 = vadd.f32 %v3311, %v3322
  %v3340 = vadd.f32 %v3312, %v3326
  %v3341 = vadd.f32 %v3313, %v3322
  %v3342 = vadd.f32 %v3314, %v3326
  %v3343 = vadd.f32 %v3315, %v3322
  %v3344 = vadd.f32 %v3316, %v3326
  %v3345 = vmax.f32 %v3329, 0.0
  %v3346 = vmax.f32 %v3330, 0.0
  %v3347 = vmax.f32 %v3331, 0.0
  %v3348 = vmax.f32 %v3332, 0.0
  %v3349 = vmax.f32 %v3333, 0.0
  %v3350 = vmax.f32 %v3334, 0.0
  %v3351 = vmax.f32 %v3335, 0.0
  %v3352 = vmax.f32 %v3336, 0.0
  %v3353 = vmax.f32 %v3337, 0.0
  %v3354 = vmax.f32 %v3338, 0.0
  %v3355 = vmax.f32 %v3339, 0.0
  %v3356 = vmax.f32 %v3340, 0.0
  %v3357 = vmax.f32 %v3341, 0.0
  %v3358 = vmax.f32 %v3342, 0.0
  %v3359 = vmax.f32 %v3343, 0.0
  %v3360 = vmax.f32 %v3344, 0.0
  %v3361 = vpack.c.bf16 %v3347, %v3345
  %v3362 = vpack.c.bf16 %v3348, %v3346
  %v3363 = vpack.c.bf16 %v3351, %v3349
  %v3364 = vpack.c.bf16 %v3352, %v3350
  %v3365 = vpack.c.bf16 %v3355, %v3353
  %v3366 = vpack.c.bf16 %v3356, %v3354
  %v3367 = vpack.c.bf16 %v3359, %v3357
  %v3368 = vpack.c.bf16 %v3360, %v3358
  %v3369 = vld [vmem:[%s6] sm:$0xf]
  %v3370 = vld [vmem:[%s6 + $0x4] sm:$0xf]
  %v3371 = vld [vmem:[%s6 + $0x8] sm:$0xf]
  %v3372 = vld [vmem:[%s6 + $0xc] sm:$0xf]
  %v3373 = vld [vmem:[%s6 + $0x10] sm:$0xf]
  %v3374 = vld [vmem:[%s6 + $0x14] sm:$0xf]
  %v3375 = vld [vmem:[%s6 + $0x18] sm:$0xf]
  %v3376 = vld [vmem:[%s6 + $0x1c] sm:$0xf]
  %v3377 = vld [vmem:[%s6 + $0x20] sm:$0xf]
  %v3378 = vld [vmem:[%s6 + $0x24] sm:$0xf]
  %v3379 = vld [vmem:[%s6 + $0x28] sm:$0xf]
  %v3380 = vld [vmem:[%s6 + $0x2c] sm:$0xf]
  %v3381 = vld [vmem:[%s6 + $0x30] sm:$0xf]
  %v3382 = vld [vmem:[%s6 + $0x34] sm:$0xf]
  %v3383 = vld [vmem:[%s6 + $0x38] sm:$0xf]
  %v3384 = vld [vmem:[%s6 + $0x3c] sm:$0xf]
  %v3385 = vld [vmem:[%s6 + $0x40] sm:$0xf]
  %v3386 = vld [vmem:[%s6 + $0x44] sm:$0xf]
  %v3387 = vld [vmem:[%s6 + $0x48] sm:$0xf]
  %v3388 = vld [vmem:[%s6 + $0x4c] sm:$0xf]
  %v3389 = vld [vmem:[%s6 + $0x50] sm:$0xf]
  %v3390 = vld [vmem:[%s6 + $0x54] sm:$0xf]
  %v3391 = vld [vmem:[%s6 + $0x58] sm:$0xf]
  %v3392 = vld [vmem:[%s6 + $0x5c] sm:$0xf]
  %v3393 = vld [vmem:[%s6 + $0x60] sm:$0xf]
  %v3394 = vld [vmem:[%s6 + $0x64] sm:$0xf]
  %v3395 = vld [vmem:[%s6 + $0x68] sm:$0xf]
  %v3396 = vld [vmem:[%s6 + $0x6c] sm:$0xf]
  %v3425 = vunpack.c.l.b16 %v3369
  %v3426 = vunpack.c.l.b16 %v3370
  %v3427 = vunpack.c.l.b16 %v3371
  %v3428 = vunpack.c.l.b16 %v3372
  %v3429 = vunpack.c.l.b16 %v3373
  %v3430 = vunpack.c.l.b16 %v3374
  %v3431 = vunpack.c.l.b16 %v3375
  %v3432 = vunpack.c.l.b16 %v3376
  %v3433 = vunpack.c.l.b16 %v3377
  %v3434 = vunpack.c.l.b16 %v3378
  %v3435 = vunpack.c.l.b16 %v3379
  %v3436 = vunpack.c.l.b16 %v3380
  %v3437 = vunpack.c.l.b16 %v3381
  %v3438 = vunpack.c.l.b16 %v3382
  %v3439 = vunpack.c.l.b16 %v3383
  %v3440 = vunpack.c.l.b16 %v3384
  %v3441 = vunpack.c.l.b16 %v3385
  %v3442 = vunpack.c.l.b16 %v3386
  %v3443 = vunpack.c.l.b16 %v3387
  %v3444 = vunpack.c.l.b16 %v3388
  %v3445 = vunpack.c.l.b16 %v3389
  %v3446 = vunpack.c.l.b16 %v3390
  %v3447 = vunpack.c.l.b16 %v3391
  %v3448 = vunpack.c.l.b16 %v3392
  %v3449 = vunpack.c.l.b16 %v3393
  %v3450 = vunpack.c.l.b16 %v3394
  %v3451 = vunpack.c.l.b16 %v3395
  %v3452 = vunpack.c.l.b16 %v3396
  %v3453 = vpack.c.b16 %v3426, %v3425
  %v3454 = vpack.c.b16 %v3428, %v3427
  %v3455 = vpack.c.b16 %v3430, %v3429
  %v3456 = vpack.c.b16 %v3432, %v3431
  %v3457 = vpack.c.b16 %v3434, %v3433
  %v3458 = vpack.c.b16 %v3436, %v3435
  %v3459 = vpack.c.b16 %v3438, %v3437
  %v3460 = vpack.c.b16 %v3440, %v3439
  %v3461 = vpack.c.b16 %v3442, %v3441
  %v3462 = vpack.c.b16 %v3444, %v3443
  %v3463 = vpack.c.b16 %v3446, %v3445
  %v3464 = vpack.c.b16 %v3448, %v3447
  %v3465 = vpack.c.b16 %v3450, %v3449
  %v3466 = vpack.c.b16 %v3452, %v3451
  %v3482 = vsel %vm957, %v3362, 0
  %v3485 = vsel %vm957, %v3364, 0
  %v3488 = vsel %vm957, %v3366, 0
  %v3491 = vsel %vm957, %v3368, 0
  %3493 = vmatprep.subr.bf16.mxu0 0
  %3494 = vmatpush1.bf16.msra.mxu0 %v3460
  %3495 = vmatprep.subr.bf16.mxu0 0
  %3496 = vmatpush1.bf16.msra.mxu0 %v3459
  %3497 = vmatprep.subr.bf16.mxu0 0
  %3498 = vmatpush1.bf16.msra.mxu0 %v3458
  %3499 = vmatprep.subr.bf16.mxu0 0
  %3500 = vmatpush1.bf16.msra.mxu0 %v3457
  %3501 = vmatprep.subr.bf16.mxu0 0
  %3502 = vmatpush1.bf16.msra.mxu0 %v3456
  %3503 = vmatprep.subr.bf16.mxu0 0
  %3504 = vmatpush1.bf16.msra.mxu0 %v3455
  %3505 = vmatprep.subr.bf16.mxu0 0
  %3506 = vmatpush1.bf16.msra.mxu0 %v3454
  %3507 = vmatprep.subr.bf16.mxu0 0
  %3508 = vmatpush1.bf16.msra.mxu0 %v3453
  %3509 = vmatprep.subr.bf16.mxu0 0
  %3510 = vmatpush2.bf16.msra.mxu0 0
  %3511 = vmatprep.subr.bf16.mxu0 0
  %3512 = vmatpush2.bf16.msra.mxu0 0
  %3513 = vmatprep.subr.bf16.mxu0 0
  %3514 = vmatpush2.bf16.msra.mxu0 %v3466
  %3515 = vmatprep.subr.bf16.mxu0 0
  %3516 = vmatpush2.bf16.msra.mxu0 %v3465
  %3517 = vmatprep.subr.bf16.mxu0 0
  %3518 = vmatpush2.bf16.msra.mxu0 %v3464
  %3519 = vmatprep.subr.bf16.mxu0 0
  %3520 = vmatpush2.bf16.msra.mxu0 %v3463
  %3521 = vmatprep.subr.bf16.mxu0 0
  %3522 = vmatpush2.bf16.msra.mxu0 %v3462
  %3523 = vmatprep.subr.bf16.mxu0 0
  %3524 = vmatpush2.bf16.msra.mxu0 %v3461
  %3525 = vmatprep.mubr.bf16.mxu0 %v3482
  %3526 = vmatmul.mubr.bf16.gmra.mxu0 %v3361
  %v3527 = vpop.f32.mrf.mxu0
  %v3528 = vadd.f32 0.0, %v3527
  %v3529 = vpop.f32.mrf.mxu0
  %v3530 = vpop.f32.mrf.mxu0
  %v3531 = vadd.f32 0.0, %v3530
  %v3532 = vpop.f32.mrf.mxu0
  %3533 = vmatprep.mubr.bf16.mxu0 %v3485
  %3534 = vmatmul.mubr.bf16.gmra.mxu0 %v3363
  %v3535 = vpop.f32.mrf.mxu0
  %v3536 = vadd.f32 0.0, %v3535
  %v3537 = vpop.f32.mrf.mxu0
  %v3538 = vpop.f32.mrf.mxu0
  %v3539 = vadd.f32 0.0, %v3538
  %v3540 = vpop.f32.mrf.mxu0
  %3541 = vmatprep.mubr.bf16.mxu0 %v3488
  %3542 = vmatmul.mubr.bf16.gmra.mxu0 %v3365
  %v3543 = vpop.f32.mrf.mxu0
  %v3544 = vadd.f32 0.0, %v3543
  %v3545 = vpop.f32.mrf.mxu0
  %v3546 = vpop.f32.mrf.mxu0
  %v3547 = vadd.f32 0.0, %v3546
  %v3548 = vpop.f32.mrf.mxu0
  %3549 = vmatprep.mubr.bf16.mxu0 %v3491
  %3550 = vmatmul.mubr.bf16.gmra.mxu0 %v3367
  %v3551 = vpop.f32.mrf.mxu0
  %v3552 = vadd.f32 0.0, %v3551
  %v3553 = vpop.f32.mrf.mxu0
  %v3554 = vpop.f32.mrf.mxu0
  %v3555 = vadd.f32 0.0, %v3554
  %v3556 = vpop.f32.mrf.mxu0
  %3557 = vdwg.mxu0
  %s3558 = scalar_lea.vmem %s6, 112
  %v3559 = vld [vmem:[%s3558] sm:$0xf]
  %v3560 = vld [vmem:[%s3558 + $0x4] sm:$0xf]
  %v3561 = vld [vmem:[%s3558 + $0x8] sm:$0xf]
  %v3562 = vld [vmem:[%s3558 + $0xc] sm:$0xf]
  %v3563 = vld [vmem:[%s3558 + $0x10] sm:$0xf]
  %v3564 = vld [vmem:[%s3558 + $0x14] sm:$0xf]
  %v3565 = vld [vmem:[%s3558 + $0x18] sm:$0xf]
  %v3566 = vld [vmem:[%s3558 + $0x1c] sm:$0xf]
  %v3567 = vld [vmem:[%s3558 + $0x20] sm:$0xf]
  %v3568 = vld [vmem:[%s3558 + $0x24] sm:$0xf]
  %v3569 = vld [vmem:[%s3558 + $0x28] sm:$0xf]
  %v3570 = vld [vmem:[%s3558 + $0x2c] sm:$0xf]
  %v3571 = vld [vmem:[%s3558 + $0x30] sm:$0xf]
  %v3572 = vld [vmem:[%s3558 + $0x34] sm:$0xf]
  %v3573 = vld [vmem:[%s3558 + $0x38] sm:$0xf]
  %v3574 = vld [vmem:[%s3558 + $0x3c] sm:$0xf]
  %v3575 = vld [vmem:[%s3558 + $0x40] sm:$0xf]
  %v3576 = vld [vmem:[%s3558 + $0x44] sm:$0xf]
  %v3577 = vld [vmem:[%s3558 + $0x48] sm:$0xf]
  %v3578 = vld [vmem:[%s3558 + $0x4c] sm:$0xf]
  %v3579 = vld [vmem:[%s3558 + $0x50] sm:$0xf]
  %v3580 = vld [vmem:[%s3558 + $0x54] sm:$0xf]
  %v3581 = vld [vmem:[%s3558 + $0x58] sm:$0xf]
  %v3582 = vld [vmem:[%s3558 + $0x5c] sm:$0xf]
  %v3583 = vld [vmem:[%s3558 + $0x60] sm:$0xf]
  %v3584 = vld [vmem:[%s3558 + $0x64] sm:$0xf]
  %v3585 = vld [vmem:[%s3558 + $0x68] sm:$0xf]
  %v3586 = vld [vmem:[%s3558 + $0x6c] sm:$0xf]
  %v3615 = vunpack.c.l.b16 %v3559
  %v3616 = vunpack.c.l.b16 %v3560
  %v3617 = vunpack.c.l.b16 %v3561
  %v3618 = vunpack.c.l.b16 %v3562
  %v3619 = vunpack.c.l.b16 %v3563
  %v3620 = vunpack.c.l.b16 %v3564
  %v3621 = vunpack.c.l.b16 %v3565
  %v3622 = vunpack.c.l.b16 %v3566
  %v3623 = vunpack.c.l.b16 %v3567
  %v3624 = vunpack.c.l.b16 %v3568
  %v3625 = vunpack.c.l.b16 %v3569
  %v3626 = vunpack.c.l.b16 %v3570
  %v3627 = vunpack.c.l.b16 %v3571
  %v3628 = vunpack.c.l.b16 %v3572
  %v3629 = vunpack.c.l.b16 %v3573
  %v3630 = vunpack.c.l.b16 %v3574
  %v3631 = vunpack.c.l.b16 %v3575
  %v3632 = vunpack.c.l.b16 %v3576
  %v3633 = vunpack.c.l.b16 %v3577
  %v3634 = vunpack.c.l.b16 %v3578
  %v3635 = vunpack.c.l.b16 %v3579
  %v3636 = vunpack.c.l.b16 %v3580
  %v3637 = vunpack.c.l.b16 %v3581
  %v3638 = vunpack.c.l.b16 %v3582
  %v3639 = vunpack.c.l.b16 %v3583
  %v3640 = vunpack.c.l.b16 %v3584
  %v3641 = vunpack.c.l.b16 %v3585
  %v3642 = vunpack.c.l.b16 %v3586
  %v3643 = vpack.c.b16 %v3616, %v3615
  %v3644 = vpack.c.b16 %v3618, %v3617
  %v3645 = vpack.c.b16 %v3620, %v3619
  %v3646 = vpack.c.b16 %v3622, %v3621
  %v3647 = vpack.c.b16 %v3624, %v3623
  %v3648 = vpack.c.b16 %v3626, %v3625
  %v3649 = vpack.c.b16 %v3628, %v3627
  %v3650 = vpack.c.b16 %v3630, %v3629
  %v3651 = vpack.c.b16 %v3632, %v3631
  %v3652 = vpack.c.b16 %v3634, %v3633
  %v3653 = vpack.c.b16 %v3636, %v3635
  %v3654 = vpack.c.b16 %v3638, %v3637
  %v3655 = vpack.c.b16 %v3640, %v3639
  %v3656 = vpack.c.b16 %v3642, %v3641
  %3671 = vmatprep.subr.bf16.mxu0 0
  %3672 = vmatpush1.bf16.msra.mxu0 %v3650
  %3673 = vmatprep.subr.bf16.mxu0 0
  %3674 = vmatpush1.bf16.msra.mxu0 %v3649
  %3675 = vmatprep.subr.bf16.mxu0 0
  %3676 = vmatpush1.bf16.msra.mxu0 %v3648
  %3677 = vmatprep.subr.bf16.mxu0 0
  %3678 = vmatpush1.bf16.msra.mxu0 %v3647
  %3679 = vmatprep.subr.bf16.mxu0 0
  %3680 = vmatpush1.bf16.msra.mxu0 %v3646
  %3681 = vmatprep.subr.bf16.mxu0 0
  %3682 = vmatpush1.bf16.msra.mxu0 %v3645
  %3683 = vmatprep.subr.bf16.mxu0 0
  %3684 = vmatpush1.bf16.msra.mxu0 %v3644
  %3685 = vmatprep.subr.bf16.mxu0 0
  %3686 = vmatpush1.bf16.msra.mxu0 %v3643
  %3687 = vmatprep.subr.bf16.mxu0 0
  %3688 = vmatpush2.bf16.msra.mxu0 0
  %3689 = vmatprep.subr.bf16.mxu0 0
  %3690 = vmatpush2.bf16.msra.mxu0 0
  %3691 = vmatprep.subr.bf16.mxu0 0
  %3692 = vmatpush2.bf16.msra.mxu0 %v3656
  %3693 = vmatprep.subr.bf16.mxu0 0
  %3694 = vmatpush2.bf16.msra.mxu0 %v3655
  %3695 = vmatprep.subr.bf16.mxu0 0
  %3696 = vmatpush2.bf16.msra.mxu0 %v3654
  %3697 = vmatprep.subr.bf16.mxu0 0
  %3698 = vmatpush2.bf16.msra.mxu0 %v3653
  %3699 = vmatprep.subr.bf16.mxu0 0
  %3700 = vmatpush2.bf16.msra.mxu0 %v3652
  %3701 = vmatprep.subr.bf16.mxu0 0
  %3702 = vmatpush2.bf16.msra.mxu0 %v3651
  %3703 = vmatprep.mubr.bf16.mxu0 %v3482
  %3704 = vmatmul.mubr.bf16.gmra.mxu0 %v3361
  %v3705 = vpop.f32.mrf.mxu0
  %v3706 = vadd.f32 0.0, %v3705
  %v3707 = vpop.f32.mrf.mxu0
  %v3708 = vpop.f32.mrf.mxu0
  %v3709 = vadd.f32 0.0, %v3708
  %v3710 = vpop.f32.mrf.mxu0
  %3711 = vmatprep.mubr.bf16.mxu0 %v3485
  %3712 = vmatmul.mubr.bf16.gmra.mxu0 %v3363
  %v3713 = vpop.f32.mrf.mxu0
  %v3714 = vadd.f32 0.0, %v3713
  %v3715 = vpop.f32.mrf.mxu0
  %v3716 = vpop.f32.mrf.mxu0
  %v3717 = vadd.f32 0.0, %v3716
  %v3718 = vpop.f32.mrf.mxu0
  %3719 = vmatprep.mubr.bf16.mxu0 %v3488
  %3720 = vmatmul.mubr.bf16.gmra.mxu0 %v3365
  %v3721 = vpop.f32.mrf.mxu0
  %v3722 = vadd.f32 0.0, %v3721
  %v3723 = vpop.f32.mrf.mxu0
  %v3724 = vpop.f32.mrf.mxu0
  %v3725 = vadd.f32 0.0, %v3724
  %v3726 = vpop.f32.mrf.mxu0
  %3727 = vmatprep.mubr.bf16.mxu0 %v3491
  %3728 = vmatmul.mubr.bf16.gmra.mxu0 %v3367
  %v3729 = vpop.f32.mrf.mxu0
  %v3730 = vadd.f32 0.0, %v3729
  %v3731 = vpop.f32.mrf.mxu0
  %v3732 = vpop.f32.mrf.mxu0
  %v3733 = vadd.f32 0.0, %v3732
  %v3734 = vpop.f32.mrf.mxu0
  %3735 = vdwg.mxu0
  %v3736 = vmax.f32 %v3528, %v3706
  %v3737 = vmax.f32 %v3531, %v3709
  %v3738 = vmax.f32 %v3536, %v3714
  %v3739 = vmax.f32 %v3539, %v3717
  %v3740 = vmax.f32 %v3544, %v3722
  %v3741 = vmax.f32 %v3547, %v3725
  %v3742 = vmax.f32 %v3552, %v3730
  %v3743 = vmax.f32 %v3555, %v3733
  %v3744 = vpack.c.bf16 %v3737, %v3736
  %v3745 = vpack.c.bf16 %v3739, %v3738
  %v3746 = vpack.c.bf16 %v3741, %v3740
  %v3747 = vpack.c.bf16 %v3743, %v3742
  %v3749 = vrot.slane %v3744, 4
  %3750 = vrot.lane.b32.xlu0 %v3749, 112
  %v3751 = vpop.permute.xlu0 %3750
  %3753 = vrot.lane.b32.xlu0 %v3745, 96
  %v3754 = vpop.permute.xlu0 %3753
  %v3755 = vrot.slane %v3745, 4
  %3756 = vrot.lane.b32.xlu0 %v3755, 80
  %v3757 = vpop.permute.xlu0 %3756
  %3759 = vrot.lane.b32.xlu0 %v3746, 64
  %v3760 = vpop.permute.xlu0 %3759
  %v3761 = vrot.slane %v3746, 4
  %3762 = vrot.lane.b32.xlu0 %v3761, 48
  %v3763 = vpop.permute.xlu0 %3762
  %3765 = vrot.lane.b32.xlu0 %v3747, 32
  %v3766 = vpop.permute.xlu0 %3765
  %vm3767 = vcmask 916480
  %v3770 = vsel %vm3767, %v3744, %v3751
  %v3773 = vsel %vm957, %v3751, %v3754
  %vm3775 = vcmask 654336
  %v3777 = vsel %vm3775, %v3754, %v3757
  %vm3779 = vcmask 523264
  %v3781 = vsel %vm3779, %v3757, %v3760
  %vm3783 = vcmask 392192
  %v3785 = vsel %vm3783, %v3760, %v3763
  %v3788 = vsel %vm197, %v3763, %v3766
  %v3790 = vld [vmem:[%s7] sm:$0xf]
  %v3791 = vld [vmem:[%s7 + $0x4] sm:$0xf]
  %v3792 = vld [vmem:[%s7 + $0x8] sm:$0xf]
  %v3793 = vld [vmem:[%s7 + $0xc] sm:$0xf]
  %v3794 = vld [vmem:[%s7 + $0x10] sm:$0xf]
  %v3795 = vld [vmem:[%s7 + $0x14] sm:$0xf]
  %v3796 = vld [vmem:[%s7 + $0x18] sm:$0xf]
  %v3797 = vld [vmem:[%s7 + $0x1c] sm:$0xf]
  %v3798 = vld [vmem:[%s7 + $0x20] sm:$0xf]
  %v3799 = vld [vmem:[%s7 + $0x24] sm:$0xf]
  %v3800 = vld [vmem:[%s7 + $0x28] sm:$0xf]
  %v3801 = vld [vmem:[%s7 + $0x2c] sm:$0xf]
  %v3802 = vld [vmem:[%s7 + $0x30] sm:$0xf]
  %v3803 = vld [vmem:[%s7 + $0x34] sm:$0xf]
  %v3804 = vld [vmem:[%s7 + $0x38] sm:$0xf]
  %v3805 = vld [vmem:[%s7 + $0x3c] sm:$0xf]
  %v3806 = vld [vmem:[%s7 + $0x40] sm:$0xf]
  %v3807 = vld [vmem:[%s7 + $0x44] sm:$0xf]
  %v3808 = vld [vmem:[%s7 + $0x48] sm:$0xf]
  %v3809 = vld [vmem:[%s7 + $0x4c] sm:$0xf]
  %v3810 = vld [vmem:[%s7 + $0x50] sm:$0xf]
  %v3811 = vld [vmem:[%s7 + $0x54] sm:$0xf]
  %v3812 = vld [vmem:[%s7 + $0x58] sm:$0xf]
  %v3813 = vld [vmem:[%s7 + $0x5c] sm:$0xf]
  %v3814 = vld [vmem:[%s7 + $0x60] sm:$0xf]
  %v3815 = vld [vmem:[%s7 + $0x64] sm:$0xf]
  %v3816 = vld [vmem:[%s7 + $0x68] sm:$0xf]
  %v3817 = vld [vmem:[%s7 + $0x6c] sm:$0xf]
  %v3818 = vld [vmem:[%s7 + $0x70] sm:$0xf]
  %v3819 = vld [vmem:[%s7 + $0x74] sm:$0xf]
  %v3820 = vld [vmem:[%s7 + $0x78] sm:$0xf]
  %v3821 = vld [vmem:[%s7 + $0x7c] sm:$0xf]
  %v3822 = vld [vmem:[%s7 + $0x80] sm:$0xf]
  %v3823 = vld [vmem:[%s7 + $0x84] sm:$0xf]
  %v3824 = vld [vmem:[%s7 + $0x88] sm:$0xf]
  %v3825 = vld [vmem:[%s7 + $0x8c] sm:$0xf]
  %v3826 = vld [vmem:[%s7 + $0x90] sm:$0xf]
  %v3827 = vld [vmem:[%s7 + $0x94] sm:$0xf]
  %v3828 = vld [vmem:[%s7 + $0x98] sm:$0xf]
  %v3829 = vld [vmem:[%s7 + $0x9c] sm:$0xf]
  %v3830 = vld [vmem:[%s7 + $0xa0] sm:$0xf]
  %v3831 = vld [vmem:[%s7 + $0xa4] sm:$0xf]
  %v3832 = vld [vmem:[%s7 + $0xa8] sm:$0xf]
  %v3833 = vld [vmem:[%s7 + $0xac] sm:$0xf]
  %v3834 = vld [vmem:[%s7 + $0xb0] sm:$0xf]
  %v3835 = vld [vmem:[%s7 + $0xb4] sm:$0xf]
  %v3836 = vld [vmem:[%s7 + $0xb8] sm:$0xf]
  %v3837 = vld [vmem:[%s7 + $0xbc] sm:$0xf]
  %v3838 = vld [vmem:[%s7 + $0xc0] sm:$0xf]
  %v3839 = vld [vmem:[%s7 + $0xc4] sm:$0xf]
  %v3840 = vld [vmem:[%s7 + $0xc8] sm:$0xf]
  %v3841 = vld [vmem:[%s7 + $0xcc] sm:$0xf]
  %v3842 = vld [vmem:[%s7 + $0xd0] sm:$0xf]
  %v3843 = vld [vmem:[%s7 + $0xd4] sm:$0xf]
  %v3844 = vld [vmem:[%s7 + $0xd8] sm:$0xf]
  %v3845 = vld [vmem:[%s7 + $0xdc] sm:$0xf]
  %v3846 = vld [vmem:[%s7 + $0xe0] sm:$0xf]
  %v3847 = vld [vmem:[%s7 + $0xe4] sm:$0xf]
  %v3848 = vld [vmem:[%s7 + $0xe8] sm:$0xf]
  %v3849 = vld [vmem:[%s7 + $0xec] sm:$0xf]
  %v3850 = vld [vmem:[%s7 + $0xf0] sm:$0xf]
  %v3851 = vld [vmem:[%s7 + $0xf4] sm:$0xf]
  %v3852 = vld [vmem:[%s7 + $0xf8] sm:$0xf]
  %v3853 = vld [vmem:[%s7 + $0xfc] sm:$0xf]
  %v3854 = vld [vmem:[%s7 + $0x100] sm:$0xf]
  %v3855 = vld [vmem:[%s7 + $0x104] sm:$0xf]
  %v3856 = vld [vmem:[%s7 + $0x108] sm:$0xf]
  %v3857 = vld [vmem:[%s7 + $0x10c] sm:$0xf]
  %v3858 = vld [vmem:[%s7 + $0x110] sm:$0xf]
  %v3859 = vld [vmem:[%s7 + $0x114] sm:$0xf]
  %v3860 = vld [vmem:[%s7 + $0x118] sm:$0xf]
  %v3861 = vld [vmem:[%s7 + $0x11c] sm:$0xf]
  %v3862 = vld [vmem:[%s7 + $0x120] sm:$0xf]
  %v3863 = vld [vmem:[%s7 + $0x124] sm:$0xf]
  %v3864 = vld [vmem:[%s7 + $0x128] sm:$0xf]
  %v3865 = vld [vmem:[%s7 + $0x12c] sm:$0xf]
  %v3866 = vld [vmem:[%s7 + $0x130] sm:$0xf]
  %v3867 = vld [vmem:[%s7 + $0x134] sm:$0xf]
  %v3868 = vld [vmem:[%s7 + $0x138] sm:$0xf]
  %v3869 = vld [vmem:[%s7 + $0x13c] sm:$0xf]
  %v3870 = vld [vmem:[%s7 + $0x140] sm:$0xf]
  %v3871 = vld [vmem:[%s7 + $0x144] sm:$0xf]
  %v3872 = vld [vmem:[%s7 + $0x148] sm:$0xf]
  %v3873 = vld [vmem:[%s7 + $0x14c] sm:$0xf]
  %v3874 = vld [vmem:[%s7 + $0x150] sm:$0xf]
  %v3875 = vld [vmem:[%s7 + $0x154] sm:$0xf]
  %v3876 = vld [vmem:[%s7 + $0x158] sm:$0xf]
  %v3877 = vld [vmem:[%s7 + $0x15c] sm:$0xf]
  %v3878 = vld [vmem:[%s7 + $0x160] sm:$0xf]
  %v3879 = vld [vmem:[%s7 + $0x164] sm:$0xf]
  %v3880 = vld [vmem:[%s7 + $0x168] sm:$0xf]
  %v3881 = vld [vmem:[%s7 + $0x16c] sm:$0xf]
  %v3882 = vld [vmem:[%s7 + $0x170] sm:$0xf]
  %v3883 = vld [vmem:[%s7 + $0x174] sm:$0xf]
  %v3884 = vld [vmem:[%s7 + $0x178] sm:$0xf]
  %v3885 = vld [vmem:[%s7 + $0x17c] sm:$0xf]
  %v3886 = vld [vmem:[%s7 + $0x180] sm:$0xf]
  %v3887 = vld [vmem:[%s7 + $0x184] sm:$0xf]
  %v3888 = vld [vmem:[%s8] sm:$0x1]
  %v3890 = vlaneseq
  %v3891 = vshrl.u32 %v3890, 7
  %v3892 = vsub.s32 0, %v3891
  %v3893 = vrot.slane %v3888, %v3892
  %v3993 = vunpack.c.l.b16 %v3790
  %v3994 = vunpack.c.l.b16 %v3791
  %v3995 = vunpack.c.l.b16 %v3792
  %v3996 = vunpack.c.l.b16 %v3793
  %v3997 = vunpack.c.l.b16 %v3794
  %v3998 = vunpack.c.l.b16 %v3795
  %v3999 = vunpack.c.l.b16 %v3796
  %v4000 = vunpack.c.l.b16 %v3797
  %v4001 = vunpack.c.l.b16 %v3798
  %v4002 = vunpack.c.l.b16 %v3799
  %v4003 = vunpack.c.l.b16 %v3800
  %v4004 = vunpack.c.l.b16 %v3801
  %v4005 = vunpack.c.l.b16 %v3802
  %v4006 = vunpack.c.l.b16 %v3803
  %v4007 = vunpack.c.l.b16 %v3804
  %v4008 = vunpack.c.l.b16 %v3805
  %v4009 = vunpack.c.l.b16 %v3806
  %v4010 = vunpack.c.l.b16 %v3807
  %v4011 = vunpack.c.l.b16 %v3808
  %v4012 = vunpack.c.l.b16 %v3809
  %v4013 = vunpack.c.l.b16 %v3810
  %v4014 = vunpack.c.l.b16 %v3811
  %v4015 = vunpack.c.l.b16 %v3812
  %v4016 = vunpack.c.l.b16 %v3813
  %v4017 = vunpack.c.l.b16 %v3814
  %v4018 = vunpack.c.l.b16 %v3815
  %v4019 = vunpack.c.l.b16 %v3816
  %v4020 = vunpack.c.l.b16 %v3817
  %v4021 = vunpack.c.l.b16 %v3818
  %v4022 = vunpack.c.l.b16 %v3819
  %v4023 = vunpack.c.l.b16 %v3820
  %v4024 = vunpack.c.l.b16 %v3821
  %v4025 = vunpack.c.l.b16 %v3822
  %v4026 = vunpack.c.l.b16 %v3823
  %v4027 = vunpack.c.l.b16 %v3824
  %v4028 = vunpack.c.l.b16 %v3825
  %v4029 = vunpack.c.l.b16 %v3826
  %v4030 = vunpack.c.l.b16 %v3827
  %v4031 = vunpack.c.l.b16 %v3828
  %v4032 = vunpack.c.l.b16 %v3829
  %v4033 = vunpack.c.l.b16 %v3830
  %v4034 = vunpack.c.l.b16 %v3831
  %v4035 = vunpack.c.l.b16 %v3832
  %v4036 = vunpack.c.l.b16 %v3833
  %v4037 = vunpack.c.l.b16 %v3834
  %v4038 = vunpack.c.l.b16 %v3835
  %v4039 = vunpack.c.l.b16 %v3836
  %v4040 = vunpack.c.l.b16 %v3837
  %v4041 = vunpack.c.l.b16 %v3838
  %v4042 = vunpack.c.l.b16 %v3839
  %v4043 = vunpack.c.l.b16 %v3840
  %v4044 = vunpack.c.l.b16 %v3841
  %v4045 = vunpack.c.l.b16 %v3842
  %v4046 = vunpack.c.l.b16 %v3843
  %v4047 = vunpack.c.l.b16 %v3844
  %v4048 = vunpack.c.l.b16 %v3845
  %v4049 = vunpack.c.l.b16 %v3846
  %v4050 = vunpack.c.l.b16 %v3847
  %v4051 = vunpack.c.l.b16 %v3848
  %v4052 = vunpack.c.l.b16 %v3849
  %v4053 = vunpack.c.l.b16 %v3850
  %v4054 = vunpack.c.l.b16 %v3851
  %v4055 = vunpack.c.l.b16 %v3852
  %v4056 = vunpack.c.l.b16 %v3853
  %v4057 = vunpack.c.l.b16 %v3854
  %v4058 = vunpack.c.l.b16 %v3855
  %v4059 = vunpack.c.l.b16 %v3856
  %v4060 = vunpack.c.l.b16 %v3857
  %v4061 = vunpack.c.l.b16 %v3858
  %v4062 = vunpack.c.l.b16 %v3859
  %v4063 = vunpack.c.l.b16 %v3860
  %v4064 = vunpack.c.l.b16 %v3861
  %v4065 = vunpack.c.l.b16 %v3862
  %v4066 = vunpack.c.l.b16 %v3863
  %v4067 = vunpack.c.l.b16 %v3864
  %v4068 = vunpack.c.l.b16 %v3865
  %v4069 = vunpack.c.l.b16 %v3866
  %v4070 = vunpack.c.l.b16 %v3867
  %v4071 = vunpack.c.l.b16 %v3868
  %v4072 = vunpack.c.l.b16 %v3869
  %v4073 = vunpack.c.l.b16 %v3870
  %v4074 = vunpack.c.l.b16 %v3871
  %v4075 = vunpack.c.l.b16 %v3872
  %v4076 = vunpack.c.l.b16 %v3873
  %v4077 = vunpack.c.l.b16 %v3874
  %v4078 = vunpack.c.l.b16 %v3875
  %v4079 = vunpack.c.l.b16 %v3876
  %v4080 = vunpack.c.l.b16 %v3877
  %v4081 = vunpack.c.l.b16 %v3878
  %v4082 = vunpack.c.l.b16 %v3879
  %v4083 = vunpack.c.l.b16 %v3880
  %v4084 = vunpack.c.l.b16 %v3881
  %v4085 = vunpack.c.l.b16 %v3882
  %v4086 = vunpack.c.l.b16 %v3883
  %v4087 = vunpack.c.l.b16 %v3884
  %v4088 = vunpack.c.l.b16 %v3885
  %v4089 = vunpack.c.l.b16 %v3886
  %v4090 = vunpack.c.l.b16 %v3887
  %v4091 = vpack.c.b16 %v3994, %v3993
  %v4092 = vpack.c.b16 %v3996, %v3995
  %v4093 = vpack.c.b16 %v3998, %v3997
  %v4094 = vpack.c.b16 %v4000, %v3999
  %v4095 = vpack.c.b16 %v4002, %v4001
  %v4096 = vpack.c.b16 %v4004, %v4003
  %v4097 = vpack.c.b16 %v4006, %v4005
  %v4098 = vpack.c.b16 %v4008, %v4007
  %v4099 = vpack.c.b16 %v4010, %v4009
  %v4100 = vpack.c.b16 %v4012, %v4011
  %v4101 = vpack.c.b16 %v4014, %v4013
  %v4102 = vpack.c.b16 %v4016, %v4015
  %v4103 = vpack.c.b16 %v4018, %v4017
  %v4104 = vpack.c.b16 %v4020, %v4019
  %v4105 = vpack.c.b16 %v4022, %v4021
  %v4106 = vpack.c.b16 %v4024, %v4023
  %v4107 = vpack.c.b16 %v4026, %v4025
  %v4108 = vpack.c.b16 %v4028, %v4027
  %v4109 = vpack.c.b16 %v4030, %v4029
  %v4110 = vpack.c.b16 %v4032, %v4031
  %v4111 = vpack.c.b16 %v4034, %v4033
  %v4112 = vpack.c.b16 %v4036, %v4035
  %v4113 = vpack.c.b16 %v4038, %v4037
  %v4114 = vpack.c.b16 %v4040, %v4039
  %v4115 = vpack.c.b16 %v4042, %v4041
  %v4116 = vpack.c.b16 %v4044, %v4043
  %v4117 = vpack.c.b16 %v4046, %v4045
  %v4118 = vpack.c.b16 %v4048, %v4047
  %v4119 = vpack.c.b16 %v4050, %v4049
  %v4120 = vpack.c.b16 %v4052, %v4051
  %v4121 = vpack.c.b16 %v4054, %v4053
  %v4122 = vpack.c.b16 %v4056, %v4055
  %v4123 = vpack.c.b16 %v4058, %v4057
  %v4124 = vpack.c.b16 %v4060, %v4059
  %v4125 = vpack.c.b16 %v4062, %v4061
  %v4126 = vpack.c.b16 %v4064, %v4063
  %v4127 = vpack.c.b16 %v4066, %v4065
  %v4128 = vpack.c.b16 %v4068, %v4067
  %v4129 = vpack.c.b16 %v4070, %v4069
  %v4130 = vpack.c.b16 %v4072, %v4071
  %v4131 = vpack.c.b16 %v4074, %v4073
  %v4132 = vpack.c.b16 %v4076, %v4075
  %v4133 = vpack.c.b16 %v4078, %v4077
  %v4134 = vpack.c.b16 %v4080, %v4079
  %v4135 = vpack.c.b16 %v4082, %v4081
  %v4136 = vpack.c.b16 %v4084, %v4083
  %v4137 = vpack.c.b16 %v4086, %v4085
  %v4138 = vpack.c.b16 %v4088, %v4087
  %v4139 = vpack.c.b16 %v4090, %v4089
  %v4189 = vsel %vm1773, %v3766, 0
  %4191 = vmatprep.subr.bf16.mxu0 0
  %4192 = vmatpush1.bf16.msra.mxu0 %v4098
  %4193 = vmatprep.subr.bf16.mxu0 0
  %4194 = vmatpush1.bf16.msra.mxu0 %v4097
  %4195 = vmatprep.subr.bf16.mxu0 0
  %4196 = vmatpush1.bf16.msra.mxu0 %v4096
  %4197 = vmatprep.subr.bf16.mxu0 0
  %4198 = vmatpush1.bf16.msra.mxu0 %v4095
  %4199 = vmatprep.subr.bf16.mxu0 0
  %4200 = vmatpush1.bf16.msra.mxu0 %v4094
  %4201 = vmatprep.subr.bf16.mxu0 0
  %4202 = vmatpush1.bf16.msra.mxu0 %v4093
  %4203 = vmatprep.subr.bf16.mxu0 0
  %4204 = vmatpush1.bf16.msra.mxu0 %v4092
  %4205 = vmatprep.subr.bf16.mxu0 0
  %4206 = vmatpush1.bf16.msra.mxu0 %v4091
  %4207 = vmatprep.subr.bf16.mxu0 0
  %4208 = vmatpush2.bf16.msra.mxu0 %v4106
  %4209 = vmatprep.subr.bf16.mxu0 0
  %4210 = vmatpush2.bf16.msra.mxu0 %v4105
  %4211 = vmatprep.subr.bf16.mxu0 0
  %4212 = vmatpush2.bf16.msra.mxu0 %v4104
  %4213 = vmatprep.subr.bf16.mxu0 0
  %4214 = vmatpush2.bf16.msra.mxu0 %v4103
  %4215 = vmatprep.subr.bf16.mxu0 0
  %4216 = vmatpush2.bf16.msra.mxu0 %v4102
  %4217 = vmatprep.subr.bf16.mxu0 0
  %4218 = vmatpush2.bf16.msra.mxu0 %v4101
  %4219 = vmatprep.subr.bf16.mxu0 0
  %4220 = vmatpush2.bf16.msra.mxu0 %v4100
  %4221 = vmatprep.subr.bf16.mxu0 0
  %4222 = vmatpush2.bf16.msra.mxu0 %v4099
  %4223 = vmatprep.mubr.bf16.mxu0 %v3773
  %4224 = vmatmul.mubr.bf16.gmra.mxu0 %v3770
  %v4225 = vpop.f32.mrf.mxu0
  %v4226 = vadd.f32 %v3893, %v4225
  %v4227 = vpop.f32.mrf.mxu0
  %v4228 = vpop.f32.mrf.mxu0
  %v4229 = vpop.f32.mrf.mxu0
  %4230 = vdwg.mxu0
  %4231 = vmatprep.subr.bf16.mxu0 0
  %4232 = vmatpush1.bf16.msra.mxu0 %v4114
  %4233 = vmatprep.subr.bf16.mxu0 0
  %4234 = vmatpush1.bf16.msra.mxu0 %v4113
  %4235 = vmatprep.subr.bf16.mxu0 0
  %4236 = vmatpush1.bf16.msra.mxu0 %v4112
  %4237 = vmatprep.subr.bf16.mxu0 0
  %4238 = vmatpush1.bf16.msra.mxu0 %v4111
  %4239 = vmatprep.subr.bf16.mxu0 0
  %4240 = vmatpush1.bf16.msra.mxu0 %v4110
  %4241 = vmatprep.subr.bf16.mxu0 0
  %4242 = vmatpush1.bf16.msra.mxu0 %v4109
  %4243 = vmatprep.subr.bf16.mxu0 0
  %4244 = vmatpush1.bf16.msra.mxu0 %v4108
  %4245 = vmatprep.subr.bf16.mxu0 0
  %4246 = vmatpush1.bf16.msra.mxu0 %v4107
  %4247 = vmatprep.subr.bf16.mxu0 0
  %4248 = vmatpush2.bf16.msra.mxu0 %v4122
  %4249 = vmatprep.subr.bf16.mxu0 0
  %4250 = vmatpush2.bf16.msra.mxu0 %v4121
  %4251 = vmatprep.subr.bf16.mxu0 0
  %4252 = vmatpush2.bf16.msra.mxu0 %v4120
  %4253 = vmatprep.subr.bf16.mxu0 0
  %4254 = vmatpush2.bf16.msra.mxu0 %v4119
  %4255 = vmatprep.subr.bf16.mxu0 0
  %4256 = vmatpush2.bf16.msra.mxu0 %v4118
  %4257 = vmatprep.subr.bf16.mxu0 0
  %4258 = vmatpush2.bf16.msra.mxu0 %v4117
  %4259 = vmatprep.subr.bf16.mxu0 0
  %4260 = vmatpush2.bf16.msra.mxu0 %v4116
  %4261 = vmatprep.subr.bf16.mxu0 0
  %4262 = vmatpush2.bf16.msra.mxu0 %v4115
  %4263 = vmatprep.mubr.bf16.mxu0 %v3781
  %4264 = vmatmul.mubr.bf16.gmra.mxu0 %v3777
  %v4265 = vpop.f32.mrf.mxu0
  %v4266 = vadd.f32 %v4226, %v4265
  %v4267 = vpop.f32.mrf.mxu0
  %v4268 = vpop.f32.mrf.mxu0
  %v4269 = vpop.f32.mrf.mxu0
  %4270 = vdwg.mxu0
  %4271 = vmatprep.subr.bf16.mxu0 0
  %4272 = vmatpush1.bf16.msra.mxu0 %v4130
  %4273 = vmatprep.subr.bf16.mxu0 0
  %4274 = vmatpush1.bf16.msra.mxu0 %v4129
  %4275 = vmatprep.subr.bf16.mxu0 0
  %4276 = vmatpush1.bf16.msra.mxu0 %v4128
  %4277 = vmatprep.subr.bf16.mxu0 0
  %4278 = vmatpush1.bf16.msra.mxu0 %v4127
  %4279 = vmatprep.subr.bf16.mxu0 0
  %4280 = vmatpush1.bf16.msra.mxu0 %v4126
  %4281 = vmatprep.subr.bf16.mxu0 0
  %4282 = vmatpush1.bf16.msra.mxu0 %v4125
  %4283 = vmatprep.subr.bf16.mxu0 0
  %4284 = vmatpush1.bf16.msra.mxu0 %v4124
  %4285 = vmatprep.subr.bf16.mxu0 0
  %4286 = vmatpush1.bf16.msra.mxu0 %v4123
  %4287 = vmatprep.subr.bf16.mxu0 0
  %4288 = vmatpush2.bf16.msra.mxu0 %v4138
  %4289 = vmatprep.subr.bf16.mxu0 0
  %4290 = vmatpush2.bf16.msra.mxu0 %v4137
  %4291 = vmatprep.subr.bf16.mxu0 0
  %4292 = vmatpush2.bf16.msra.mxu0 %v4136
  %4293 = vmatprep.subr.bf16.mxu0 0
  %4294 = vmatpush2.bf16.msra.mxu0 %v4135
  %4295 = vmatprep.subr.bf16.mxu0 0
  %4296 = vmatpush2.bf16.msra.mxu0 %v4134
  %4297 = vmatprep.subr.bf16.mxu0 0
  %4298 = vmatpush2.bf16.msra.mxu0 %v4133
  %4299 = vmatprep.subr.bf16.mxu0 0
  %4300 = vmatpush2.bf16.msra.mxu0 %v4132
  %4301 = vmatprep.subr.bf16.mxu0 0
  %4302 = vmatpush2.bf16.msra.mxu0 %v4131
  %4303 = vmatprep.mubr.bf16.mxu0 %v3788
  %4304 = vmatmul.mubr.bf16.gmra.mxu0 %v3785
  %v4305 = vpop.f32.mrf.mxu0
  %v4306 = vadd.f32 %v4266, %v4305
  %v4307 = vpop.f32.mrf.mxu0
  %v4308 = vpop.f32.mrf.mxu0
  %v4309 = vpop.f32.mrf.mxu0
  %4310 = vdwg.mxu0
  %4311 = vmatprep.subr.bf16.mxu0 0
  %4312 = vmatpush1.bf16.msra.mxu0 0
  %4313 = vmatprep.subr.bf16.mxu0 0
  %4314 = vmatpush1.bf16.msra.mxu0 0
  %4315 = vmatprep.subr.bf16.mxu0 0
  %4316 = vmatpush1.bf16.msra.mxu0 0
  %4317 = vmatprep.subr.bf16.mxu0 0
  %4318 = vmatpush1.bf16.msra.mxu0 0
  %4319 = vmatprep.subr.bf16.mxu0 0
  %4320 = vmatpush1.bf16.msra.mxu0 0
  %4321 = vmatprep.subr.bf16.mxu0 0
  %4322 = vmatpush1.bf16.msra.mxu0 0
  %4323 = vmatprep.subr.bf16.mxu0 0
  %4324 = vmatpush1.bf16.msra.mxu0 0
  %4325 = vmatprep.subr.bf16.mxu0 0
  %4326 = vmatpush1.bf16.msra.mxu0 %v4139
  %4327 = vmatprep.subr.bf16.mxu0 0
  %4328 = vmatpush2.bf16.msra.mxu0 0
  %4329 = vmatprep.subr.bf16.mxu0 0
  %4330 = vmatpush2.bf16.msra.mxu0 0
  %4331 = vmatprep.subr.bf16.mxu0 0
  %4332 = vmatpush2.bf16.msra.mxu0 0
  %4333 = vmatprep.subr.bf16.mxu0 0
  %4334 = vmatpush2.bf16.msra.mxu0 0
  %4335 = vmatprep.subr.bf16.mxu0 0
  %4336 = vmatpush2.bf16.msra.mxu0 0
  %4337 = vmatprep.subr.bf16.mxu0 0
  %4338 = vmatpush2.bf16.msra.mxu0 0
  %4339 = vmatprep.subr.bf16.mxu0 0
  %4340 = vmatpush2.bf16.msra.mxu0 0
  %4341 = vmatprep.subr.bf16.mxu0 0
  %4342 = vmatpush2.bf16.msra.mxu0 0
  %4343 = vmatprep.mubr.bf16.mxu0 0
  %4344 = vmatmul.mubr.bf16.gmra.mxu0 %v4189
  %v4345 = vpop.f32.mrf.mxu0
  %v4346 = vadd.f32 %v4306, %v4345
  %v4347 = vpop.f32.mrf.mxu0
  %v4348 = vpop.f32.mrf.mxu0
  %v4349 = vpop.f32.mrf.mxu0
  %4350 = vdwg.mxu0
  %4351 = vst [vmem:[%s9] sm:$0xff] %v4346
  // Predicated region
  $region38: #{tiny_convnet_forward.1} parent=0 // pred_check
    _
  $region39: #{tiny_convnet_forward.1} parent=0 // pred_check_branch
    %4353 = sbr.rel (0) target = $region41
  $region40: #{tiny_convnet_forward.1} parent=0 // pred_region
    _
  $region41: #{tiny_convnet_forward.1} parent=0 // pred_fallthru
    _
  // Predicated region
  $region42: #{tiny_convnet_forward.1} parent=0 // pred_check
    _
  $region43: #{tiny_convnet_forward.1} parent=0 // pred_check_branch
    %4355 = sbr.rel (0) target = $region45
  $region44: #{tiny_convnet_forward.1} parent=0 // pred_region
    _
  $region45: #{tiny_convnet_forward.1} parent=0 // pred_fallthru
    _

</llo_original>
